<compile_context>
chip_gen: v7x
topology: tpu7x:2x2x1
jax: 0.10.0
libtpu: 0.0.40
codegen_flags: <defaults>
</compile_context>

<pallas_src>
import functools
import math

import jax
import jax.numpy as jnp
import numpy as np
from jax.experimental import pallas as pl
from jax.experimental.pallas import tpu as pltpu

F_PAD = 128        # lane-dense padded feature width
NUM_LAYERS = 14


# ----------------------------- fused Pallas kernel ----------------------------------

def _fused_g_res_net_kernel(feat_ref, adj_ref, w_ref, b_ref,
                            coords_ref, feat_out_ref,
                            *, hidden, side_len_hidden, side_len_out):
    n, f_pad = feat_ref.shape
    # column-index iota and all column masks hoisted once, reused by every layer
    col = jax.lax.broadcasted_iota(jnp.int32, (n, f_pad), 1)
    mask_side_hidden = col < side_len_hidden     # gc1..gc13 (out width = hidden)
    mask_side_out = col < side_len_out           # gc14      (out width = output_features)
    mask_hidden = col < hidden                   # features[:, :hidden] truncation

    adj = adj_ref[...]        # bf16, stays resident in VMEM for all 14 layers
    feat = feat_ref[...]      # f32, lane-padded

    def gcn(x, layer, side_mask, relu):
        # support = x @ W            (bf16 operands, f32 accumulation on the MXU)
        support = jnp.dot(x.astype(jnp.bfloat16), w_ref[layer],
                          preferred_element_type=jnp.float32)
        # mixed = adj @ support ; keeping columns < side_len of `mixed` and
        # columns >= side_len of `support` is exactly
        #   cat([adj @ support[:, :side_len], support[:, side_len:]], axis=1)
        mixed = jnp.dot(adj, support.astype(jnp.bfloat16),
                        preferred_element_type=jnp.float32)
        out = jnp.where(side_mask, mixed, support) + b_ref[layer]
        if relu:
            out = jnp.maximum(out, 0.0)
        return out

    # block 1: gc1 -> relu, gc2 -> relu, features = (features[:, :hidden] + x) / 2
    x = gcn(feat, 0, mask_side_hidden, True)
    x = gcn(x, 1, mask_side_hidden, True)
    feat = (jnp.where(mask_hidden, feat, 0.0) + x) * 0.5
    # blocks 2..6: (gc3,gc4) ... (gc11,gc12)
    for i in range(2, 12, 2):
        x = gcn(feat, i, mask_side_hidden, True)
        x = gcn(x, i + 1, mask_side_hidden, True)
        feat = (feat + x) * 0.5
    # block 7: single layer gc13 with residual
    x = gcn(feat, 12, mask_side_hidden, True)
    feat = (feat + x) * 0.5
    feat_out_ref[...] = feat
    # final coords layer gc14 (no relu, no residual)
    coords_ref[...] = gcn(feat, 13, mask_side_out, False)


_VMEM = pl.BlockSpec(memory_space=pltpu.MemorySpace.VMEM)


# ------------------------------- G_Res_Net forward ----------------------------------

def g_res_net_forward(features, adj, params, hidden, output_features):
    """params: list of 14 (w, b) pairs for gc1..gc14 (f32)."""
    n, f_in = features.shape
    f_pad = F_PAD

    # lane-dense padding (plain-JAX layout plumbing outside the kernel)
    feat_pad = jnp.zeros((n, f_pad), jnp.float32).at[:, :f_in].set(features)
    w_stack = jnp.stack([
        jnp.pad(w.astype(jnp.bfloat16),
                ((0, f_pad - w.shape[0]), (0, f_pad - w.shape[1])))
        for (w, _) in params])
    b_stack = jnp.stack([
        jnp.pad(b.astype(jnp.float32), ((0, 0), (0, f_pad - b.shape[1])))
        for (_, b) in params])
    adj_bf16 = adj.astype(jnp.bfloat16)

    side_len_hidden = max(hidden // 3, 2)
    side_len_out = max(output_features // 3, 2)

    flops = NUM_LAYERS * (2 * n * f_pad * f_pad + 2 * n * n * f_pad)
    bytes_accessed = (feat_pad.size * 4 + adj_bf16.size * 2 + w_stack.size * 2
                      + b_stack.size * 4 + 2 * n * f_pad * 4)

    kernel = functools.partial(
        _fused_g_res_net_kernel,
        hidden=hidden,
        side_len_hidden=side_len_hidden,
        side_len_out=side_len_out,
    )
    coords_pad, feat_out_pad = pl.pallas_call(
        kernel,
        out_shape=(jax.ShapeDtypeStruct((n, f_pad), jnp.float32),
                   jax.ShapeDtypeStruct((n, f_pad), jnp.float32)),
        in_specs=[_VMEM, _VMEM, _VMEM, _VMEM],
        out_specs=(_VMEM, _VMEM),
        cost_estimate=pl.CostEstimate(flops=flops, transcendentals=0,
                                      bytes_accessed=bytes_accessed),
    )(feat_pad, adj_bf16, w_stack, b_stack)

    return coords_pad[:, :output_features], feat_out_pad[:, :hidden]


# ------------------------------- reference (plain JAX) ------------------------------

def _gcn_ref(x, adj, w, b, *, compute_dtype):
    support = jnp.dot(x.astype(compute_dtype), w.astype(compute_dtype),
                      preferred_element_type=jnp.float32)
    side_len = max(w.shape[1] // 3, 2)
    side1 = jnp.dot(adj.astype(compute_dtype),
                    support[:, :side_len].astype(compute_dtype),
                    preferred_element_type=jnp.float32)
    side2 = support[:, side_len:]
    return jnp.concatenate([side1, side2], axis=1) + b


def _g_res_net_ref(features, adj, params, hidden, compute_dtype=jnp.float32):
    p = params
    gcn = functools.partial(_gcn_ref, compute_dtype=compute_dtype)
    x = jax.nn.relu(gcn(features, adj, *p[0]))
    x = jax.nn.relu(gcn(x, adj, *p[1]))
    features = (features[:, :hidden] + x) / 2.0
    for i in range(2, 12, 2):
        x = jax.nn.relu(gcn(features, adj, *p[i]))
        x = jax.nn.relu(gcn(x, adj, *p[i + 1]))
        features = (features + x) / 2.0
    x = jax.nn.relu(gcn(features, adj, *p[12]))
    features = (features + x) / 2.0
    coords = gcn(features, adj, *p[13])
    return coords, features


# ------------------------------- parameter init -------------------------------------

def init_zngcn(key, f_in, f_out):
    # mimics ZNGCN.reset_parameters: uniform(-stdv, stdv), stdv = 0.6 * 6 / sqrt(in+out)
    stdv = 0.6 * 6.0 / math.sqrt(f_in + f_out)
    k1, k2 = jax.random.split(key)
    w = jax.random.uniform(k1, (f_in, f_out), minval=-stdv, maxval=stdv,
                           dtype=jnp.float32)
    b = jax.random.uniform(k2, (1, f_out), minval=-0.1, maxval=0.1,
                           dtype=jnp.float32)
    return w, b


def init_g_res_net(key, input_features, hidden, output_features):
    dims = [(input_features, hidden)] + [(hidden, hidden)] * 12 + [(hidden, output_features)]
    keys = jax.random.split(key, len(dims))
    return [init_zngcn(k, fi, fo) for k, (fi, fo) in zip(keys, dims)]


# ----------------------------------- main --------------------------------------------

if __name__ == "__main__":
    N = 64               # number of graph vertices
    INPUT_FEATURES = 48  # must be >= hidden (as required by the PyTorch forward)
    HIDDEN = 32
    OUTPUT_FEATURES = 3

    key = jax.random.PRNGKey(0)
    k_feat, k_adj, k_params = jax.random.split(key, 3)

    features = 0.1 * jax.random.normal(k_feat, (N, INPUT_FEATURES), dtype=jnp.float32)
    # dense "normalized adjacency" stand-in, values kept small so activations stay bounded
    adj = jax.random.uniform(k_adj, (N, N), dtype=jnp.float32) / N

    params = init_g_res_net(k_params, INPUT_FEATURES, HIDDEN, OUTPUT_FEATURES)

    fwd = jax.jit(functools.partial(g_res_net_forward, hidden=HIDDEN,
                                    output_features=OUTPUT_FEATURES))
    coords, out_features = fwd(features, adj, params)
    jax.block_until_ready((coords, out_features))

    # structural correctness vs. plain-JAX reference at matching (bf16-operand,
    # f32-accumulate) matmul precision
    coords_bf, feat_bf = _g_res_net_ref(features, adj, params, HIDDEN,
                                        compute_dtype=jnp.bfloat16)
    np.testing.assert_allclose(np.asarray(coords), np.asarray(coords_bf),
                               rtol=2e-2, atol=2e-2)
    np.testing.assert_allclose(np.asarray(out_features), np.asarray(feat_bf),
                               rtol=2e-2, atol=2e-2)

    # loose sanity check vs. full-f32 reference (difference = bf16 matmul rounding only)
    coords_f32, feat_f32 = _g_res_net_ref(features, adj, params, HIDDEN,
                                          compute_dtype=jnp.float32)
    np.testing.assert_allclose(np.asarray(coords), np.asarray(coords_f32),
                               rtol=1e-1, atol=1e-1)
    np.testing.assert_allclose(np.asarray(out_features), np.asarray(feat_f32),
                               rtol=1e-1, atol=1e-1)

    assert coords.shape == (N, OUTPUT_FEATURES)
    assert out_features.shape == (N, HIDDEN)
    print("KERNEL_OK")
</pallas_src>

<mosaic_0001>
module attributes {stable_mosaic.version = 11 : i64} {
  func.func @_fused_g_res_net_kernel(%arg0: memref<64x128xf32, #tpu.memory_space<vmem>>, %arg1: memref<64x64xbf16, #tpu.memory_space<vmem>>, %arg2: memref<14x128x128xbf16, #tpu.memory_space<vmem>>, %arg3: memref<14x1x128xf32, #tpu.memory_space<vmem>>, %arg4: memref<64x128xf32, #tpu.memory_space<vmem>>, %arg5: memref<64x128xf32, #tpu.memory_space<vmem>>) attributes {dimension_semantics = [], scalar_prefetch = 0 : i64, scratch_operands = 0 : i64, tpu.core_type = #tpu.core_type<tc>} {
    %0 = tpu.iota {dimensions = array<i32: 1>} : vector<64x128xi32>
    %c10_i32 = arith.constant 10 : i32
    %1 = vector.broadcast %c10_i32 : i32 to vector<64x128xi32>
    %2 = arith.cmpi slt, %0, %1 : vector<64x128xi32>
    %c2_i32 = arith.constant 2 : i32
    %3 = vector.broadcast %c2_i32 : i32 to vector<64x128xi32>
    %4 = arith.cmpi slt, %0, %3 : vector<64x128xi32>
    %c32_i32 = arith.constant 32 : i32
    %5 = vector.broadcast %c32_i32 : i32 to vector<64x128xi32>
    %6 = arith.cmpi slt, %0, %5 : vector<64x128xi32>
    %c0 = arith.constant 0 : index
    %c0_0 = arith.constant 0 : index
    %7 = vector.load %arg1[%c0, %c0_0] : memref<64x64xbf16, #tpu.memory_space<vmem>>, vector<64x64xbf16>
    %c0_1 = arith.constant 0 : index
    %c0_2 = arith.constant 0 : index
    %8 = vector.load %arg0[%c0_1, %c0_2] : memref<64x128xf32, #tpu.memory_space<vmem>>, vector<64x128xf32>
    %9 = arith.truncf %8 : vector<64x128xf32> to vector<64x128xbf16>
    %c0_3 = arith.constant 0 : index
    %c0_4 = arith.constant 0 : index
    %c0_5 = arith.constant 0 : index
    %10 = vector.load %arg2[%c0_3, %c0_4, %c0_5] : memref<14x128x128xbf16, #tpu.memory_space<vmem>>, vector<1x128x128xbf16>
    %11 = vector.shape_cast %10 : vector<1x128x128xbf16> to vector<128x128xbf16>
    %cst = arith.constant dense<0.000000e+00> : vector<64x128xf32>
    %12 = tpu.matmul %9, %11, %cst {dimension_numbers = #tpu.dot_dimension_numbers<[1], [0], [0], [1], [0, 0, 1, 1], [], []>} : vector<64x128xbf16>, vector<128x128xbf16>, vector<64x128xf32> -> vector<64x128xf32>
    %13 = arith.truncf %12 : vector<64x128xf32> to vector<64x128xbf16>
    %cst_6 = arith.constant dense<0.000000e+00> : vector<64x128xf32>
    %14 = tpu.matmul %7, %13, %cst_6 {dimension_numbers = #tpu.dot_dimension_numbers<[1], [0], [0], [1], [0, 0, 1, 1], [], []>} : vector<64x64xbf16>, vector<64x128xbf16>, vector<64x128xf32> -> vector<64x128xf32>
    %15 = arith.select %2, %14, %12 : vector<64x128xi1>, vector<64x128xf32>
    %c0_7 = arith.constant 0 : index
    %c0_8 = arith.constant 0 : index
    %c0_9 = arith.constant 0 : index
    %16 = vector.load %arg3[%c0_7, %c0_8, %c0_9] : memref<14x1x128xf32, #tpu.memory_space<vmem>>, vector<1x1x128xf32>
    %17 = vector.shape_cast %16 : vector<1x1x128xf32> to vector<1x128xf32>
    %18 = vector.broadcast %17 : vector<1x128xf32> to vector<64x128xf32>
    %19 = arith.addf %15, %18 : vector<64x128xf32>
    %cst_10 = arith.constant 0.000000e+00 : f32
    %20 = vector.broadcast %cst_10 : f32 to vector<64x128xf32>
    %21 = arith.maximumf %19, %20 : vector<64x128xf32>
    %22 = arith.truncf %21 : vector<64x128xf32> to vector<64x128xbf16>
    %c1 = arith.constant 1 : index
    %c0_11 = arith.constant 0 : index
    %c0_12 = arith.constant 0 : index
    %23 = vector.load %arg2[%c1, %c0_11, %c0_12] : memref<14x128x128xbf16, #tpu.memory_space<vmem>>, vector<1x128x128xbf16>
    %24 = vector.shape_cast %23 : vector<1x128x128xbf16> to vector<128x128xbf16>
    %cst_13 = arith.constant dense<0.000000e+00> : vector<64x128xf32>
    %25 = tpu.matmul %22, %24, %cst_13 {dimension_numbers = #tpu.dot_dimension_numbers<[1], [0], [0], [1], [0, 0, 1, 1], [], []>} : vector<64x128xbf16>, vector<128x128xbf16>, vector<64x128xf32> -> vector<64x128xf32>
    %26 = arith.truncf %25 : vector<64x128xf32> to vector<64x128xbf16>
    %cst_14 = arith.constant dense<0.000000e+00> : vector<64x128xf32>
    %27 = tpu.matmul %7, %26, %cst_14 {dimension_numbers = #tpu.dot_dimension_numbers<[1], [0], [0], [1], [0, 0, 1, 1], [], []>} : vector<64x64xbf16>, vector<64x128xbf16>, vector<64x128xf32> -> vector<64x128xf32>
    %28 = arith.select %2, %27, %25 : vector<64x128xi1>, vector<64x128xf32>
    %c1_15 = arith.constant 1 : index
    %c0_16 = arith.constant 0 : index
    %c0_17 = arith.constant 0 : index
    %29 = vector.load %arg3[%c1_15, %c0_16, %c0_17] : memref<14x1x128xf32, #tpu.memory_space<vmem>>, vector<1x1x128xf32>
    %30 = vector.shape_cast %29 : vector<1x1x128xf32> to vector<1x128xf32>
    %31 = vector.broadcast %30 : vector<1x128xf32> to vector<64x128xf32>
    %32 = arith.addf %28, %31 : vector<64x128xf32>
    %cst_18 = arith.constant 0.000000e+00 : f32
    %33 = vector.broadcast %cst_18 : f32 to vector<64x128xf32>
    %34 = arith.maximumf %32, %33 : vector<64x128xf32>
    %cst_19 = arith.constant 0.000000e+00 : f32
    %35 = vector.broadcast %cst_19 : f32 to vector<64x128xf32>
    %36 = arith.select %6, %8, %35 : vector<64x128xi1>, vector<64x128xf32>
    %37 = arith.addf %36, %34 : vector<64x128xf32>
    %cst_20 = arith.constant 5.000000e-01 : f32
    %38 = vector.broadcast %cst_20 : f32 to vector<64x128xf32>
    %39 = arith.mulf %37, %38 : vector<64x128xf32>
    %40 = arith.truncf %39 : vector<64x128xf32> to vector<64x128xbf16>
    %c2 = arith.constant 2 : index
    %c0_21 = arith.constant 0 : index
    %c0_22 = arith.constant 0 : index
    %41 = vector.load %arg2[%c2, %c0_21, %c0_22] : memref<14x128x128xbf16, #tpu.memory_space<vmem>>, vector<1x128x128xbf16>
    %42 = vector.shape_cast %41 : vector<1x128x128xbf16> to vector<128x128xbf16>
    %cst_23 = arith.constant dense<0.000000e+00> : vector<64x128xf32>
    %43 = tpu.matmul %40, %42, %cst_23 {dimension_numbers = #tpu.dot_dimension_numbers<[1], [0], [0], [1], [0, 0, 1, 1], [], []>} : vector<64x128xbf16>, vector<128x128xbf16>, vector<64x128xf32> -> vector<64x128xf32>
    %44 = arith.truncf %43 : vector<64x128xf32> to vector<64x128xbf16>
    %cst_24 = arith.constant dense<0.000000e+00> : vector<64x128xf32>
    %45 = tpu.matmul %7, %44, %cst_24 {dimension_numbers = #tpu.dot_dimension_numbers<[1], [0], [0], [1], [0, 0, 1, 1], [], []>} : vector<64x64xbf16>, vector<64x128xbf16>, vector<64x128xf32> -> vector<64x128xf32>
    %46 = arith.select %2, %45, %43 : vector<64x128xi1>, vector<64x128xf32>
    %c2_25 = arith.constant 2 : index
    %c0_26 = arith.constant 0 : index
    %c0_27 = arith.constant 0 : index
    %47 = vector.load %arg3[%c2_25, %c0_26, %c0_27] : memref<14x1x128xf32, #tpu.memory_space<vmem>>, vector<1x1x128xf32>
    %48 = vector.shape_cast %47 : vector<1x1x128xf32> to vector<1x128xf32>
    %49 = vector.broadcast %48 : vector<1x128xf32> to vector<64x128xf32>
    %50 = arith.addf %46, %49 : vector<64x128xf32>
    %cst_28 = arith.constant 0.000000e+00 : f32
    %51 = vector.broadcast %cst_28 : f32 to vector<64x128xf32>
    %52 = arith.maximumf %50, %51 : vector<64x128xf32>
    %53 = arith.truncf %52 : vector<64x128xf32> to vector<64x128xbf16>
    %c3 = arith.constant 3 : index
    %c0_29 = arith.constant 0 : index
    %c0_30 = arith.constant 0 : index
    %54 = vector.load %arg2[%c3, %c0_29, %c0_30] : memref<14x128x128xbf16, #tpu.memory_space<vmem>>, vector<1x128x128xbf16>
    %55 = vector.shape_cast %54 : vector<1x128x128xbf16> to vector<128x128xbf16>
    %cst_31 = arith.constant dense<0.000000e+00> : vector<64x128xf32>
    %56 = tpu.matmul %53, %55, %cst_31 {dimension_numbers = #tpu.dot_dimension_numbers<[1], [0], [0], [1], [0, 0, 1, 1], [], []>} : vector<64x128xbf16>, vector<128x128xbf16>, vector<64x128xf32> -> vector<64x128xf32>
    %57 = arith.truncf %56 : vector<64x128xf32> to vector<64x128xbf16>
    %cst_32 = arith.constant dense<0.000000e+00> : vector<64x128xf32>
    %58 = tpu.matmul %7, %57, %cst_32 {dimension_numbers = #tpu.dot_dimension_numbers<[1], [0], [0], [1], [0, 0, 1, 1], [], []>} : vector<64x64xbf16>, vector<64x128xbf16>, vector<64x128xf32> -> vector<64x128xf32>
    %59 = arith.select %2, %58, %56 : vector<64x128xi1>, vector<64x128xf32>
    %c3_33 = arith.constant 3 : index
    %c0_34 = arith.constant 0 : index
    %c0_35 = arith.constant 0 : index
    %60 = vector.load %arg3[%c3_33, %c0_34, %c0_35] : memref<14x1x128xf32, #tpu.memory_space<vmem>>, vector<1x1x128xf32>
    %61 = vector.shape_cast %60 : vector<1x1x128xf32> to vector<1x128xf32>
    %62 = vector.broadcast %61 : vector<1x128xf32> to vector<64x128xf32>
    %63 = arith.addf %59, %62 : vector<64x128xf32>
    %cst_36 = arith.constant 0.000000e+00 : f32
    %64 = vector.broadcast %cst_36 : f32 to vector<64x128xf32>
    %65 = arith.maximumf %63, %64 : vector<64x128xf32>
    %66 = arith.addf %39, %65 : vector<64x128xf32>
    %cst_37 = arith.constant 5.000000e-01 : f32
    %67 = vector.broadcast %cst_37 : f32 to vector<64x128xf32>
    %68 = arith.mulf %66, %67 : vector<64x128xf32>
    %69 = arith.truncf %68 : vector<64x128xf32> to vector<64x128xbf16>
    %c4 = arith.constant 4 : index
    %c0_38 = arith.constant 0 : index
    %c0_39 = arith.constant 0 : index
    %70 = vector.load %arg2[%c4, %c0_38, %c0_39] : memref<14x128x128xbf16, #tpu.memory_space<vmem>>, vector<1x128x128xbf16>
    %71 = vector.shape_cast %70 : vector<1x128x128xbf16> to vector<128x128xbf16>
    %cst_40 = arith.constant dense<0.000000e+00> : vector<64x128xf32>
    %72 = tpu.matmul %69, %71, %cst_40 {dimension_numbers = #tpu.dot_dimension_numbers<[1], [0], [0], [1], [0, 0, 1, 1], [], []>} : vector<64x128xbf16>, vector<128x128xbf16>, vector<64x128xf32> -> vector<64x128xf32>
    %73 = arith.truncf %72 : vector<64x128xf32> to vector<64x128xbf16>
    %cst_41 = arith.constant dense<0.000000e+00> : vector<64x128xf32>
    %74 = tpu.matmul %7, %73, %cst_41 {dimension_numbers = #tpu.dot_dimension_numbers<[1], [0], [0], [1], [0, 0, 1, 1], [], []>} : vector<64x64xbf16>, vector<64x128xbf16>, vector<64x128xf32> -> vector<64x128xf32>
    %75 = arith.select %2, %74, %72 : vector<64x128xi1>, vector<64x128xf32>
    %c4_42 = arith.constant 4 : index
    %c0_43 = arith.constant 0 : index
    %c0_44 = arith.constant 0 : index
    %76 = vector.load %arg3[%c4_42, %c0_43, %c0_44] : memref<14x1x128xf32, #tpu.memory_space<vmem>>, vector<1x1x128xf32>
    %77 = vector.shape_cast %76 : vector<1x1x128xf32> to vector<1x128xf32>
    %78 = vector.broadcast %77 : vector<1x128xf32> to vector<64x128xf32>
    %79 = arith.addf %75, %78 : vector<64x128xf32>
    %cst_45 = arith.constant 0.000000e+00 : f32
    %80 = vector.broadcast %cst_45 : f32 to vector<64x128xf32>
    %81 = arith.maximumf %79, %80 : vector<64x128xf32>
    %82 = arith.truncf %81 : vector<64x128xf32> to vector<64x128xbf16>
    %c5 = arith.constant 5 : index
    %c0_46 = arith.constant 0 : index
    %c0_47 = arith.constant 0 : index
    %83 = vector.load %arg2[%c5, %c0_46, %c0_47] : memref<14x128x128xbf16, #tpu.memory_space<vmem>>, vector<1x128x128xbf16>
    %84 = vector.shape_cast %83 : vector<1x128x128xbf16> to vector<128x128xbf16>
    %cst_48 = arith.constant dense<0.000000e+00> : vector<64x128xf32>
    %85 = tpu.matmul %82, %84, %cst_48 {dimension_numbers = #tpu.dot_dimension_numbers<[1], [0], [0], [1], [0, 0, 1, 1], [], []>} : vector<64x128xbf16>, vector<128x128xbf16>, vector<64x128xf32> -> vector<64x128xf32>
    %86 = arith.truncf %85 : vector<64x128xf32> to vector<64x128xbf16>
    %cst_49 = arith.constant dense<0.000000e+00> : vector<64x128xf32>
    %87 = tpu.matmul %7, %86, %cst_49 {dimension_numbers = #tpu.dot_dimension_numbers<[1], [0], [0], [1], [0, 0, 1, 1], [], []>} : vector<64x64xbf16>, vector<64x128xbf16>, vector<64x128xf32> -> vector<64x128xf32>
    %88 = arith.select %2, %87, %85 : vector<64x128xi1>, vector<64x128xf32>
    %c5_50 = arith.constant 5 : index
    %c0_51 = arith.constant 0 : index
    %c0_52 = arith.constant 0 : index
    %89 = vector.load %arg3[%c5_50, %c0_51, %c0_52] : memref<14x1x128xf32, #tpu.memory_space<vmem>>, vector<1x1x128xf32>
    %90 = vector.shape_cast %89 : vector<1x1x128xf32> to vector<1x128xf32>
    %91 = vector.broadcast %90 : vector<1x128xf32> to vector<64x128xf32>
    %92 = arith.addf %88, %91 : vector<64x128xf32>
    %cst_53 = arith.constant 0.000000e+00 : f32
    %93 = vector.broadcast %cst_53 : f32 to vector<64x128xf32>
    %94 = arith.maximumf %92, %93 : vector<64x128xf32>
    %95 = arith.addf %68, %94 : vector<64x128xf32>
    %cst_54 = arith.constant 5.000000e-01 : f32
    %96 = vector.broadcast %cst_54 : f32 to vector<64x128xf32>
    %97 = arith.mulf %95, %96 : vector<64x128xf32>
    %98 = arith.truncf %97 : vector<64x128xf32> to vector<64x128xbf16>
    %c6 = arith.constant 6 : index
    %c0_55 = arith.constant 0 : index
    %c0_56 = arith.constant 0 : index
    %99 = vector.load %arg2[%c6, %c0_55, %c0_56] : memref<14x128x128xbf16, #tpu.memory_space<vmem>>, vector<1x128x128xbf16>
    %100 = vector.shape_cast %99 : vector<1x128x128xbf16> to vector<128x128xbf16>
    %cst_57 = arith.constant dense<0.000000e+00> : vector<64x128xf32>
    %101 = tpu.matmul %98, %100, %cst_57 {dimension_numbers = #tpu.dot_dimension_numbers<[1], [0], [0], [1], [0, 0, 1, 1], [], []>} : vector<64x128xbf16>, vector<128x128xbf16>, vector<64x128xf32> -> vector<64x128xf32>
    %102 = arith.truncf %101 : vector<64x128xf32> to vector<64x128xbf16>
    %cst_58 = arith.constant dense<0.000000e+00> : vector<64x128xf32>
    %103 = tpu.matmul %7, %102, %cst_58 {dimension_numbers = #tpu.dot_dimension_numbers<[1], [0], [0], [1], [0, 0, 1, 1], [], []>} : vector<64x64xbf16>, vector<64x128xbf16>, vector<64x128xf32> -> vector<64x128xf32>
    %104 = arith.select %2, %103, %101 : vector<64x128xi1>, vector<64x128xf32>
    %c6_59 = arith.constant 6 : index
    %c0_60 = arith.constant 0 : index
    %c0_61 = arith.constant 0 : index
    %105 = vector.load %arg3[%c6_59, %c0_60, %c0_61] : memref<14x1x128xf32, #tpu.memory_space<vmem>>, vector<1x1x128xf32>
    %106 = vector.shape_cast %105 : vector<1x1x128xf32> to vector<1x128xf32>
    %107 = vector.broadcast %106 : vector<1x128xf32> to vector<64x128xf32>
    %108 = arith.addf %104, %107 : vector<64x128xf32>
    %cst_62 = arith.constant 0.000000e+00 : f32
    %109 = vector.broadcast %cst_62 : f32 to vector<64x128xf32>
    %110 = arith.maximumf %108, %109 : vector<64x128xf32>
    %111 = arith.truncf %110 : vector<64x128xf32> to vector<64x128xbf16>
    %c7 = arith.constant 7 : index
    %c0_63 = arith.constant 0 : index
    %c0_64 = arith.constant 0 : index
    %112 = vector.load %arg2[%c7, %c0_63, %c0_64] : memref<14x128x128xbf16, #tpu.memory_space<vmem>>, vector<1x128x128xbf16>
    %113 = vector.shape_cast %112 : vector<1x128x128xbf16> to vector<128x128xbf16>
    %cst_65 = arith.constant dense<0.000000e+00> : vector<64x128xf32>
    %114 = tpu.matmul %111, %113, %cst_65 {dimension_numbers = #tpu.dot_dimension_numbers<[1], [0], [0], [1], [0, 0, 1, 1], [], []>} : vector<64x128xbf16>, vector<128x128xbf16>, vector<64x128xf32> -> vector<64x128xf32>
    %115 = arith.truncf %114 : vector<64x128xf32> to vector<64x128xbf16>
    %cst_66 = arith.constant dense<0.000000e+00> : vector<64x128xf32>
    %116 = tpu.matmul %7, %115, %cst_66 {dimension_numbers = #tpu.dot_dimension_numbers<[1], [0], [0], [1], [0, 0, 1, 1], [], []>} : vector<64x64xbf16>, vector<64x128xbf16>, vector<64x128xf32> -> vector<64x128xf32>
    %117 = arith.select %2, %116, %114 : vector<64x128xi1>, vector<64x128xf32>
    %c7_67 = arith.constant 7 : index
    %c0_68 = arith.constant 0 : index
    %c0_69 = arith.constant 0 : index
    %118 = vector.load %arg3[%c7_67, %c0_68, %c0_69] : memref<14x1x128xf32, #tpu.memory_space<vmem>>, vector<1x1x128xf32>
    %119 = vector.shape_cast %118 : vector<1x1x128xf32> to vector<1x128xf32>
    %120 = vector.broadcast %119 : vector<1x128xf32> to vector<64x128xf32>
    %121 = arith.addf %117, %120 : vector<64x128xf32>
    %cst_70 = arith.constant 0.000000e+00 : f32
    %122 = vector.broadcast %cst_70 : f32 to vector<64x128xf32>
    %123 = arith.maximumf %121, %122 : vector<64x128xf32>
    %124 = arith.addf %97, %123 : vector<64x128xf32>
    %cst_71 = arith.constant 5.000000e-01 : f32
    %125 = vector.broadcast %cst_71 : f32 to vector<64x128xf32>
    %126 = arith.mulf %124, %125 : vector<64x128xf32>
    %127 = arith.truncf %126 : vector<64x128xf32> to vector<64x128xbf16>
    %c8 = arith.constant 8 : index
    %c0_72 = arith.constant 0 : index
    %c0_73 = arith.constant 0 : index
    %128 = vector.load %arg2[%c8, %c0_72, %c0_73] : memref<14x128x128xbf16, #tpu.memory_space<vmem>>, vector<1x128x128xbf16>
    %129 = vector.shape_cast %128 : vector<1x128x128xbf16> to vector<128x128xbf16>
    %cst_74 = arith.constant dense<0.000000e+00> : vector<64x128xf32>
    %130 = tpu.matmul %127, %129, %cst_74 {dimension_numbers = #tpu.dot_dimension_numbers<[1], [0], [0], [1], [0, 0, 1, 1], [], []>} : vector<64x128xbf16>, vector<128x128xbf16>, vector<64x128xf32> -> vector<64x128xf32>
    %131 = arith.truncf %130 : vector<64x128xf32> to vector<64x128xbf16>
    %cst_75 = arith.constant dense<0.000000e+00> : vector<64x128xf32>
    %132 = tpu.matmul %7, %131, %cst_75 {dimension_numbers = #tpu.dot_dimension_numbers<[1], [0], [0], [1], [0, 0, 1, 1], [], []>} : vector<64x64xbf16>, vector<64x128xbf16>, vector<64x128xf32> -> vector<64x128xf32>
    %133 = arith.select %2, %132, %130 : vector<64x128xi1>, vector<64x128xf32>
    %c8_76 = arith.constant 8 : index
    %c0_77 = arith.constant 0 : index
    %c0_78 = arith.constant 0 : index
    %134 = vector.load %arg3[%c8_76, %c0_77, %c0_78] : memref<14x1x128xf32, #tpu.memory_space<vmem>>, vector<1x1x128xf32>
    %135 = vector.shape_cast %134 : vector<1x1x128xf32> to vector<1x128xf32>
    %136 = vector.broadcast %135 : vector<1x128xf32> to vector<64x128xf32>
    %137 = arith.addf %133, %136 : vector<64x128xf32>
    %cst_79 = arith.constant 0.000000e+00 : f32
    %138 = vector.broadcast %cst_79 : f32 to vector<64x128xf32>
    %139 = arith.maximumf %137, %138 : vector<64x128xf32>
    %140 = arith.truncf %139 : vector<64x128xf32> to vector<64x128xbf16>
    %c9 = arith.constant 9 : index
    %c0_80 = arith.constant 0 : index
    %c0_81 = arith.constant 0 : index
    %141 = vector.load %arg2[%c9, %c0_80, %c0_81] : memref<14x128x128xbf16, #tpu.memory_space<vmem>>, vector<1x128x128xbf16>
    %142 = vector.shape_cast %141 : vector<1x128x128xbf16> to vector<128x128xbf16>
    %cst_82 = arith.constant dense<0.000000e+00> : vector<64x128xf32>
    %143 = tpu.matmul %140, %142, %cst_82 {dimension_numbers = #tpu.dot_dimension_numbers<[1], [0], [0], [1], [0, 0, 1, 1], [], []>} : vector<64x128xbf16>, vector<128x128xbf16>, vector<64x128xf32> -> vector<64x128xf32>
    %144 = arith.truncf %143 : vector<64x128xf32> to vector<64x128xbf16>
    %cst_83 = arith.constant dense<0.000000e+00> : vector<64x128xf32>
    %145 = tpu.matmul %7, %144, %cst_83 {dimension_numbers = #tpu.dot_dimension_numbers<[1], [0], [0], [1], [0, 0, 1, 1], [], []>} : vector<64x64xbf16>, vector<64x128xbf16>, vector<64x128xf32> -> vector<64x128xf32>
    %146 = arith.select %2, %145, %143 : vector<64x128xi1>, vector<64x128xf32>
    %c9_84 = arith.constant 9 : index
    %c0_85 = arith.constant 0 : index
    %c0_86 = arith.constant 0 : index
    %147 = vector.load %arg3[%c9_84, %c0_85, %c0_86] : memref<14x1x128xf32, #tpu.memory_space<vmem>>, vector<1x1x128xf32>
    %148 = vector.shape_cast %147 : vector<1x1x128xf32> to vector<1x128xf32>
    %149 = vector.broadcast %148 : vector<1x128xf32> to vector<64x128xf32>
    %150 = arith.addf %146, %149 : vector<64x128xf32>
    %cst_87 = arith.constant 0.000000e+00 : f32
    %151 = vector.broadcast %cst_87 : f32 to vector<64x128xf32>
    %152 = arith.maximumf %150, %151 : vector<64x128xf32>
    %153 = arith.addf %126, %152 : vector<64x128xf32>
    %cst_88 = arith.constant 5.000000e-01 : f32
    %154 = vector.broadcast %cst_88 : f32 to vector<64x128xf32>
    %155 = arith.mulf %153, %154 : vector<64x128xf32>
    %156 = arith.truncf %155 : vector<64x128xf32> to vector<64x128xbf16>
    %c10 = arith.constant 10 : index
    %c0_89 = arith.constant 0 : index
    %c0_90 = arith.constant 0 : index
    %157 = vector.load %arg2[%c10, %c0_89, %c0_90] : memref<14x128x128xbf16, #tpu.memory_space<vmem>>, vector<1x128x128xbf16>
    %158 = vector.shape_cast %157 : vector<1x128x128xbf16> to vector<128x128xbf16>
    %cst_91 = arith.constant dense<0.000000e+00> : vector<64x128xf32>
    %159 = tpu.matmul %156, %158, %cst_91 {dimension_numbers = #tpu.dot_dimension_numbers<[1], [0], [0], [1], [0, 0, 1, 1], [], []>} : vector<64x128xbf16>, vector<128x128xbf16>, vector<64x128xf32> -> vector<64x128xf32>
    %160 = arith.truncf %159 : vector<64x128xf32> to vector<64x128xbf16>
    %cst_92 = arith.constant dense<0.000000e+00> : vector<64x128xf32>
    %161 = tpu.matmul %7, %160, %cst_92 {dimension_numbers = #tpu.dot_dimension_numbers<[1], [0], [0], [1], [0, 0, 1, 1], [], []>} : vector<64x64xbf16>, vector<64x128xbf16>, vector<64x128xf32> -> vector<64x128xf32>
    %162 = arith.select %2, %161, %159 : vector<64x128xi1>, vector<64x128xf32>
    %c10_93 = arith.constant 10 : index
    %c0_94 = arith.constant 0 : index
    %c0_95 = arith.constant 0 : index
    %163 = vector.load %arg3[%c10_93, %c0_94, %c0_95] : memref<14x1x128xf32, #tpu.memory_space<vmem>>, vector<1x1x128xf32>
    %164 = vector.shape_cast %163 : vector<1x1x128xf32> to vector<1x128xf32>
    %165 = vector.broadcast %164 : vector<1x128xf32> to vector<64x128xf32>
    %166 = arith.addf %162, %165 : vector<64x128xf32>
    %cst_96 = arith.constant 0.000000e+00 : f32
    %167 = vector.broadcast %cst_96 : f32 to vector<64x128xf32>
    %168 = arith.maximumf %166, %167 : vector<64x128xf32>
    %169 = arith.truncf %168 : vector<64x128xf32> to vector<64x128xbf16>
    %c11 = arith.constant 11 : index
    %c0_97 = arith.constant 0 : index
    %c0_98 = arith.constant 0 : index
    %170 = vector.load %arg2[%c11, %c0_97, %c0_98] : memref<14x128x128xbf16, #tpu.memory_space<vmem>>, vector<1x128x128xbf16>
    %171 = vector.shape_cast %170 : vector<1x128x128xbf16> to vector<128x128xbf16>
    %cst_99 = arith.constant dense<0.000000e+00> : vector<64x128xf32>
    %172 = tpu.matmul %169, %171, %cst_99 {dimension_numbers = #tpu.dot_dimension_numbers<[1], [0], [0], [1], [0, 0, 1, 1], [], []>} : vector<64x128xbf16>, vector<128x128xbf16>, vector<64x128xf32> -> vector<64x128xf32>
    %173 = arith.truncf %172 : vector<64x128xf32> to vector<64x128xbf16>
    %cst_100 = arith.constant dense<0.000000e+00> : vector<64x128xf32>
    %174 = tpu.matmul %7, %173, %cst_100 {dimension_numbers = #tpu.dot_dimension_numbers<[1], [0], [0], [1], [0, 0, 1, 1], [], []>} : vector<64x64xbf16>, vector<64x128xbf16>, vector<64x128xf32> -> vector<64x128xf32>
    %175 = arith.select %2, %174, %172 : vector<64x128xi1>, vector<64x128xf32>
    %c11_101 = arith.constant 11 : index
    %c0_102 = arith.constant 0 : index
    %c0_103 = arith.constant 0 : index
    %176 = vector.load %arg3[%c11_101, %c0_102, %c0_103] : memref<14x1x128xf32, #tpu.memory_space<vmem>>, vector<1x1x128xf32>
    %177 = vector.shape_cast %176 : vector<1x1x128xf32> to vector<1x128xf32>
    %178 = vector.broadcast %177 : vector<1x128xf32> to vector<64x128xf32>
    %179 = arith.addf %175, %178 : vector<64x128xf32>
    %cst_104 = arith.constant 0.000000e+00 : f32
    %180 = vector.broadcast %cst_104 : f32 to vector<64x128xf32>
    %181 = arith.maximumf %179, %180 : vector<64x128xf32>
    %182 = arith.addf %155, %181 : vector<64x128xf32>
    %cst_105 = arith.constant 5.000000e-01 : f32
    %183 = vector.broadcast %cst_105 : f32 to vector<64x128xf32>
    %184 = arith.mulf %182, %183 : vector<64x128xf32>
    %185 = arith.truncf %184 : vector<64x128xf32> to vector<64x128xbf16>
    %c12 = arith.constant 12 : index
    %c0_106 = arith.constant 0 : index
    %c0_107 = arith.constant 0 : index
    %186 = vector.load %arg2[%c12, %c0_106, %c0_107] : memref<14x128x128xbf16, #tpu.memory_space<vmem>>, vector<1x128x128xbf16>
    %187 = vector.shape_cast %186 : vector<1x128x128xbf16> to vector<128x128xbf16>
    %cst_108 = arith.constant dense<0.000000e+00> : vector<64x128xf32>
    %188 = tpu.matmul %185, %187, %cst_108 {dimension_numbers = #tpu.dot_dimension_numbers<[1], [0], [0], [1], [0, 0, 1, 1], [], []>} : vector<64x128xbf16>, vector<128x128xbf16>, vector<64x128xf32> -> vector<64x128xf32>
    %189 = arith.truncf %188 : vector<64x128xf32> to vector<64x128xbf16>
    %cst_109 = arith.constant dense<0.000000e+00> : vector<64x128xf32>
    %190 = tpu.matmul %7, %189, %cst_109 {dimension_numbers = #tpu.dot_dimension_numbers<[1], [0], [0], [1], [0, 0, 1, 1], [], []>} : vector<64x64xbf16>, vector<64x128xbf16>, vector<64x128xf32> -> vector<64x128xf32>
    %191 = arith.select %2, %190, %188 : vector<64x128xi1>, vector<64x128xf32>
    %c12_110 = arith.constant 12 : index
    %c0_111 = arith.constant 0 : index
    %c0_112 = arith.constant 0 : index
    %192 = vector.load %arg3[%c12_110, %c0_111, %c0_112] : memref<14x1x128xf32, #tpu.memory_space<vmem>>, vector<1x1x128xf32>
    %193 = vector.shape_cast %192 : vector<1x1x128xf32> to vector<1x128xf32>
    %194 = vector.broadcast %193 : vector<1x128xf32> to vector<64x128xf32>
    %195 = arith.addf %191, %194 : vector<64x128xf32>
    %cst_113 = arith.constant 0.000000e+00 : f32
    %196 = vector.broadcast %cst_113 : f32 to vector<64x128xf32>
    %197 = arith.maximumf %195, %196 : vector<64x128xf32>
    %198 = arith.addf %184, %197 : vector<64x128xf32>
    %cst_114 = arith.constant 5.000000e-01 : f32
    %199 = vector.broadcast %cst_114 : f32 to vector<64x128xf32>
    %200 = arith.mulf %198, %199 : vector<64x128xf32>
    %c0_115 = arith.constant 0 : index
    %c0_116 = arith.constant 0 : index
    %201 = vector.load %arg5[%c0_115, %c0_116] : memref<64x128xf32, #tpu.memory_space<vmem>>, vector<64x128xf32>
    tpu.vector_store %arg5[%c0_115, %c0_116], %200 {strides = array<i32>} : memref<64x128xf32, #tpu.memory_space<vmem>>, vector<64x128xf32>,
    %202 = arith.truncf %200 : vector<64x128xf32> to vector<64x128xbf16>
    %c13 = arith.constant 13 : index
    %c0_117 = arith.constant 0 : index
    %c0_118 = arith.constant 0 : index
    %203 = vector.load %arg2[%c13, %c0_117, %c0_118] : memref<14x128x128xbf16, #tpu.memory_space<vmem>>, vector<1x128x128xbf16>
    %204 = vector.shape_cast %203 : vector<1x128x128xbf16> to vector<128x128xbf16>
    %cst_119 = arith.constant dense<0.000000e+00> : vector<64x128xf32>
    %205 = tpu.matmul %202, %204, %cst_119 {dimension_numbers = #tpu.dot_dimension_numbers<[1], [0], [0], [1], [0, 0, 1, 1], [], []>} : vector<64x128xbf16>, vector<128x128xbf16>, vector<64x128xf32> -> vector<64x128xf32>
    %206 = arith.truncf %205 : vector<64x128xf32> to vector<64x128xbf16>
    %cst_120 = arith.constant dense<0.000000e+00> : vector<64x128xf32>
    %207 = tpu.matmul %7, %206, %cst_120 {dimension_numbers = #tpu.dot_dimension_numbers<[1], [0], [0], [1], [0, 0, 1, 1], [], []>} : vector<64x64xbf16>, vector<64x128xbf16>, vector<64x128xf32> -> vector<64x128xf32>
    %208 = arith.select %4, %207, %205 : vector<64x128xi1>, vector<64x128xf32>
    %c13_121 = arith.constant 13 : index
    %c0_122 = arith.constant 0 : index
    %c0_123 = arith.constant 0 : index
    %209 = vector.load %arg3[%c13_121, %c0_122, %c0_123] : memref<14x1x128xf32, #tpu.memory_space<vmem>>, vector<1x1x128xf32>
    %210 = vector.shape_cast %209 : vector<1x1x128xf32> to vector<1x128xf32>
    %211 = vector.broadcast %210 : vector<1x128xf32> to vector<64x128xf32>
    %212 = arith.addf %208, %211 : vector<64x128xf32>
    %c0_124 = arith.constant 0 : index
    %c0_125 = arith.constant 0 : index
    %213 = vector.load %arg4[%c0_124, %c0_125] : memref<64x128xf32, #tpu.memory_space<vmem>>, vector<64x128xf32>
    tpu.vector_store %arg4[%c0_124, %c0_125], %212 {strides = array<i32>} : memref<64x128xf32, #tpu.memory_space<vmem>>, vector<64x128xf32>,
    return
  }
}

</mosaic_0001>

<llo_original>
// kernel: g_res_net_forward.1
$region0: #{g_res_net_forward.1}
  #allocation0 [shape = 'u32[]', space=smem, size = 0x4, offset = 0x4, fixed_abs, tag = 'smem constant byte address 0x4 - core index']
  #allocation1 [shape = 'u32[144,128]{1,0:T(1,128)}', space=vmem, size = 0x12000, scoped, tag = 'internal scratch']
  %s0 = inlined_call_operand.vmem [shape: f32[64,128], index: 0, kind: input, shape index: {}]
  %s1 = inlined_call_operand.vmem [shape: bf16[64,64], index: 1, kind: input, shape index: {}]
  %s2 = inlined_call_operand.vmem [shape: bf16[14,128,128], index: 2, kind: input, shape index: {}]
  %s3 = inlined_call_operand.vmem [shape: f32[14,1,128], index: 3, kind: input, shape index: {}]
  %s4 = inlined_call_operand.vmem [shape: f32[64,128], index: 4, kind: output, shape index: {0}]
  %s5 = inlined_call_operand.vmem [shape: f32[64,128], index: 5, kind: output, shape index: {1}]
  %6 = xla_tuple %s4, %s5
  %s7 = sld [smem:[#allocation0]]
  $region34: #{g_res_net_forward.1} parent=0
    _
  %s9 = ssub.s32 1, %s7
  %s10 = scalar_select 0, %s9, %s7
  // Predicated region
  $region2: #{g_res_net_forward.1} parent=0 // pred_check
    _
  $region3: #{g_res_net_forward.1} parent=0 // pred_check_branch
    %12 = sbr.rel (0) target = $region5
  $region4: #{g_res_net_forward.1} parent=0 // pred_region
    _
  $region5: #{g_res_net_forward.1} parent=0 // pred_fallthru
    _
  // Predicated region
  $region6: #{g_res_net_forward.1} parent=0 // pred_check
    _
  $region7: #{g_res_net_forward.1} parent=0 // pred_check_branch
    %14 = sbr.rel (0) target = $region9
  $region8: #{g_res_net_forward.1} parent=0 // pred_region
    _
  $region9: #{g_res_net_forward.1} parent=0 // pred_fallthru
    _
  // Predicated region
  $region10: #{g_res_net_forward.1} parent=0 // pred_check
    _
  $region11: #{g_res_net_forward.1} parent=0 // pred_check_branch
    %16 = sbr.rel (0) target = $region13
  $region12: #{g_res_net_forward.1} parent=0 // pred_region
    _
  $region13: #{g_res_net_forward.1} parent=0 // pred_fallthru
    _
  // Predicated region
  $region14: #{g_res_net_forward.1} parent=0 // pred_check
    _
  $region15: #{g_res_net_forward.1} parent=0 // pred_check_branch
    %18 = sbr.rel (0) target = $region17
  $region16: #{g_res_net_forward.1} parent=0 // pred_region
    _
  $region17: #{g_res_net_forward.1} parent=0 // pred_fallthru
    _
  %v20 = vlaneseq
  %v21 = vand.u32 %v20, 127
  %vm22 = vcmp.lt.s32.totalorder %v21, 10
  %vm23 = vcmp.lt.s32.totalorder %v21, 2
  %vm24 = vcmp.lt.s32.totalorder %v21, 32
  %v25 = vld [vmem:[%s1] sm:$0xf]
  %v26 = vld [vmem:[%s1 + $0x4] sm:$0xf]
  %v27 = vld [vmem:[%s1 + $0x8] sm:$0xf]
  %v28 = vld [vmem:[%s1 + $0xc] sm:$0xf]
  %v29 = vld [vmem:[%s1 + $0x10] sm:$0xf]
  %v30 = vld [vmem:[%s1 + $0x14] sm:$0xf]
  %v31 = vld [vmem:[%s1 + $0x18] sm:$0xf]
  %v32 = vld [vmem:[%s1 + $0x1c] sm:$0xf]
  %v33 = vld [vmem:[%s0] sm:$0xff]
  %v34 = vld [vmem:[%s0 + $0x8] sm:$0xff]
  %v35 = vld [vmem:[%s0 + $0x10] sm:$0xff]
  %v36 = vld [vmem:[%s0 + $0x18] sm:$0xff]
  %v37 = vld [vmem:[%s0 + $0x20] sm:$0xff]
  %v38 = vld [vmem:[%s0 + $0x28] sm:$0xff]
  %v39 = vld [vmem:[%s0 + $0x30] sm:$0xff]
  %v40 = vld [vmem:[%s0 + $0x38] sm:$0xff]
  %v41 = vpack.c.bf16 %v34, %v33
  %v42 = vpack.c.bf16 %v36, %v35
  %v43 = vpack.c.bf16 %v38, %v37
  %v44 = vpack.c.bf16 %v40, %v39
  %v45 = vld [vmem:[%s2] sm:$0xf]
  %v46 = vld [vmem:[%s2 + $0x4] sm:$0xf]
  %v47 = vld [vmem:[%s2 + $0x8] sm:$0xf]
  %v48 = vld [vmem:[%s2 + $0xc] sm:$0xf]
  %v49 = vld [vmem:[%s2 + $0x10] sm:$0xf]
  %v50 = vld [vmem:[%s2 + $0x14] sm:$0xf]
  %v51 = vld [vmem:[%s2 + $0x18] sm:$0xf]
  %v52 = vld [vmem:[%s2 + $0x1c] sm:$0xf]
  %v53 = vld [vmem:[%s2 + $0x20] sm:$0xf]
  %v54 = vld [vmem:[%s2 + $0x24] sm:$0xf]
  %v55 = vld [vmem:[%s2 + $0x28] sm:$0xf]
  %v56 = vld [vmem:[%s2 + $0x2c] sm:$0xf]
  %v57 = vld [vmem:[%s2 + $0x30] sm:$0xf]
  %v58 = vld [vmem:[%s2 + $0x34] sm:$0xf]
  %v59 = vld [vmem:[%s2 + $0x38] sm:$0xf]
  %v60 = vld [vmem:[%s2 + $0x3c] sm:$0xf]
  %v77 = vunpack.c.l.b16 %v45
  %v78 = vunpack.c.l.b16 %v46
  %v79 = vunpack.c.l.b16 %v47
  %v80 = vunpack.c.l.b16 %v48
  %v81 = vunpack.c.l.b16 %v49
  %v82 = vunpack.c.l.b16 %v50
  %v83 = vunpack.c.l.b16 %v51
  %v84 = vunpack.c.l.b16 %v52
  %v85 = vunpack.c.l.b16 %v53
  %v86 = vunpack.c.l.b16 %v54
  %v87 = vunpack.c.l.b16 %v55
  %v88 = vunpack.c.l.b16 %v56
  %v89 = vunpack.c.l.b16 %v57
  %v90 = vunpack.c.l.b16 %v58
  %v91 = vunpack.c.l.b16 %v59
  %v92 = vunpack.c.l.b16 %v60
  %v93 = vpack.c.b16 %v78, %v77
  %v94 = vpack.c.b16 %v80, %v79
  %v95 = vpack.c.b16 %v82, %v81
  %v96 = vpack.c.b16 %v84, %v83
  %v97 = vpack.c.b16 %v86, %v85
  %v98 = vpack.c.b16 %v88, %v87
  %v99 = vpack.c.b16 %v90, %v89
  %v100 = vpack.c.b16 %v92, %v91
  %109 = vmatprep.subr.bf16.mxu0 0
  %110 = vmatpush1.bf16.msra.mxu0 %v93
  %111 = vmatprep.subr.bf16.mxu0 0
  %112 = vmatpush1.bf16.msra.mxu0 %v94
  %113 = vmatprep.subr.bf16.mxu0 0
  %114 = vmatpush1.bf16.msra.mxu0 %v95
  %115 = vmatprep.subr.bf16.mxu0 0
  %116 = vmatpush1.bf16.msra.mxu0 %v96
  %117 = vmatprep.subr.bf16.mxu0 0
  %118 = vmatpush1.bf16.msra.mxu0 %v97
  %119 = vmatprep.subr.bf16.mxu0 0
  %120 = vmatpush1.bf16.msra.mxu0 %v98
  %121 = vmatprep.subr.bf16.mxu0 0
  %122 = vmatpush1.bf16.msra.mxu0 %v99
  %123 = vmatprep.subr.bf16.mxu0 0
  %124 = vmatpush1.bf16.msra.mxu0 %v100
  %125 = vmatprep.subr.bf16.mxu0 0
  %126 = vmatpush1.bf16.msra.mxu0 0
  %127 = vmatprep.subr.bf16.mxu0 0
  %128 = vmatpush1.bf16.msra.mxu0 0
  %129 = vmatprep.subr.bf16.mxu0 0
  %130 = vmatpush1.bf16.msra.mxu0 0
  %131 = vmatprep.subr.bf16.mxu0 0
  %132 = vmatpush1.bf16.msra.mxu0 0
  %133 = vmatprep.subr.bf16.mxu0 0
  %134 = vmatpush1.bf16.msra.mxu0 0
  %135 = vmatprep.subr.bf16.mxu0 0
  %136 = vmatpush1.bf16.msra.mxu0 0
  %137 = vmatprep.subr.bf16.mxu0 0
  %138 = vmatpush1.bf16.msra.mxu0 0
  %139 = vmatprep.subr.bf16.mxu0 0
  %140 = vmatpush1.bf16.msra.mxu0 0
  %141 = vmatprep.mubr.bf16.mxu0 0
  %142 = vmatmul.mubr.bf16.gmra.mrb[0].mxu0 %v41
  %v143 = vpop.f32.mrb[0].mxu0
  %v144 = vadd.f32 0.0, %v143
  %v145 = vpop.f32.mrb[0].mxu0
  %v146 = vpop.f32.mrb[0].mxu0
  %v147 = vadd.f32 0.0, %v146
  %v148 = vpop.f32.mrb[0].mxu0
  %149 = vmatprep.mubr.bf16.mxu0 0
  %150 = vmatmul.mubr.bf16.gmra.mrb[0].mxu0 %v42
  %v151 = vpop.f32.mrb[0].mxu0
  %v152 = vadd.f32 0.0, %v151
  %v153 = vpop.f32.mrb[0].mxu0
  %v154 = vpop.f32.mrb[0].mxu0
  %v155 = vadd.f32 0.0, %v154
  %v156 = vpop.f32.mrb[0].mxu0
  %157 = vmatprep.mubr.bf16.mxu0 0
  %158 = vmatmul.mubr.bf16.gmra.mrb[0].mxu0 %v43
  %v159 = vpop.f32.mrb[0].mxu0
  %v160 = vadd.f32 0.0, %v159
  %v161 = vpop.f32.mrb[0].mxu0
  %v162 = vpop.f32.mrb[0].mxu0
  %v163 = vadd.f32 0.0, %v162
  %v164 = vpop.f32.mrb[0].mxu0
  %165 = vmatprep.mubr.bf16.mxu0 0
  %166 = vmatmul.mubr.bf16.gmra.mrb[0].mxu0 %v44
  %v167 = vpop.f32.mrb[0].mxu0
  %v168 = vadd.f32 0.0, %v167
  %v169 = vpop.f32.mrb[0].mxu0
  %v170 = vpop.f32.mrb[0].mxu0
  %v171 = vadd.f32 0.0, %v170
  %v172 = vpop.f32.mrb[0].mxu0
  %173 = vdwg.mxu0
  %v174 = vpack.c.bf16 %v147, %v144
  %v175 = vpack.c.bf16 %v155, %v152
  %v176 = vpack.c.bf16 %v163, %v160
  %v177 = vpack.c.bf16 %v171, %v168
  %v186 = vunpack.c.l.b16 %v25
  %v187 = vunpack.c.l.b16 %v26
  %v188 = vunpack.c.l.b16 %v27
  %v189 = vunpack.c.l.b16 %v28
  %v190 = vunpack.c.l.b16 %v29
  %v191 = vunpack.c.l.b16 %v30
  %v192 = vunpack.c.l.b16 %v31
  %v193 = vunpack.c.l.b16 %v32
  %v194 = vpack.c.b16 %v187, %v186
  %v195 = vpack.c.b16 %v189, %v188
  %v196 = vpack.c.b16 %v191, %v190
  %v197 = vpack.c.b16 %v193, %v192
  %vm198 = vcmask 523264
  %v200 = vsel %vm198, %v194, 0
  %v203 = vsel %vm198, %v195, 0
  %v206 = vsel %vm198, %v196, 0
  %v209 = vsel %vm198, %v197, 0
  %211 = vmatprep.subr.bf16.mxu0 0
  %212 = vmatpush1.bf16.msra.mxu0 %v174
  %213 = vmatprep.subr.bf16.mxu0 0
  %214 = vmatpush1.bf16.msra.mxu0 %v175
  %215 = vmatprep.subr.bf16.mxu0 0
  %216 = vmatpush1.bf16.msra.mxu0 %v176
  %217 = vmatprep.subr.bf16.mxu0 0
  %218 = vmatpush1.bf16.msra.mxu0 %v177
  %219 = vmatprep.subr.bf16.mxu0 0
  %220 = vmatpush1.bf16.msra.mxu0 0
  %221 = vmatprep.subr.bf16.mxu0 0
  %222 = vmatpush1.bf16.msra.mxu0 0
  %223 = vmatprep.subr.bf16.mxu0 0
  %224 = vmatpush1.bf16.msra.mxu0 0
  %225 = vmatprep.subr.bf16.mxu0 0
  %226 = vmatpush1.bf16.msra.mxu0 0
  %227 = vmatprep.subr.bf16.mxu0 0
  %228 = vmatpush1.bf16.msra.mxu0 0
  %229 = vmatprep.subr.bf16.mxu0 0
  %230 = vmatpush1.bf16.msra.mxu0 0
  %231 = vmatprep.subr.bf16.mxu0 0
  %232 = vmatpush1.bf16.msra.mxu0 0
  %233 = vmatprep.subr.bf16.mxu0 0
  %234 = vmatpush1.bf16.msra.mxu0 0
  %235 = vmatprep.subr.bf16.mxu0 0
  %236 = vmatpush1.bf16.msra.mxu0 0
  %237 = vmatprep.subr.bf16.mxu0 0
  %238 = vmatpush1.bf16.msra.mxu0 0
  %239 = vmatprep.subr.bf16.mxu0 0
  %240 = vmatpush1.bf16.msra.mxu0 0
  %241 = vmatprep.subr.bf16.mxu0 0
  %242 = vmatpush1.bf16.msra.mxu0 0
  %243 = vmatprep.mubr.bf16.mxu0 0
  %244 = vmatmul.mubr.bf16.gmra.mrb[0].mxu0 %v200
  %v245 = vpop.f32.mrb[0].mxu0
  %v246 = vadd.f32 0.0, %v245
  %v247 = vpop.f32.mrb[0].mxu0
  %v248 = vpop.f32.mrb[0].mxu0
  %v249 = vadd.f32 0.0, %v248
  %v250 = vpop.f32.mrb[0].mxu0
  %251 = vmatprep.mubr.bf16.mxu0 0
  %252 = vmatmul.mubr.bf16.gmra.mrb[0].mxu0 %v203
  %v253 = vpop.f32.mrb[0].mxu0
  %v254 = vadd.f32 0.0, %v253
  %v255 = vpop.f32.mrb[0].mxu0
  %v256 = vpop.f32.mrb[0].mxu0
  %v257 = vadd.f32 0.0, %v256
  %v258 = vpop.f32.mrb[0].mxu0
  %259 = vmatprep.mubr.bf16.mxu0 0
  %260 = vmatmul.mubr.bf16.gmra.mrb[0].mxu0 %v206
  %v261 = vpop.f32.mrb[0].mxu0
  %v262 = vadd.f32 0.0, %v261
  %v263 = vpop.f32.mrb[0].mxu0
  %v264 = vpop.f32.mrb[0].mxu0
  %v265 = vadd.f32 0.0, %v264
  %v266 = vpop.f32.mrb[0].mxu0
  %267 = vmatprep.mubr.bf16.mxu0 0
  %268 = vmatmul.mubr.bf16.gmra.mrb[0].mxu0 %v209
  %v269 = vpop.f32.mrb[0].mxu0
  %v270 = vadd.f32 0.0, %v269
  %v271 = vpop.f32.mrb[0].mxu0
  %v272 = vpop.f32.mrb[0].mxu0
  %v273 = vadd.f32 0.0, %v272
  %v274 = vpop.f32.mrb[0].mxu0
  %275 = vdwg.mxu0
  %v276 = vsel %vm22, %v246, %v144
  %v277 = vsel %vm22, %v249, %v147
  %v278 = vsel %vm22, %v254, %v152
  %v279 = vsel %vm22, %v257, %v155
  %v280 = vsel %vm22, %v262, %v160
  %v281 = vsel %vm22, %v265, %v163
  %v282 = vsel %vm22, %v270, %v168
  %v283 = vsel %vm22, %v273, %v171
  %v284 = vld [vmem:[%s3] sm:$0x1]
  %v286 = vlaneseq
  %v287 = vshrl.u32 %v286, 7
  %v288 = vsub.s32 0, %v287
  %v289 = vrot.slane %v284, %v288
  %v291 = vadd.f32 %v276, %v289
  %v292 = vadd.f32 %v277, %v289
  %v293 = vadd.f32 %v278, %v289
  %v294 = vadd.f32 %v279, %v289
  %v295 = vadd.f32 %v280, %v289
  %v296 = vadd.f32 %v281, %v289
  %v297 = vadd.f32 %v282, %v289
  %v298 = vadd.f32 %v283, %v289
  %v299 = vmax.f32 %v291, 0.0
  %v300 = vmax.f32 %v292, 0.0
  %v301 = vmax.f32 %v293, 0.0
  %v302 = vmax.f32 %v294, 0.0
  %v303 = vmax.f32 %v295, 0.0
  %v304 = vmax.f32 %v296, 0.0
  %v305 = vmax.f32 %v297, 0.0
  %v306 = vmax.f32 %v298, 0.0
  %v307 = vpack.c.bf16 %v300, %v299
  %v308 = vpack.c.bf16 %v302, %v301
  %v309 = vpack.c.bf16 %v304, %v303
  %v310 = vpack.c.bf16 %v306, %v305
  %s311 = scalar_lea.vmem %s2, 64
  %v312 = vld [vmem:[%s311] sm:$0xf]
  %v313 = vld [vmem:[%s311 + $0x4] sm:$0xf]
  %v314 = vld [vmem:[%s311 + $0x8] sm:$0xf]
  %v315 = vld [vmem:[%s311 + $0xc] sm:$0xf]
  %v316 = vld [vmem:[%s311 + $0x10] sm:$0xf]
  %v317 = vld [vmem:[%s311 + $0x14] sm:$0xf]
  %v318 = vld [vmem:[%s311 + $0x18] sm:$0xf]
  %v319 = vld [vmem:[%s311 + $0x1c] sm:$0xf]
  %v320 = vld [vmem:[%s311 + $0x20] sm:$0xf]
  %v321 = vld [vmem:[%s311 + $0x24] sm:$0xf]
  %v322 = vld [vmem:[%s311 + $0x28] sm:$0xf]
  %v323 = vld [vmem:[%s311 + $0x2c] sm:$0xf]
  %v324 = vld [vmem:[%s311 + $0x30] sm:$0xf]
  %v325 = vld [vmem:[%s311 + $0x34] sm:$0xf]
  %v326 = vld [vmem:[%s311 + $0x38] sm:$0xf]
  %v327 = vld [vmem:[%s311 + $0x3c] sm:$0xf]
  %v344 = vunpack.c.l.b16 %v312
  %v345 = vunpack.c.l.b16 %v313
  %v346 = vunpack.c.l.b16 %v314
  %v347 = vunpack.c.l.b16 %v315
  %v348 = vunpack.c.l.b16 %v316
  %v349 = vunpack.c.l.b16 %v317
  %v350 = vunpack.c.l.b16 %v318
  %v351 = vunpack.c.l.b16 %v319
  %v352 = vunpack.c.l.b16 %v320
  %v353 = vunpack.c.l.b16 %v321
  %v354 = vunpack.c.l.b16 %v322
  %v355 = vunpack.c.l.b16 %v323
  %v356 = vunpack.c.l.b16 %v324
  %v357 = vunpack.c.l.b16 %v325
  %v358 = vunpack.c.l.b16 %v326
  %v359 = vunpack.c.l.b16 %v327
  %v360 = vpack.c.b16 %v345, %v344
  %v361 = vpack.c.b16 %v347, %v346
  %v362 = vpack.c.b16 %v349, %v348
  %v363 = vpack.c.b16 %v351, %v350
  %v364 = vpack.c.b16 %v353, %v352
  %v365 = vpack.c.b16 %v355, %v354
  %v366 = vpack.c.b16 %v357, %v356
  %v367 = vpack.c.b16 %v359, %v358
  %376 = vmatprep.subr.bf16.mxu0 0
  %377 = vmatpush1.bf16.msra.mxu0 %v360
  %378 = vmatprep.subr.bf16.mxu0 0
  %379 = vmatpush1.bf16.msra.mxu0 %v361
  %380 = vmatprep.subr.bf16.mxu0 0
  %381 = vmatpush1.bf16.msra.mxu0 %v362
  %382 = vmatprep.subr.bf16.mxu0 0
  %383 = vmatpush1.bf16.msra.mxu0 %v363
  %384 = vmatprep.subr.bf16.mxu0 0
  %385 = vmatpush1.bf16.msra.mxu0 %v364
  %386 = vmatprep.subr.bf16.mxu0 0
  %387 = vmatpush1.bf16.msra.mxu0 %v365
  %388 = vmatprep.subr.bf16.mxu0 0
  %389 = vmatpush1.bf16.msra.mxu0 %v366
  %390 = vmatprep.subr.bf16.mxu0 0
  %391 = vmatpush1.bf16.msra.mxu0 %v367
  %392 = vmatprep.subr.bf16.mxu0 0
  %393 = vmatpush1.bf16.msra.mxu0 0
  %394 = vmatprep.subr.bf16.mxu0 0
  %395 = vmatpush1.bf16.msra.mxu0 0
  %396 = vmatprep.subr.bf16.mxu0 0
  %397 = vmatpush1.bf16.msra.mxu0 0
  %398 = vmatprep.subr.bf16.mxu0 0
  %399 = vmatpush1.bf16.msra.mxu0 0
  %400 = vmatprep.subr.bf16.mxu0 0
  %401 = vmatpush1.bf16.msra.mxu0 0
  %402 = vmatprep.subr.bf16.mxu0 0
  %403 = vmatpush1.bf16.msra.mxu0 0
  %404 = vmatprep.subr.bf16.mxu0 0
  %405 = vmatpush1.bf16.msra.mxu0 0
  %406 = vmatprep.subr.bf16.mxu0 0
  %407 = vmatpush1.bf16.msra.mxu0 0
  %408 = vmatprep.mubr.bf16.mxu0 0
  %409 = vmatmul.mubr.bf16.gmra.mrb[0].mxu0 %v307
  %v410 = vpop.f32.mrb[0].mxu0
  %v411 = vadd.f32 0.0, %v410
  %v412 = vpop.f32.mrb[0].mxu0
  %v413 = vpop.f32.mrb[0].mxu0
  %v414 = vadd.f32 0.0, %v413
  %v415 = vpop.f32.mrb[0].mxu0
  %416 = vmatprep.mubr.bf16.mxu0 0
  %417 = vmatmul.mubr.bf16.gmra.mrb[0].mxu0 %v308
  %v418 = vpop.f32.mrb[0].mxu0
  %v419 = vadd.f32 0.0, %v418
  %v420 = vpop.f32.mrb[0].mxu0
  %v421 = vpop.f32.mrb[0].mxu0
  %v422 = vadd.f32 0.0, %v421
  %v423 = vpop.f32.mrb[0].mxu0
  %424 = vmatprep.mubr.bf16.mxu0 0
  %425 = vmatmul.mubr.bf16.gmra.mrb[0].mxu0 %v309
  %v426 = vpop.f32.mrb[0].mxu0
  %v427 = vadd.f32 0.0, %v426
  %v428 = vpop.f32.mrb[0].mxu0
  %v429 = vpop.f32.mrb[0].mxu0
  %v430 = vadd.f32 0.0, %v429
  %v431 = vpop.f32.mrb[0].mxu0
  %432 = vmatprep.mubr.bf16.mxu0 0
  %433 = vmatmul.mubr.bf16.gmra.mrb[0].mxu0 %v310
  %v434 = vpop.f32.mrb[0].mxu0
  %v435 = vadd.f32 0.0, %v434
  %v436 = vpop.f32.mrb[0].mxu0
  %v437 = vpop.f32.mrb[0].mxu0
  %v438 = vadd.f32 0.0, %v437
  %v439 = vpop.f32.mrb[0].mxu0
  %440 = vdwg.mxu0
  %v441 = vpack.c.bf16 %v414, %v411
  %v442 = vpack.c.bf16 %v422, %v419
  %v443 = vpack.c.bf16 %v430, %v427
  %v444 = vpack.c.bf16 %v438, %v435
  %445 = vmatprep.subr.bf16.mxu0 0
  %446 = vmatpush1.bf16.msra.mxu0 %v441
  %447 = vmatprep.subr.bf16.mxu0 0
  %448 = vmatpush1.bf16.msra.mxu0 %v442
  %449 = vmatprep.subr.bf16.mxu0 0
  %450 = vmatpush1.bf16.msra.mxu0 %v443
  %451 = vmatprep.subr.bf16.mxu0 0
  %452 = vmatpush1.bf16.msra.mxu0 %v444
  %453 = vmatprep.subr.bf16.mxu0 0
  %454 = vmatpush1.bf16.msra.mxu0 0
  %455 = vmatprep.subr.bf16.mxu0 0
  %456 = vmatpush1.bf16.msra.mxu0 0
  %457 = vmatprep.subr.bf16.mxu0 0
  %458 = vmatpush1.bf16.msra.mxu0 0
  %459 = vmatprep.subr.bf16.mxu0 0
  %460 = vmatpush1.bf16.msra.mxu0 0
  %461 = vmatprep.subr.bf16.mxu0 0
  %462 = vmatpush1.bf16.msra.mxu0 0
  %463 = vmatprep.subr.bf16.mxu0 0
  %464 = vmatpush1.bf16.msra.mxu0 0
  %465 = vmatprep.subr.bf16.mxu0 0
  %466 = vmatpush1.bf16.msra.mxu0 0
  %467 = vmatprep.subr.bf16.mxu0 0
  %468 = vmatpush1.bf16.msra.mxu0 0
  %469 = vmatprep.subr.bf16.mxu0 0
  %470 = vmatpush1.bf16.msra.mxu0 0
  %471 = vmatprep.subr.bf16.mxu0 0
  %472 = vmatpush1.bf16.msra.mxu0 0
  %473 = vmatprep.subr.bf16.mxu0 0
  %474 = vmatpush1.bf16.msra.mxu0 0
  %475 = vmatprep.subr.bf16.mxu0 0
  %476 = vmatpush1.bf16.msra.mxu0 0
  %477 = vmatprep.mubr.bf16.mxu0 0
  %478 = vmatmul.mubr.bf16.gmra.mrb[0].mxu0 %v200
  %v479 = vpop.f32.mrb[0].mxu0
  %v480 = vadd.f32 0.0, %v479
  %v481 = vpop.f32.mrb[0].mxu0
  %v482 = vpop.f32.mrb[0].mxu0
  %v483 = vadd.f32 0.0, %v482
  %v484 = vpop.f32.mrb[0].mxu0
  %485 = vmatprep.mubr.bf16.mxu0 0
  %486 = vmatmul.mubr.bf16.gmra.mrb[0].mxu0 %v203
  %v487 = vpop.f32.mrb[0].mxu0
  %v488 = vadd.f32 0.0, %v487
  %v489 = vpop.f32.mrb[0].mxu0
  %v490 = vpop.f32.mrb[0].mxu0
  %v491 = vadd.f32 0.0, %v490
  %v492 = vpop.f32.mrb[0].mxu0
  %493 = vmatprep.mubr.bf16.mxu0 0
  %494 = vmatmul.mubr.bf16.gmra.mrb[0].mxu0 %v206
  %v495 = vpop.f32.mrb[0].mxu0
  %v496 = vadd.f32 0.0, %v495
  %v497 = vpop.f32.mrb[0].mxu0
  %v498 = vpop.f32.mrb[0].mxu0
  %v499 = vadd.f32 0.0, %v498
  %v500 = vpop.f32.mrb[0].mxu0
  %501 = vmatprep.mubr.bf16.mxu0 0
  %502 = vmatmul.mubr.bf16.gmra.mrb[0].mxu0 %v209
  %v503 = vpop.f32.mrb[0].mxu0
  %v504 = vadd.f32 0.0, %v503
  %v505 = vpop.f32.mrb[0].mxu0
  %v506 = vpop.f32.mrb[0].mxu0
  %v507 = vadd.f32 0.0, %v506
  %v508 = vpop.f32.mrb[0].mxu0
  %509 = vdwg.mxu0
  %v510 = vsel %vm22, %v480, %v411
  %v511 = vsel %vm22, %v483, %v414
  %v512 = vsel %vm22, %v488, %v419
  %v513 = vsel %vm22, %v491, %v422
  %v514 = vsel %vm22, %v496, %v427
  %v515 = vsel %vm22, %v499, %v430
  %v516 = vsel %vm22, %v504, %v435
  %v517 = vsel %vm22, %v507, %v438
  %s518 = scalar_lea.vmem %s3, 1
  %v519 = vld [vmem:[%s518] sm:$0x1]
  %v521 = vlaneseq
  %v522 = vshrl.u32 %v521, 7
  %v523 = vsub.s32 0, %v522
  %v524 = vrot.slane %v519, %v523
  %v526 = vadd.f32 %v510, %v524
  %v527 = vadd.f32 %v511, %v524
  %v528 = vadd.f32 %v512, %v524
  %v529 = vadd.f32 %v513, %v524
  %v530 = vadd.f32 %v514, %v524
  %v531 = vadd.f32 %v515, %v524
  %v532 = vadd.f32 %v516, %v524
  %v533 = vadd.f32 %v517, %v524
  %v534 = vmax.f32 %v526, 0.0
  %v535 = vmax.f32 %v527, 0.0
  %v536 = vmax.f32 %v528, 0.0
  %v537 = vmax.f32 %v529, 0.0
  %v538 = vmax.f32 %v530, 0.0
  %v539 = vmax.f32 %v531, 0.0
  %v540 = vmax.f32 %v532, 0.0
  %v541 = vmax.f32 %v533, 0.0
  %v542 = vsel %vm24, %v33, 0.0
  %v543 = vsel %vm24, %v34, 0.0
  %v544 = vsel %vm24, %v35, 0.0
  %v545 = vsel %vm24, %v36, 0.0
  %v546 = vsel %vm24, %v37, 0.0
  %v547 = vsel %vm24, %v38, 0.0
  %v548 = vsel %vm24, %v39, 0.0
  %v549 = vsel %vm24, %v40, 0.0
  %v550 = vadd.f32 %v542, %v534
  %v551 = vadd.f32 %v543, %v535
  %v552 = vadd.f32 %v544, %v536
  %v553 = vadd.f32 %v545, %v537
  %v554 = vadd.f32 %v546, %v538
  %v555 = vadd.f32 %v547, %v539
  %v556 = vadd.f32 %v548, %v540
  %v557 = vadd.f32 %v549, %v541
  %v558 = vmul.f32 %v550, 0.5
  %v559 = vmul.f32 %v551, 0.5
  %v560 = vmul.f32 %v552, 0.5
  %v561 = vmul.f32 %v553, 0.5
  %v562 = vmul.f32 %v554, 0.5
  %v563 = vmul.f32 %v555, 0.5
  %v564 = vmul.f32 %v556, 0.5
  %v565 = vmul.f32 %v557, 0.5
  %v566 = vpack.c.bf16 %v559, %v558
  %v567 = vpack.c.bf16 %v561, %v560
  %v568 = vpack.c.bf16 %v563, %v562
  %v569 = vpack.c.bf16 %v565, %v564
  %s570 = scalar_lea.vmem %s2, 128
  %v571 = vld [vmem:[%s570] sm:$0xf]
  %v572 = vld [vmem:[%s570 + $0x4] sm:$0xf]
  %v573 = vld [vmem:[%s570 + $0x8] sm:$0xf]
  %v574 = vld [vmem:[%s570 + $0xc] sm:$0xf]
  %v575 = vld [vmem:[%s570 + $0x10] sm:$0xf]
  %v576 = vld [vmem:[%s570 + $0x14] sm:$0xf]
  %v577 = vld [vmem:[%s570 + $0x18] sm:$0xf]
  %v578 = vld [vmem:[%s570 + $0x1c] sm:$0xf]
  %v579 = vld [vmem:[%s570 + $0x20] sm:$0xf]
  %v580 = vld [vmem:[%s570 + $0x24] sm:$0xf]
  %v581 = vld [vmem:[%s570 + $0x28] sm:$0xf]
  %v582 = vld [vmem:[%s570 + $0x2c] sm:$0xf]
  %v583 = vld [vmem:[%s570 + $0x30] sm:$0xf]
  %v584 = vld [vmem:[%s570 + $0x34] sm:$0xf]
  %v585 = vld [vmem:[%s570 + $0x38] sm:$0xf]
  %v586 = vld [vmem:[%s570 + $0x3c] sm:$0xf]
  %v603 = vunpack.c.l.b16 %v571
  %v604 = vunpack.c.l.b16 %v572
  %v605 = vunpack.c.l.b16 %v573
  %v606 = vunpack.c.l.b16 %v574
  %v607 = vunpack.c.l.b16 %v575
  %v608 = vunpack.c.l.b16 %v576
  %v609 = vunpack.c.l.b16 %v577
  %v610 = vunpack.c.l.b16 %v578
  %v611 = vunpack.c.l.b16 %v579
  %v612 = vunpack.c.l.b16 %v580
  %v613 = vunpack.c.l.b16 %v581
  %v614 = vunpack.c.l.b16 %v582
  %v615 = vunpack.c.l.b16 %v583
  %v616 = vunpack.c.l.b16 %v584
  %v617 = vunpack.c.l.b16 %v585
  %v618 = vunpack.c.l.b16 %v586
  %v619 = vpack.c.b16 %v604, %v603
  %v620 = vpack.c.b16 %v606, %v605
  %v621 = vpack.c.b16 %v608, %v607
  %v622 = vpack.c.b16 %v610, %v609
  %v623 = vpack.c.b16 %v612, %v611
  %v624 = vpack.c.b16 %v614, %v613
  %v625 = vpack.c.b16 %v616, %v615
  %v626 = vpack.c.b16 %v618, %v617
  %635 = vmatprep.subr.bf16.mxu0 0
  %636 = vmatpush1.bf16.msra.mxu0 %v619
  %637 = vmatprep.subr.bf16.mxu0 0
  %638 = vmatpush1.bf16.msra.mxu0 %v620
  %639 = vmatprep.subr.bf16.mxu0 0
  %640 = vmatpush1.bf16.msra.mxu0 %v621
  %641 = vmatprep.subr.bf16.mxu0 0
  %642 = vmatpush1.bf16.msra.mxu0 %v622
  %643 = vmatprep.subr.bf16.mxu0 0
  %644 = vmatpush1.bf16.msra.mxu0 %v623
  %645 = vmatprep.subr.bf16.mxu0 0
  %646 = vmatpush1.bf16.msra.mxu0 %v624
  %647 = vmatprep.subr.bf16.mxu0 0
  %648 = vmatpush1.bf16.msra.mxu0 %v625
  %649 = vmatprep.subr.bf16.mxu0 0
  %650 = vmatpush1.bf16.msra.mxu0 %v626
  %651 = vmatprep.subr.bf16.mxu0 0
  %652 = vmatpush1.bf16.msra.mxu0 0
  %653 = vmatprep.subr.bf16.mxu0 0
  %654 = vmatpush1.bf16.msra.mxu0 0
  %655 = vmatprep.subr.bf16.mxu0 0
  %656 = vmatpush1.bf16.msra.mxu0 0
  %657 = vmatprep.subr.bf16.mxu0 0
  %658 = vmatpush1.bf16.msra.mxu0 0
  %659 = vmatprep.subr.bf16.mxu0 0
  %660 = vmatpush1.bf16.msra.mxu0 0
  %661 = vmatprep.subr.bf16.mxu0 0
  %662 = vmatpush1.bf16.msra.mxu0 0
  %663 = vmatprep.subr.bf16.mxu0 0
  %664 = vmatpush1.bf16.msra.mxu0 0
  %665 = vmatprep.subr.bf16.mxu0 0
  %666 = vmatpush1.bf16.msra.mxu0 0
  %667 = vmatprep.mubr.bf16.mxu0 0
  %668 = vmatmul.mubr.bf16.gmra.mrb[0].mxu0 %v566
  %v669 = vpop.f32.mrb[0].mxu0
  %v670 = vadd.f32 0.0, %v669
  %v671 = vpop.f32.mrb[0].mxu0
  %v672 = vpop.f32.mrb[0].mxu0
  %v673 = vadd.f32 0.0, %v672
  %v674 = vpop.f32.mrb[0].mxu0
  %675 = vmatprep.mubr.bf16.mxu0 0
  %676 = vmatmul.mubr.bf16.gmra.mrb[0].mxu0 %v567
  %v677 = vpop.f32.mrb[0].mxu0
  %v678 = vadd.f32 0.0, %v677
  %v679 = vpop.f32.mrb[0].mxu0
  %v680 = vpop.f32.mrb[0].mxu0
  %v681 = vadd.f32 0.0, %v680
  %v682 = vpop.f32.mrb[0].mxu0
  %683 = vmatprep.mubr.bf16.mxu0 0
  %684 = vmatmul.mubr.bf16.gmra.mrb[0].mxu0 %v568
  %v685 = vpop.f32.mrb[0].mxu0
  %v686 = vadd.f32 0.0, %v685
  %v687 = vpop.f32.mrb[0].mxu0
  %v688 = vpop.f32.mrb[0].mxu0
  %v689 = vadd.f32 0.0, %v688
  %v690 = vpop.f32.mrb[0].mxu0
  %691 = vmatprep.mubr.bf16.mxu0 0
  %692 = vmatmul.mubr.bf16.gmra.mrb[0].mxu0 %v569
  %v693 = vpop.f32.mrb[0].mxu0
  %v694 = vadd.f32 0.0, %v693
  %v695 = vpop.f32.mrb[0].mxu0
  %v696 = vpop.f32.mrb[0].mxu0
  %v697 = vadd.f32 0.0, %v696
  %v698 = vpop.f32.mrb[0].mxu0
  %699 = vdwg.mxu0
  %v700 = vpack.c.bf16 %v673, %v670
  %v701 = vpack.c.bf16 %v681, %v678
  %v702 = vpack.c.bf16 %v689, %v686
  %v703 = vpack.c.bf16 %v697, %v694
  %704 = vmatprep.subr.bf16.mxu0 0
  %705 = vmatpush1.bf16.msra.mxu0 %v700
  %706 = vmatprep.subr.bf16.mxu0 0
  %707 = vmatpush1.bf16.msra.mxu0 %v701
  %708 = vmatprep.subr.bf16.mxu0 0
  %709 = vmatpush1.bf16.msra.mxu0 %v702
  %710 = vmatprep.subr.bf16.mxu0 0
  %711 = vmatpush1.bf16.msra.mxu0 %v703
  %712 = vmatprep.subr.bf16.mxu0 0
  %713 = vmatpush1.bf16.msra.mxu0 0
  %714 = vmatprep.subr.bf16.mxu0 0
  %715 = vmatpush1.bf16.msra.mxu0 0
  %716 = vmatprep.subr.bf16.mxu0 0
  %717 = vmatpush1.bf16.msra.mxu0 0
  %718 = vmatprep.subr.bf16.mxu0 0
  %719 = vmatpush1.bf16.msra.mxu0 0
  %720 = vmatprep.subr.bf16.mxu0 0
  %721 = vmatpush1.bf16.msra.mxu0 0
  %722 = vmatprep.subr.bf16.mxu0 0
  %723 = vmatpush1.bf16.msra.mxu0 0
  %724 = vmatprep.subr.bf16.mxu0 0
  %725 = vmatpush1.bf16.msra.mxu0 0
  %726 = vmatprep.subr.bf16.mxu0 0
  %727 = vmatpush1.bf16.msra.mxu0 0
  %728 = vmatprep.subr.bf16.mxu0 0
  %729 = vmatpush1.bf16.msra.mxu0 0
  %730 = vmatprep.subr.bf16.mxu0 0
  %731 = vmatpush1.bf16.msra.mxu0 0
  %732 = vmatprep.subr.bf16.mxu0 0
  %733 = vmatpush1.bf16.msra.mxu0 0
  %734 = vmatprep.subr.bf16.mxu0 0
  %735 = vmatpush1.bf16.msra.mxu0 0
  %736 = vmatprep.mubr.bf16.mxu0 0
  %737 = vmatmul.mubr.bf16.gmra.mrb[0].mxu0 %v200
  %v738 = vpop.f32.mrb[0].mxu0
  %v739 = vadd.f32 0.0, %v738
  %v740 = vpop.f32.mrb[0].mxu0
  %v741 = vpop.f32.mrb[0].mxu0
  %v742 = vadd.f32 0.0, %v741
  %v743 = vpop.f32.mrb[0].mxu0
  %744 = vmatprep.mubr.bf16.mxu0 0
  %745 = vmatmul.mubr.bf16.gmra.mrb[0].mxu0 %v203
  %v746 = vpop.f32.mrb[0].mxu0
  %v747 = vadd.f32 0.0, %v746
  %v748 = vpop.f32.mrb[0].mxu0
  %v749 = vpop.f32.mrb[0].mxu0
  %v750 = vadd.f32 0.0, %v749
  %v751 = vpop.f32.mrb[0].mxu0
  %752 = vmatprep.mubr.bf16.mxu0 0
  %753 = vmatmul.mubr.bf16.gmra.mrb[0].mxu0 %v206
  %v754 = vpop.f32.mrb[0].mxu0
  %v755 = vadd.f32 0.0, %v754
  %v756 = vpop.f32.mrb[0].mxu0
  %v757 = vpop.f32.mrb[0].mxu0
  %v758 = vadd.f32 0.0, %v757
  %v759 = vpop.f32.mrb[0].mxu0
  %760 = vmatprep.mubr.bf16.mxu0 0
  %761 = vmatmul.mubr.bf16.gmra.mrb[0].mxu0 %v209
  %v762 = vpop.f32.mrb[0].mxu0
  %v763 = vadd.f32 0.0, %v762
  %v764 = vpop.f32.mrb[0].mxu0
  %v765 = vpop.f32.mrb[0].mxu0
  %v766 = vadd.f32 0.0, %v765
  %v767 = vpop.f32.mrb[0].mxu0
  %768 = vdwg.mxu0
  %v769 = vsel %vm22, %v739, %v670
  %v770 = vsel %vm22, %v742, %v673
  %v771 = vsel %vm22, %v747, %v678
  %v772 = vsel %vm22, %v750, %v681
  %v773 = vsel %vm22, %v755, %v686
  %v774 = vsel %vm22, %v758, %v689
  %v775 = vsel %vm22, %v763, %v694
  %v776 = vsel %vm22, %v766, %v697
  %s777 = scalar_lea.vmem %s3, 2
  %v778 = vld [vmem:[%s777] sm:$0x1]
  %v780 = vlaneseq
  %v781 = vshrl.u32 %v780, 7
  %v782 = vsub.s32 0, %v781
  %v783 = vrot.slane %v778, %v782
  %v785 = vadd.f32 %v769, %v783
  %v786 = vadd.f32 %v770, %v783
  %v787 = vadd.f32 %v771, %v783
  %v788 = vadd.f32 %v772, %v783
  %v789 = vadd.f32 %v773, %v783
  %v790 = vadd.f32 %v774, %v783
  %v791 = vadd.f32 %v775, %v783
  %v792 = vadd.f32 %v776, %v783
  %v793 = vmax.f32 %v785, 0.0
  %v794 = vmax.f32 %v786, 0.0
  %v795 = vmax.f32 %v787, 0.0
  %v796 = vmax.f32 %v788, 0.0
  %v797 = vmax.f32 %v789, 0.0
  %v798 = vmax.f32 %v790, 0.0
  %v799 = vmax.f32 %v791, 0.0
  %v800 = vmax.f32 %v792, 0.0
  %v801 = vpack.c.bf16 %v794, %v793
  %v802 = vpack.c.bf16 %v796, %v795
  %v803 = vpack.c.bf16 %v798, %v797
  %v804 = vpack.c.bf16 %v800, %v799
  %s805 = scalar_lea.vmem %s2, 192
  %v806 = vld [vmem:[%s805] sm:$0xf]
  %v807 = vld [vmem:[%s805 + $0x4] sm:$0xf]
  %v808 = vld [vmem:[%s805 + $0x8] sm:$0xf]
  %v809 = vld [vmem:[%s805 + $0xc] sm:$0xf]
  %v810 = vld [vmem:[%s805 + $0x10] sm:$0xf]
  %v811 = vld [vmem:[%s805 + $0x14] sm:$0xf]
  %v812 = vld [vmem:[%s805 + $0x18] sm:$0xf]
  %v813 = vld [vmem:[%s805 + $0x1c] sm:$0xf]
  %v814 = vld [vmem:[%s805 + $0x20] sm:$0xf]
  %v815 = vld [vmem:[%s805 + $0x24] sm:$0xf]
  %v816 = vld [vmem:[%s805 + $0x28] sm:$0xf]
  %v817 = vld [vmem:[%s805 + $0x2c] sm:$0xf]
  %v818 = vld [vmem:[%s805 + $0x30] sm:$0xf]
  %v819 = vld [vmem:[%s805 + $0x34] sm:$0xf]
  %v820 = vld [vmem:[%s805 + $0x38] sm:$0xf]
  %v821 = vld [vmem:[%s805 + $0x3c] sm:$0xf]
  %v838 = vunpack.c.l.b16 %v806
  %v839 = vunpack.c.l.b16 %v807
  %v840 = vunpack.c.l.b16 %v808
  %v841 = vunpack.c.l.b16 %v809
  %v842 = vunpack.c.l.b16 %v810
  %v843 = vunpack.c.l.b16 %v811
  %v844 = vunpack.c.l.b16 %v812
  %v845 = vunpack.c.l.b16 %v813
  %v846 = vunpack.c.l.b16 %v814
  %v847 = vunpack.c.l.b16 %v815
  %v848 = vunpack.c.l.b16 %v816
  %v849 = vunpack.c.l.b16 %v817
  %v850 = vunpack.c.l.b16 %v818
  %v851 = vunpack.c.l.b16 %v819
  %v852 = vunpack.c.l.b16 %v820
  %v853 = vunpack.c.l.b16 %v821
  %v854 = vpack.c.b16 %v839, %v838
  %v855 = vpack.c.b16 %v841, %v840
  %v856 = vpack.c.b16 %v843, %v842
  %v857 = vpack.c.b16 %v845, %v844
  %v858 = vpack.c.b16 %v847, %v846
  %v859 = vpack.c.b16 %v849, %v848
  %v860 = vpack.c.b16 %v851, %v850
  %v861 = vpack.c.b16 %v853, %v852
  %870 = vmatprep.subr.bf16.mxu0 0
  %871 = vmatpush1.bf16.msra.mxu0 %v854
  %872 = vmatprep.subr.bf16.mxu0 0
  %873 = vmatpush1.bf16.msra.mxu0 %v855
  %874 = vmatprep.subr.bf16.mxu0 0
  %875 = vmatpush1.bf16.msra.mxu0 %v856
  %876 = vmatprep.subr.bf16.mxu0 0
  %877 = vmatpush1.bf16.msra.mxu0 %v857
  %878 = vmatprep.subr.bf16.mxu0 0
  %879 = vmatpush1.bf16.msra.mxu0 %v858
  %880 = vmatprep.subr.bf16.mxu0 0
  %881 = vmatpush1.bf16.msra.mxu0 %v859
  %882 = vmatprep.subr.bf16.mxu0 0
  %883 = vmatpush1.bf16.msra.mxu0 %v860
  %884 = vmatprep.subr.bf16.mxu0 0
  %885 = vmatpush1.bf16.msra.mxu0 %v861
  %886 = vmatprep.subr.bf16.mxu0 0
  %887 = vmatpush1.bf16.msra.mxu0 0
  %888 = vmatprep.subr.bf16.mxu0 0
  %889 = vmatpush1.bf16.msra.mxu0 0
  %890 = vmatprep.subr.bf16.mxu0 0
  %891 = vmatpush1.bf16.msra.mxu0 0
  %892 = vmatprep.subr.bf16.mxu0 0
  %893 = vmatpush1.bf16.msra.mxu0 0
  %894 = vmatprep.subr.bf16.mxu0 0
  %895 = vmatpush1.bf16.msra.mxu0 0
  %896 = vmatprep.subr.bf16.mxu0 0
  %897 = vmatpush1.bf16.msra.mxu0 0
  %898 = vmatprep.subr.bf16.mxu0 0
  %899 = vmatpush1.bf16.msra.mxu0 0
  %900 = vmatprep.subr.bf16.mxu0 0
  %901 = vmatpush1.bf16.msra.mxu0 0
  %902 = vmatprep.mubr.bf16.mxu0 0
  %903 = vmatmul.mubr.bf16.gmra.mrb[0].mxu0 %v801
  %v904 = vpop.f32.mrb[0].mxu0
  %v905 = vadd.f32 0.0, %v904
  %v906 = vpop.f32.mrb[0].mxu0
  %v907 = vpop.f32.mrb[0].mxu0
  %v908 = vadd.f32 0.0, %v907
  %v909 = vpop.f32.mrb[0].mxu0
  %910 = vmatprep.mubr.bf16.mxu0 0
  %911 = vmatmul.mubr.bf16.gmra.mrb[0].mxu0 %v802
  %v912 = vpop.f32.mrb[0].mxu0
  %v913 = vadd.f32 0.0, %v912
  %v914 = vpop.f32.mrb[0].mxu0
  %v915 = vpop.f32.mrb[0].mxu0
  %v916 = vadd.f32 0.0, %v915
  %v917 = vpop.f32.mrb[0].mxu0
  %918 = vmatprep.mubr.bf16.mxu0 0
  %919 = vmatmul.mubr.bf16.gmra.mrb[0].mxu0 %v803
  %v920 = vpop.f32.mrb[0].mxu0
  %v921 = vadd.f32 0.0, %v920
  %v922 = vpop.f32.mrb[0].mxu0
  %v923 = vpop.f32.mrb[0].mxu0
  %v924 = vadd.f32 0.0, %v923
  %v925 = vpop.f32.mrb[0].mxu0
  %926 = vmatprep.mubr.bf16.mxu0 0
  %927 = vmatmul.mubr.bf16.gmra.mrb[0].mxu0 %v804
  %v928 = vpop.f32.mrb[0].mxu0
  %v929 = vadd.f32 0.0, %v928
  %v930 = vpop.f32.mrb[0].mxu0
  %v931 = vpop.f32.mrb[0].mxu0
  %v932 = vadd.f32 0.0, %v931
  %v933 = vpop.f32.mrb[0].mxu0
  %934 = vdwg.mxu0
  %v935 = vpack.c.bf16 %v908, %v905
  %v936 = vpack.c.bf16 %v916, %v913
  %v937 = vpack.c.bf16 %v924, %v921
  %v938 = vpack.c.bf16 %v932, %v929
  %939 = vmatprep.subr.bf16.mxu0 0
  %940 = vmatpush1.bf16.msra.mxu0 %v935
  %941 = vmatprep.subr.bf16.mxu0 0
  %942 = vmatpush1.bf16.msra.mxu0 %v936
  %943 = vmatprep.subr.bf16.mxu0 0
  %944 = vmatpush1.bf16.msra.mxu0 %v937
  %945 = vmatprep.subr.bf16.mxu0 0
  %946 = vmatpush1.bf16.msra.mxu0 %v938
  %947 = vmatprep.subr.bf16.mxu0 0
  %948 = vmatpush1.bf16.msra.mxu0 0
  %949 = vmatprep.subr.bf16.mxu0 0
  %950 = vmatpush1.bf16.msra.mxu0 0
  %951 = vmatprep.subr.bf16.mxu0 0
  %952 = vmatpush1.bf16.msra.mxu0 0
  %953 = vmatprep.subr.bf16.mxu0 0
  %954 = vmatpush1.bf16.msra.mxu0 0
  %955 = vmatprep.subr.bf16.mxu0 0
  %956 = vmatpush1.bf16.msra.mxu0 0
  %957 = vmatprep.subr.bf16.mxu0 0
  %958 = vmatpush1.bf16.msra.mxu0 0
  %959 = vmatprep.subr.bf16.mxu0 0
  %960 = vmatpush1.bf16.msra.mxu0 0
  %961 = vmatprep.subr.bf16.mxu0 0
  %962 = vmatpush1.bf16.msra.mxu0 0
  %963 = vmatprep.subr.bf16.mxu0 0
  %964 = vmatpush1.bf16.msra.mxu0 0
  %965 = vmatprep.subr.bf16.mxu0 0
  %966 = vmatpush1.bf16.msra.mxu0 0
  %967 = vmatprep.subr.bf16.mxu0 0
  %968 = vmatpush1.bf16.msra.mxu0 0
  %969 = vmatprep.subr.bf16.mxu0 0
  %970 = vmatpush1.bf16.msra.mxu0 0
  %971 = vmatprep.mubr.bf16.mxu0 0
  %972 = vmatmul.mubr.bf16.gmra.mrb[0].mxu0 %v200
  %v973 = vpop.f32.mrb[0].mxu0
  %v974 = vadd.f32 0.0, %v973
  %v975 = vpop.f32.mrb[0].mxu0
  %v976 = vpop.f32.mrb[0].mxu0
  %v977 = vadd.f32 0.0, %v976
  %v978 = vpop.f32.mrb[0].mxu0
  %979 = vmatprep.mubr.bf16.mxu0 0
  %980 = vmatmul.mubr.bf16.gmra.mrb[0].mxu0 %v203
  %v981 = vpop.f32.mrb[0].mxu0
  %v982 = vadd.f32 0.0, %v981
  %v983 = vpop.f32.mrb[0].mxu0
  %v984 = vpop.f32.mrb[0].mxu0
  %v985 = vadd.f32 0.0, %v984
  %v986 = vpop.f32.mrb[0].mxu0
  %987 = vmatprep.mubr.bf16.mxu0 0
  %988 = vmatmul.mubr.bf16.gmra.mrb[0].mxu0 %v206
  %v989 = vpop.f32.mrb[0].mxu0
  %v990 = vadd.f32 0.0, %v989
  %v991 = vpop.f32.mrb[0].mxu0
  %v992 = vpop.f32.mrb[0].mxu0
  %v993 = vadd.f32 0.0, %v992
  %v994 = vpop.f32.mrb[0].mxu0
  %995 = vmatprep.mubr.bf16.mxu0 0
  %996 = vmatmul.mubr.bf16.gmra.mrb[0].mxu0 %v209
  %v997 = vpop.f32.mrb[0].mxu0
  %v998 = vadd.f32 0.0, %v997
  %v999 = vpop.f32.mrb[0].mxu0
  %v1000 = vpop.f32.mrb[0].mxu0
  %v1001 = vadd.f32 0.0, %v1000
  %v1002 = vpop.f32.mrb[0].mxu0
  %1003 = vdwg.mxu0
  %v1004 = vsel %vm22, %v974, %v905
  %v1005 = vsel %vm22, %v977, %v908
  %v1006 = vsel %vm22, %v982, %v913
  %v1007 = vsel %vm22, %v985, %v916
  %v1008 = vsel %vm22, %v990, %v921
  %v1009 = vsel %vm22, %v993, %v924
  %v1010 = vsel %vm22, %v998, %v929
  %v1011 = vsel %vm22, %v1001, %v932
  %s1012 = scalar_lea.vmem %s3, 3
  %v1013 = vld [vmem:[%s1012] sm:$0x1]
  %v1015 = vlaneseq
  %v1016 = vshrl.u32 %v1015, 7
  %v1017 = vsub.s32 0, %v1016
  %v1018 = vrot.slane %v1013, %v1017
  %v1020 = vadd.f32 %v1004, %v1018
  %v1021 = vadd.f32 %v1005, %v1018
  %v1022 = vadd.f32 %v1006, %v1018
  %v1023 = vadd.f32 %v1007, %v1018
  %v1024 = vadd.f32 %v1008, %v1018
  %v1025 = vadd.f32 %v1009, %v1018
  %v1026 = vadd.f32 %v1010, %v1018
  %v1027 = vadd.f32 %v1011, %v1018
  %v1028 = vmax.f32 %v1020, 0.0
  %v1029 = vmax.f32 %v1021, 0.0
  %v1030 = vmax.f32 %v1022, 0.0
  %v1031 = vmax.f32 %v1023, 0.0
  %v1032 = vmax.f32 %v1024, 0.0
  %v1033 = vmax.f32 %v1025, 0.0
  %v1034 = vmax.f32 %v1026, 0.0
  %v1035 = vmax.f32 %v1027, 0.0
  %v1036 = vadd.f32 %v558, %v1028
  %v1037 = vadd.f32 %v559, %v1029
  %v1038 = vadd.f32 %v560, %v1030
  %v1039 = vadd.f32 %v561, %v1031
  %v1040 = vadd.f32 %v562, %v1032
  %v1041 = vadd.f32 %v563, %v1033
  %v1042 = vadd.f32 %v564, %v1034
  %v1043 = vadd.f32 %v565, %v1035
  %v1044 = vmul.f32 %v1036, 0.5
  %v1045 = vmul.f32 %v1037, 0.5
  %v1046 = vmul.f32 %v1038, 0.5
  %v1047 = vmul.f32 %v1039, 0.5
  %v1048 = vmul.f32 %v1040, 0.5
  %v1049 = vmul.f32 %v1041, 0.5
  %v1050 = vmul.f32 %v1042, 0.5
  %v1051 = vmul.f32 %v1043, 0.5
  %v1052 = vpack.c.bf16 %v1045, %v1044
  %v1053 = vpack.c.bf16 %v1047, %v1046
  %v1054 = vpack.c.bf16 %v1049, %v1048
  %v1055 = vpack.c.bf16 %v1051, %v1050
  %s1056 = scalar_lea.vmem %s2, 256
  %v1057 = vld [vmem:[%s1056] sm:$0xf]
  %v1058 = vld [vmem:[%s1056 + $0x4] sm:$0xf]
  %v1059 = vld [vmem:[%s1056 + $0x8] sm:$0xf]
  %v1060 = vld [vmem:[%s1056 + $0xc] sm:$0xf]
  %v1061 = vld [vmem:[%s1056 + $0x10] sm:$0xf]
  %v1062 = vld [vmem:[%s1056 + $0x14] sm:$0xf]
  %v1063 = vld [vmem:[%s1056 + $0x18] sm:$0xf]
  %v1064 = vld [vmem:[%s1056 + $0x1c] sm:$0xf]
  %v1065 = vld [vmem:[%s1056 + $0x20] sm:$0xf]
  %v1066 = vld [vmem:[%s1056 + $0x24] sm:$0xf]
  %v1067 = vld [vmem:[%s1056 + $0x28] sm:$0xf]
  %v1068 = vld [vmem:[%s1056 + $0x2c] sm:$0xf]
  %v1069 = vld [vmem:[%s1056 + $0x30] sm:$0xf]
  %v1070 = vld [vmem:[%s1056 + $0x34] sm:$0xf]
  %v1071 = vld [vmem:[%s1056 + $0x38] sm:$0xf]
  %v1072 = vld [vmem:[%s1056 + $0x3c] sm:$0xf]
  %v1089 = vunpack.c.l.b16 %v1057
  %v1090 = vunpack.c.l.b16 %v1058
  %v1091 = vunpack.c.l.b16 %v1059
  %v1092 = vunpack.c.l.b16 %v1060
  %v1093 = vunpack.c.l.b16 %v1061
  %v1094 = vunpack.c.l.b16 %v1062
  %v1095 = vunpack.c.l.b16 %v1063
  %v1096 = vunpack.c.l.b16 %v1064
  %v1097 = vunpack.c.l.b16 %v1065
  %v1098 = vunpack.c.l.b16 %v1066
  %v1099 = vunpack.c.l.b16 %v1067
  %v1100 = vunpack.c.l.b16 %v1068
  %v1101 = vunpack.c.l.b16 %v1069
  %v1102 = vunpack.c.l.b16 %v1070
  %v1103 = vunpack.c.l.b16 %v1071
  %v1104 = vunpack.c.l.b16 %v1072
  %v1105 = vpack.c.b16 %v1090, %v1089
  %v1106 = vpack.c.b16 %v1092, %v1091
  %v1107 = vpack.c.b16 %v1094, %v1093
  %v1108 = vpack.c.b16 %v1096, %v1095
  %v1109 = vpack.c.b16 %v1098, %v1097
  %v1110 = vpack.c.b16 %v1100, %v1099
  %v1111 = vpack.c.b16 %v1102, %v1101
  %v1112 = vpack.c.b16 %v1104, %v1103
  %1121 = vmatprep.subr.bf16.mxu0 0
  %1122 = vmatpush1.bf16.msra.mxu0 %v1105
  %1123 = vmatprep.subr.bf16.mxu0 0
  %1124 = vmatpush1.bf16.msra.mxu0 %v1106
  %1125 = vmatprep.subr.bf16.mxu0 0
  %1126 = vmatpush1.bf16.msra.mxu0 %v1107
  %1127 = vmatprep.subr.bf16.mxu0 0
  %1128 = vmatpush1.bf16.msra.mxu0 %v1108
  %1129 = vmatprep.subr.bf16.mxu0 0
  %1130 = vmatpush1.bf16.msra.mxu0 %v1109
  %1131 = vmatprep.subr.bf16.mxu0 0
  %1132 = vmatpush1.bf16.msra.mxu0 %v1110
  %1133 = vmatprep.subr.bf16.mxu0 0
  %1134 = vmatpush1.bf16.msra.mxu0 %v1111
  %1135 = vmatprep.subr.bf16.mxu0 0
  %1136 = vmatpush1.bf16.msra.mxu0 %v1112
  %1137 = vmatprep.subr.bf16.mxu0 0
  %1138 = vmatpush1.bf16.msra.mxu0 0
  %1139 = vmatprep.subr.bf16.mxu0 0
  %1140 = vmatpush1.bf16.msra.mxu0 0
  %1141 = vmatprep.subr.bf16.mxu0 0
  %1142 = vmatpush1.bf16.msra.mxu0 0
  %1143 = vmatprep.subr.bf16.mxu0 0
  %1144 = vmatpush1.bf16.msra.mxu0 0
  %1145 = vmatprep.subr.bf16.mxu0 0
  %1146 = vmatpush1.bf16.msra.mxu0 0
  %1147 = vmatprep.subr.bf16.mxu0 0
  %1148 = vmatpush1.bf16.msra.mxu0 0
  %1149 = vmatprep.subr.bf16.mxu0 0
  %1150 = vmatpush1.bf16.msra.mxu0 0
  %1151 = vmatprep.subr.bf16.mxu0 0
  %1152 = vmatpush1.bf16.msra.mxu0 0
  %1153 = vmatprep.mubr.bf16.mxu0 0
  %1154 = vmatmul.mubr.bf16.gmra.mrb[0].mxu0 %v1052
  %v1155 = vpop.f32.mrb[0].mxu0
  %v1156 = vadd.f32 0.0, %v1155
  %v1157 = vpop.f32.mrb[0].mxu0
  %v1158 = vpop.f32.mrb[0].mxu0
  %v1159 = vadd.f32 0.0, %v1158
  %v1160 = vpop.f32.mrb[0].mxu0
  %1161 = vmatprep.mubr.bf16.mxu0 0
  %1162 = vmatmul.mubr.bf16.gmra.mrb[0].mxu0 %v1053
  %v1163 = vpop.f32.mrb[0].mxu0
  %v1164 = vadd.f32 0.0, %v1163
  %v1165 = vpop.f32.mrb[0].mxu0
  %v1166 = vpop.f32.mrb[0].mxu0
  %v1167 = vadd.f32 0.0, %v1166
  %v1168 = vpop.f32.mrb[0].mxu0
  %1169 = vmatprep.mubr.bf16.mxu0 0
  %1170 = vmatmul.mubr.bf16.gmra.mrb[0].mxu0 %v1054
  %v1171 = vpop.f32.mrb[0].mxu0
  %v1172 = vadd.f32 0.0, %v1171
  %v1173 = vpop.f32.mrb[0].mxu0
  %v1174 = vpop.f32.mrb[0].mxu0
  %v1175 = vadd.f32 0.0, %v1174
  %v1176 = vpop.f32.mrb[0].mxu0
  %1177 = vmatprep.mubr.bf16.mxu0 0
  %1178 = vmatmul.mubr.bf16.gmra.mrb[0].mxu0 %v1055
  %v1179 = vpop.f32.mrb[0].mxu0
  %v1180 = vadd.f32 0.0, %v1179
  %v1181 = vpop.f32.mrb[0].mxu0
  %v1182 = vpop.f32.mrb[0].mxu0
  %v1183 = vadd.f32 0.0, %v1182
  %v1184 = vpop.f32.mrb[0].mxu0
  %1185 = vdwg.mxu0
  %v1186 = vpack.c.bf16 %v1159, %v1156
  %v1187 = vpack.c.bf16 %v1167, %v1164
  %v1188 = vpack.c.bf16 %v1175, %v1172
  %v1189 = vpack.c.bf16 %v1183, %v1180
  %1190 = vmatprep.subr.bf16.mxu0 0
  %1191 = vmatpush1.bf16.msra.mxu0 %v1186
  %1192 = vmatprep.subr.bf16.mxu0 0
  %1193 = vmatpush1.bf16.msra.mxu0 %v1187
  %1194 = vmatprep.subr.bf16.mxu0 0
  %1195 = vmatpush1.bf16.msra.mxu0 %v1188
  %1196 = vmatprep.subr.bf16.mxu0 0
  %1197 = vmatpush1.bf16.msra.mxu0 %v1189
  %1198 = vmatprep.subr.bf16.mxu0 0
  %1199 = vmatpush1.bf16.msra.mxu0 0
  %1200 = vmatprep.subr.bf16.mxu0 0
  %1201 = vmatpush1.bf16.msra.mxu0 0
  %1202 = vmatprep.subr.bf16.mxu0 0
  %1203 = vmatpush1.bf16.msra.mxu0 0
  %1204 = vmatprep.subr.bf16.mxu0 0
  %1205 = vmatpush1.bf16.msra.mxu0 0
  %1206 = vmatprep.subr.bf16.mxu0 0
  %1207 = vmatpush1.bf16.msra.mxu0 0
  %1208 = vmatprep.subr.bf16.mxu0 0
  %1209 = vmatpush1.bf16.msra.mxu0 0
  %1210 = vmatprep.subr.bf16.mxu0 0
  %1211 = vmatpush1.bf16.msra.mxu0 0
  %1212 = vmatprep.subr.bf16.mxu0 0
  %1213 = vmatpush1.bf16.msra.mxu0 0
  %1214 = vmatprep.subr.bf16.mxu0 0
  %1215 = vmatpush1.bf16.msra.mxu0 0
  %1216 = vmatprep.subr.bf16.mxu0 0
  %1217 = vmatpush1.bf16.msra.mxu0 0
  %1218 = vmatprep.subr.bf16.mxu0 0
  %1219 = vmatpush1.bf16.msra.mxu0 0
  %1220 = vmatprep.subr.bf16.mxu0 0
  %1221 = vmatpush1.bf16.msra.mxu0 0
  %1222 = vmatprep.mubr.bf16.mxu0 0
  %1223 = vmatmul.mubr.bf16.gmra.mrb[0].mxu0 %v200
  %v1224 = vpop.f32.mrb[0].mxu0
  %v1225 = vadd.f32 0.0, %v1224
  %v1226 = vpop.f32.mrb[0].mxu0
  %v1227 = vpop.f32.mrb[0].mxu0
  %v1228 = vadd.f32 0.0, %v1227
  %v1229 = vpop.f32.mrb[0].mxu0
  %1230 = vmatprep.mubr.bf16.mxu0 0
  %1231 = vmatmul.mubr.bf16.gmra.mrb[0].mxu0 %v203
  %v1232 = vpop.f32.mrb[0].mxu0
  %v1233 = vadd.f32 0.0, %v1232
  %v1234 = vpop.f32.mrb[0].mxu0
  %v1235 = vpop.f32.mrb[0].mxu0
  %v1236 = vadd.f32 0.0, %v1235
  %v1237 = vpop.f32.mrb[0].mxu0
  %1238 = vmatprep.mubr.bf16.mxu0 0
  %1239 = vmatmul.mubr.bf16.gmra.mrb[0].mxu0 %v206
  %v1240 = vpop.f32.mrb[0].mxu0
  %v1241 = vadd.f32 0.0, %v1240
  %v1242 = vpop.f32.mrb[0].mxu0
  %v1243 = vpop.f32.mrb[0].mxu0
  %v1244 = vadd.f32 0.0, %v1243
  %v1245 = vpop.f32.mrb[0].mxu0
  %1246 = vmatprep.mubr.bf16.mxu0 0
  %1247 = vmatmul.mubr.bf16.gmra.mrb[0].mxu0 %v209
  %v1248 = vpop.f32.mrb[0].mxu0
  %v1249 = vadd.f32 0.0, %v1248
  %v1250 = vpop.f32.mrb[0].mxu0
  %v1251 = vpop.f32.mrb[0].mxu0
  %v1252 = vadd.f32 0.0, %v1251
  %v1253 = vpop.f32.mrb[0].mxu0
  %1254 = vdwg.mxu0
  %v1255 = vsel %vm22, %v1225, %v1156
  %v1256 = vsel %vm22, %v1228, %v1159
  %v1257 = vsel %vm22, %v1233, %v1164
  %v1258 = vsel %vm22, %v1236, %v1167
  %v1259 = vsel %vm22, %v1241, %v1172
  %v1260 = vsel %vm22, %v1244, %v1175
  %v1261 = vsel %vm22, %v1249, %v1180
  %v1262 = vsel %vm22, %v1252, %v1183
  %s1263 = scalar_lea.vmem %s3, 4
  %v1264 = vld [vmem:[%s1263] sm:$0x1]
  %v1266 = vlaneseq
  %v1267 = vshrl.u32 %v1266, 7
  %v1268 = vsub.s32 0, %v1267
  %v1269 = vrot.slane %v1264, %v1268
  %v1271 = vadd.f32 %v1255, %v1269
  %v1272 = vadd.f32 %v1256, %v1269
  %v1273 = vadd.f32 %v1257, %v1269
  %v1274 = vadd.f32 %v1258, %v1269
  %v1275 = vadd.f32 %v1259, %v1269
  %v1276 = vadd.f32 %v1260, %v1269
  %v1277 = vadd.f32 %v1261, %v1269
  %v1278 = vadd.f32 %v1262, %v1269
  %v1279 = vmax.f32 %v1271, 0.0
  %v1280 = vmax.f32 %v1272, 0.0
  %v1281 = vmax.f32 %v1273, 0.0
  %v1282 = vmax.f32 %v1274, 0.0
  %v1283 = vmax.f32 %v1275, 0.0
  %v1284 = vmax.f32 %v1276, 0.0
  %v1285 = vmax.f32 %v1277, 0.0
  %v1286 = vmax.f32 %v1278, 0.0
  %v1287 = vpack.c.bf16 %v1280, %v1279
  %v1288 = vpack.c.bf16 %v1282, %v1281
  %v1289 = vpack.c.bf16 %v1284, %v1283
  %v1290 = vpack.c.bf16 %v1286, %v1285
  %s1291 = scalar_lea.vmem %s2, 320
  %v1292 = vld [vmem:[%s1291] sm:$0xf]
  %v1293 = vld [vmem:[%s1291 + $0x4] sm:$0xf]
  %v1294 = vld [vmem:[%s1291 + $0x8] sm:$0xf]
  %v1295 = vld [vmem:[%s1291 + $0xc] sm:$0xf]
  %v1296 = vld [vmem:[%s1291 + $0x10] sm:$0xf]
  %v1297 = vld [vmem:[%s1291 + $0x14] sm:$0xf]
  %v1298 = vld [vmem:[%s1291 + $0x18] sm:$0xf]
  %v1299 = vld [vmem:[%s1291 + $0x1c] sm:$0xf]
  %v1300 = vld [vmem:[%s1291 + $0x20] sm:$0xf]
  %v1301 = vld [vmem:[%s1291 + $0x24] sm:$0xf]
  %v1302 = vld [vmem:[%s1291 + $0x28] sm:$0xf]
  %v1303 = vld [vmem:[%s1291 + $0x2c] sm:$0xf]
  %v1304 = vld [vmem:[%s1291 + $0x30] sm:$0xf]
  %v1305 = vld [vmem:[%s1291 + $0x34] sm:$0xf]
  %v1306 = vld [vmem:[%s1291 + $0x38] sm:$0xf]
  %v1307 = vld [vmem:[%s1291 + $0x3c] sm:$0xf]
  %v1324 = vunpack.c.l.b16 %v1292
  %v1325 = vunpack.c.l.b16 %v1293
  %v1326 = vunpack.c.l.b16 %v1294
  %v1327 = vunpack.c.l.b16 %v1295
  %v1328 = vunpack.c.l.b16 %v1296
  %v1329 = vunpack.c.l.b16 %v1297
  %v1330 = vunpack.c.l.b16 %v1298
  %v1331 = vunpack.c.l.b16 %v1299
  %v1332 = vunpack.c.l.b16 %v1300
  %v1333 = vunpack.c.l.b16 %v1301
  %v1334 = vunpack.c.l.b16 %v1302
  %v1335 = vunpack.c.l.b16 %v1303
  %v1336 = vunpack.c.l.b16 %v1304
  %v1337 = vunpack.c.l.b16 %v1305
  %v1338 = vunpack.c.l.b16 %v1306
  %v1339 = vunpack.c.l.b16 %v1307
  %v1340 = vpack.c.b16 %v1325, %v1324
  %v1341 = vpack.c.b16 %v1327, %v1326
  %v1342 = vpack.c.b16 %v1329, %v1328
  %v1343 = vpack.c.b16 %v1331, %v1330
  %v1344 = vpack.c.b16 %v1333, %v1332
  %v1345 = vpack.c.b16 %v1335, %v1334
  %v1346 = vpack.c.b16 %v1337, %v1336
  %v1347 = vpack.c.b16 %v1339, %v1338
  %1356 = vmatprep.subr.bf16.mxu0 0
  %1357 = vmatpush1.bf16.msra.mxu0 %v1340
  %1358 = vmatprep.subr.bf16.mxu0 0
  %1359 = vmatpush1.bf16.msra.mxu0 %v1341
  %1360 = vmatprep.subr.bf16.mxu0 0
  %1361 = vmatpush1.bf16.msra.mxu0 %v1342
  %1362 = vmatprep.subr.bf16.mxu0 0
  %1363 = vmatpush1.bf16.msra.mxu0 %v1343
  %1364 = vmatprep.subr.bf16.mxu0 0
  %1365 = vmatpush1.bf16.msra.mxu0 %v1344
  %1366 = vmatprep.subr.bf16.mxu0 0
  %1367 = vmatpush1.bf16.msra.mxu0 %v1345
  %1368 = vmatprep.subr.bf16.mxu0 0
  %1369 = vmatpush1.bf16.msra.mxu0 %v1346
  %1370 = vmatprep.subr.bf16.mxu0 0
  %1371 = vmatpush1.bf16.msra.mxu0 %v1347
  %1372 = vmatprep.subr.bf16.mxu0 0
  %1373 = vmatpush1.bf16.msra.mxu0 0
  %1374 = vmatprep.subr.bf16.mxu0 0
  %1375 = vmatpush1.bf16.msra.mxu0 0
  %1376 = vmatprep.subr.bf16.mxu0 0
  %1377 = vmatpush1.bf16.msra.mxu0 0
  %1378 = vmatprep.subr.bf16.mxu0 0
  %1379 = vmatpush1.bf16.msra.mxu0 0
  %1380 = vmatprep.subr.bf16.mxu0 0
  %1381 = vmatpush1.bf16.msra.mxu0 0
  %1382 = vmatprep.subr.bf16.mxu0 0
  %1383 = vmatpush1.bf16.msra.mxu0 0
  %1384 = vmatprep.subr.bf16.mxu0 0
  %1385 = vmatpush1.bf16.msra.mxu0 0
  %1386 = vmatprep.subr.bf16.mxu0 0
  %1387 = vmatpush1.bf16.msra.mxu0 0
  %1388 = vmatprep.mubr.bf16.mxu0 0
  %1389 = vmatmul.mubr.bf16.gmra.mrb[0].mxu0 %v1287
  %v1390 = vpop.f32.mrb[0].mxu0
  %v1391 = vadd.f32 0.0, %v1390
  %v1392 = vpop.f32.mrb[0].mxu0
  %v1393 = vpop.f32.mrb[0].mxu0
  %v1394 = vadd.f32 0.0, %v1393
  %v1395 = vpop.f32.mrb[0].mxu0
  %1396 = vmatprep.mubr.bf16.mxu0 0
  %1397 = vmatmul.mubr.bf16.gmra.mrb[0].mxu0 %v1288
  %v1398 = vpop.f32.mrb[0].mxu0
  %v1399 = vadd.f32 0.0, %v1398
  %v1400 = vpop.f32.mrb[0].mxu0
  %v1401 = vpop.f32.mrb[0].mxu0
  %v1402 = vadd.f32 0.0, %v1401
  %v1403 = vpop.f32.mrb[0].mxu0
  %1404 = vmatprep.mubr.bf16.mxu0 0
  %1405 = vmatmul.mubr.bf16.gmra.mrb[0].mxu0 %v1289
  %v1406 = vpop.f32.mrb[0].mxu0
  %v1407 = vadd.f32 0.0, %v1406
  %v1408 = vpop.f32.mrb[0].mxu0
  %v1409 = vpop.f32.mrb[0].mxu0
  %v1410 = vadd.f32 0.0, %v1409
  %v1411 = vpop.f32.mrb[0].mxu0
  %1412 = vmatprep.mubr.bf16.mxu0 0
  %1413 = vmatmul.mubr.bf16.gmra.mrb[0].mxu0 %v1290
  %v1414 = vpop.f32.mrb[0].mxu0
  %v1415 = vadd.f32 0.0, %v1414
  %v1416 = vpop.f32.mrb[0].mxu0
  %v1417 = vpop.f32.mrb[0].mxu0
  %v1418 = vadd.f32 0.0, %v1417
  %v1419 = vpop.f32.mrb[0].mxu0
  %1420 = vdwg.mxu0
  %v1421 = vpack.c.bf16 %v1394, %v1391
  %v1422 = vpack.c.bf16 %v1402, %v1399
  %v1423 = vpack.c.bf16 %v1410, %v1407
  %v1424 = vpack.c.bf16 %v1418, %v1415
  %1425 = vmatprep.subr.bf16.mxu0 0
  %1426 = vmatpush1.bf16.msra.mxu0 %v1421
  %1427 = vmatprep.subr.bf16.mxu0 0
  %1428 = vmatpush1.bf16.msra.mxu0 %v1422
  %1429 = vmatprep.subr.bf16.mxu0 0
  %1430 = vmatpush1.bf16.msra.mxu0 %v1423
  %1431 = vmatprep.subr.bf16.mxu0 0
  %1432 = vmatpush1.bf16.msra.mxu0 %v1424
  %1433 = vmatprep.subr.bf16.mxu0 0
  %1434 = vmatpush1.bf16.msra.mxu0 0
  %1435 = vmatprep.subr.bf16.mxu0 0
  %1436 = vmatpush1.bf16.msra.mxu0 0
  %1437 = vmatprep.subr.bf16.mxu0 0
  %1438 = vmatpush1.bf16.msra.mxu0 0
  %1439 = vmatprep.subr.bf16.mxu0 0
  %1440 = vmatpush1.bf16.msra.mxu0 0
  %1441 = vmatprep.subr.bf16.mxu0 0
  %1442 = vmatpush1.bf16.msra.mxu0 0
  %1443 = vmatprep.subr.bf16.mxu0 0
  %1444 = vmatpush1.bf16.msra.mxu0 0
  %1445 = vmatprep.subr.bf16.mxu0 0
  %1446 = vmatpush1.bf16.msra.mxu0 0
  %1447 = vmatprep.subr.bf16.mxu0 0
  %1448 = vmatpush1.bf16.msra.mxu0 0
  %1449 = vmatprep.subr.bf16.mxu0 0
  %1450 = vmatpush1.bf16.msra.mxu0 0
  %1451 = vmatprep.subr.bf16.mxu0 0
  %1452 = vmatpush1.bf16.msra.mxu0 0
  %1453 = vmatprep.subr.bf16.mxu0 0
  %1454 = vmatpush1.bf16.msra.mxu0 0
  %1455 = vmatprep.subr.bf16.mxu0 0
  %1456 = vmatpush1.bf16.msra.mxu0 0
  %1457 = vmatprep.mubr.bf16.mxu0 0
  %1458 = vmatmul.mubr.bf16.gmra.mrb[0].mxu0 %v200
  %v1459 = vpop.f32.mrb[0].mxu0
  %v1460 = vadd.f32 0.0, %v1459
  %v1461 = vpop.f32.mrb[0].mxu0
  %v1462 = vpop.f32.mrb[0].mxu0
  %v1463 = vadd.f32 0.0, %v1462
  %v1464 = vpop.f32.mrb[0].mxu0
  %1465 = vmatprep.mubr.bf16.mxu0 0
  %1466 = vmatmul.mubr.bf16.gmra.mrb[0].mxu0 %v203
  %v1467 = vpop.f32.mrb[0].mxu0
  %v1468 = vadd.f32 0.0, %v1467
  %v1469 = vpop.f32.mrb[0].mxu0
  %v1470 = vpop.f32.mrb[0].mxu0
  %v1471 = vadd.f32 0.0, %v1470
  %v1472 = vpop.f32.mrb[0].mxu0
  %1473 = vmatprep.mubr.bf16.mxu0 0
  %1474 = vmatmul.mubr.bf16.gmra.mrb[0].mxu0 %v206
  %v1475 = vpop.f32.mrb[0].mxu0
  %v1476 = vadd.f32 0.0, %v1475
  %v1477 = vpop.f32.mrb[0].mxu0
  %v1478 = vpop.f32.mrb[0].mxu0
  %v1479 = vadd.f32 0.0, %v1478
  %v1480 = vpop.f32.mrb[0].mxu0
  %1481 = vmatprep.mubr.bf16.mxu0 0
  %1482 = vmatmul.mubr.bf16.gmra.mrb[0].mxu0 %v209
  %v1483 = vpop.f32.mrb[0].mxu0
  %v1484 = vadd.f32 0.0, %v1483
  %v1485 = vpop.f32.mrb[0].mxu0
  %v1486 = vpop.f32.mrb[0].mxu0
  %v1487 = vadd.f32 0.0, %v1486
  %v1488 = vpop.f32.mrb[0].mxu0
  %1489 = vdwg.mxu0
  %v1490 = vsel %vm22, %v1460, %v1391
  %v1491 = vsel %vm22, %v1463, %v1394
  %v1492 = vsel %vm22, %v1468, %v1399
  %v1493 = vsel %vm22, %v1471, %v1402
  %v1494 = vsel %vm22, %v1476, %v1407
  %v1495 = vsel %vm22, %v1479, %v1410
  %v1496 = vsel %vm22, %v1484, %v1415
  %v1497 = vsel %vm22, %v1487, %v1418
  %s1498 = scalar_lea.vmem %s3, 5
  %v1499 = vld [vmem:[%s1498] sm:$0x1]
  %v1501 = vlaneseq
  %v1502 = vshrl.u32 %v1501, 7
  %v1503 = vsub.s32 0, %v1502
  %v1504 = vrot.slane %v1499, %v1503
  %v1506 = vadd.f32 %v1490, %v1504
  %v1507 = vadd.f32 %v1491, %v1504
  %v1508 = vadd.f32 %v1492, %v1504
  %v1509 = vadd.f32 %v1493, %v1504
  %v1510 = vadd.f32 %v1494, %v1504
  %v1511 = vadd.f32 %v1495, %v1504
  %v1512 = vadd.f32 %v1496, %v1504
  %v1513 = vadd.f32 %v1497, %v1504
  %v1514 = vmax.f32 %v1506, 0.0
  %v1515 = vmax.f32 %v1507, 0.0
  %v1516 = vmax.f32 %v1508, 0.0
  %v1517 = vmax.f32 %v1509, 0.0
  %v1518 = vmax.f32 %v1510, 0.0
  %v1519 = vmax.f32 %v1511, 0.0
  %v1520 = vmax.f32 %v1512, 0.0
  %v1521 = vmax.f32 %v1513, 0.0
  %v1522 = vadd.f32 %v1044, %v1514
  %v1523 = vadd.f32 %v1045, %v1515
  %v1524 = vadd.f32 %v1046, %v1516
  %v1525 = vadd.f32 %v1047, %v1517
  %v1526 = vadd.f32 %v1048, %v1518
  %v1527 = vadd.f32 %v1049, %v1519
  %v1528 = vadd.f32 %v1050, %v1520
  %v1529 = vadd.f32 %v1051, %v1521
  %v1530 = vmul.f32 %v1522, 0.5
  %v1531 = vmul.f32 %v1523, 0.5
  %v1532 = vmul.f32 %v1524, 0.5
  %v1533 = vmul.f32 %v1525, 0.5
  %v1534 = vmul.f32 %v1526, 0.5
  %v1535 = vmul.f32 %v1527, 0.5
  %v1536 = vmul.f32 %v1528, 0.5
  %v1537 = vmul.f32 %v1529, 0.5
  %v1538 = vpack.c.bf16 %v1531, %v1530
  %v1539 = vpack.c.bf16 %v1533, %v1532
  %v1540 = vpack.c.bf16 %v1535, %v1534
  %v1541 = vpack.c.bf16 %v1537, %v1536
  %s1542 = scalar_lea.vmem %s2, 384
  %v1543 = vld [vmem:[%s1542] sm:$0xf]
  %v1544 = vld [vmem:[%s1542 + $0x4] sm:$0xf]
  %v1545 = vld [vmem:[%s1542 + $0x8] sm:$0xf]
  %v1546 = vld [vmem:[%s1542 + $0xc] sm:$0xf]
  %v1547 = vld [vmem:[%s1542 + $0x10] sm:$0xf]
  %v1548 = vld [vmem:[%s1542 + $0x14] sm:$0xf]
  %v1549 = vld [vmem:[%s1542 + $0x18] sm:$0xf]
  %v1550 = vld [vmem:[%s1542 + $0x1c] sm:$0xf]
  %v1551 = vld [vmem:[%s1542 + $0x20] sm:$0xf]
  %v1552 = vld [vmem:[%s1542 + $0x24] sm:$0xf]
  %v1553 = vld [vmem:[%s1542 + $0x28] sm:$0xf]
  %v1554 = vld [vmem:[%s1542 + $0x2c] sm:$0xf]
  %v1555 = vld [vmem:[%s1542 + $0x30] sm:$0xf]
  %v1556 = vld [vmem:[%s1542 + $0x34] sm:$0xf]
  %v1557 = vld [vmem:[%s1542 + $0x38] sm:$0xf]
  %v1558 = vld [vmem:[%s1542 + $0x3c] sm:$0xf]
  %v1575 = vunpack.c.l.b16 %v1543
  %v1576 = vunpack.c.l.b16 %v1544
  %v1577 = vunpack.c.l.b16 %v1545
  %v1578 = vunpack.c.l.b16 %v1546
  %v1579 = vunpack.c.l.b16 %v1547
  %v1580 = vunpack.c.l.b16 %v1548
  %v1581 = vunpack.c.l.b16 %v1549
  %v1582 = vunpack.c.l.b16 %v1550
  %v1583 = vunpack.c.l.b16 %v1551
  %v1584 = vunpack.c.l.b16 %v1552
  %v1585 = vunpack.c.l.b16 %v1553
  %v1586 = vunpack.c.l.b16 %v1554
  %v1587 = vunpack.c.l.b16 %v1555
  %v1588 = vunpack.c.l.b16 %v1556
  %v1589 = vunpack.c.l.b16 %v1557
  %v1590 = vunpack.c.l.b16 %v1558
  %v1591 = vpack.c.b16 %v1576, %v1575
  %v1592 = vpack.c.b16 %v1578, %v1577
  %v1593 = vpack.c.b16 %v1580, %v1579
  %v1594 = vpack.c.b16 %v1582, %v1581
  %v1595 = vpack.c.b16 %v1584, %v1583
  %v1596 = vpack.c.b16 %v1586, %v1585
  %v1597 = vpack.c.b16 %v1588, %v1587
  %v1598 = vpack.c.b16 %v1590, %v1589
  %1607 = vmatprep.subr.bf16.mxu0 0
  %1608 = vmatpush1.bf16.msra.mxu0 %v1591
  %1609 = vmatprep.subr.bf16.mxu0 0
  %1610 = vmatpush1.bf16.msra.mxu0 %v1592
  %1611 = vmatprep.subr.bf16.mxu0 0
  %1612 = vmatpush1.bf16.msra.mxu0 %v1593
  %1613 = vmatprep.subr.bf16.mxu0 0
  %1614 = vmatpush1.bf16.msra.mxu0 %v1594
  %1615 = vmatprep.subr.bf16.mxu0 0
  %1616 = vmatpush1.bf16.msra.mxu0 %v1595
  %1617 = vmatprep.subr.bf16.mxu0 0
  %1618 = vmatpush1.bf16.msra.mxu0 %v1596
  %1619 = vmatprep.subr.bf16.mxu0 0
  %1620 = vmatpush1.bf16.msra.mxu0 %v1597
  %1621 = vmatprep.subr.bf16.mxu0 0
  %1622 = vmatpush1.bf16.msra.mxu0 %v1598
  %1623 = vmatprep.subr.bf16.mxu0 0
  %1624 = vmatpush1.bf16.msra.mxu0 0
  %1625 = vmatprep.subr.bf16.mxu0 0
  %1626 = vmatpush1.bf16.msra.mxu0 0
  %1627 = vmatprep.subr.bf16.mxu0 0
  %1628 = vmatpush1.bf16.msra.mxu0 0
  %1629 = vmatprep.subr.bf16.mxu0 0
  %1630 = vmatpush1.bf16.msra.mxu0 0
  %1631 = vmatprep.subr.bf16.mxu0 0
  %1632 = vmatpush1.bf16.msra.mxu0 0
  %1633 = vmatprep.subr.bf16.mxu0 0
  %1634 = vmatpush1.bf16.msra.mxu0 0
  %1635 = vmatprep.subr.bf16.mxu0 0
  %1636 = vmatpush1.bf16.msra.mxu0 0
  %1637 = vmatprep.subr.bf16.mxu0 0
  %1638 = vmatpush1.bf16.msra.mxu0 0
  %1639 = vmatprep.mubr.bf16.mxu0 0
  %1640 = vmatmul.mubr.bf16.gmra.mrb[0].mxu0 %v1538
  %v1641 = vpop.f32.mrb[0].mxu0
  %v1642 = vadd.f32 0.0, %v1641
  %v1643 = vpop.f32.mrb[0].mxu0
  %v1644 = vpop.f32.mrb[0].mxu0
  %v1645 = vadd.f32 0.0, %v1644
  %v1646 = vpop.f32.mrb[0].mxu0
  %1647 = vmatprep.mubr.bf16.mxu0 0
  %1648 = vmatmul.mubr.bf16.gmra.mrb[0].mxu0 %v1539
  %v1649 = vpop.f32.mrb[0].mxu0
  %v1650 = vadd.f32 0.0, %v1649
  %v1651 = vpop.f32.mrb[0].mxu0
  %v1652 = vpop.f32.mrb[0].mxu0
  %v1653 = vadd.f32 0.0, %v1652
  %v1654 = vpop.f32.mrb[0].mxu0
  %1655 = vmatprep.mubr.bf16.mxu0 0
  %1656 = vmatmul.mubr.bf16.gmra.mrb[0].mxu0 %v1540
  %v1657 = vpop.f32.mrb[0].mxu0
  %v1658 = vadd.f32 0.0, %v1657
  %v1659 = vpop.f32.mrb[0].mxu0
  %v1660 = vpop.f32.mrb[0].mxu0
  %v1661 = vadd.f32 0.0, %v1660
  %v1662 = vpop.f32.mrb[0].mxu0
  %1663 = vmatprep.mubr.bf16.mxu0 0
  %1664 = vmatmul.mubr.bf16.gmra.mrb[0].mxu0 %v1541
  %v1665 = vpop.f32.mrb[0].mxu0
  %v1666 = vadd.f32 0.0, %v1665
  %v1667 = vpop.f32.mrb[0].mxu0
  %v1668 = vpop.f32.mrb[0].mxu0
  %v1669 = vadd.f32 0.0, %v1668
  %v1670 = vpop.f32.mrb[0].mxu0
  %1671 = vdwg.mxu0
  %v1672 = vpack.c.bf16 %v1645, %v1642
  %v1673 = vpack.c.bf16 %v1653, %v1650
  %v1674 = vpack.c.bf16 %v1661, %v1658
  %v1675 = vpack.c.bf16 %v1669, %v1666
  %1676 = vmatprep.subr.bf16.mxu0 0
  %1677 = vmatpush1.bf16.msra.mxu0 %v1672
  %1678 = vmatprep.subr.bf16.mxu0 0
  %1679 = vmatpush1.bf16.msra.mxu0 %v1673
  %1680 = vmatprep.subr.bf16.mxu0 0
  %1681 = vmatpush1.bf16.msra.mxu0 %v1674
  %1682 = vmatprep.subr.bf16.mxu0 0
  %1683 = vmatpush1.bf16.msra.mxu0 %v1675
  %1684 = vmatprep.subr.bf16.mxu0 0
  %1685 = vmatpush1.bf16.msra.mxu0 0
  %1686 = vmatprep.subr.bf16.mxu0 0
  %1687 = vmatpush1.bf16.msra.mxu0 0
  %1688 = vmatprep.subr.bf16.mxu0 0
  %1689 = vmatpush1.bf16.msra.mxu0 0
  %1690 = vmatprep.subr.bf16.mxu0 0
  %1691 = vmatpush1.bf16.msra.mxu0 0
  %1692 = vmatprep.subr.bf16.mxu0 0
  %1693 = vmatpush1.bf16.msra.mxu0 0
  %1694 = vmatprep.subr.bf16.mxu0 0
  %1695 = vmatpush1.bf16.msra.mxu0 0
  %1696 = vmatprep.subr.bf16.mxu0 0
  %1697 = vmatpush1.bf16.msra.mxu0 0
  %1698 = vmatprep.subr.bf16.mxu0 0
  %1699 = vmatpush1.bf16.msra.mxu0 0
  %1700 = vmatprep.subr.bf16.mxu0 0
  %1701 = vmatpush1.bf16.msra.mxu0 0
  %1702 = vmatprep.subr.bf16.mxu0 0
  %1703 = vmatpush1.bf16.msra.mxu0 0
  %1704 = vmatprep.subr.bf16.mxu0 0
  %1705 = vmatpush1.bf16.msra.mxu0 0
  %1706 = vmatprep.subr.bf16.mxu0 0
  %1707 = vmatpush1.bf16.msra.mxu0 0
  %1708 = vmatprep.mubr.bf16.mxu0 0
  %1709 = vmatmul.mubr.bf16.gmra.mrb[0].mxu0 %v200
  %v1710 = vpop.f32.mrb[0].mxu0
  %v1711 = vadd.f32 0.0, %v1710
  %v1712 = vpop.f32.mrb[0].mxu0
  %v1713 = vpop.f32.mrb[0].mxu0
  %v1714 = vadd.f32 0.0, %v1713
  %v1715 = vpop.f32.mrb[0].mxu0
  %1716 = vmatprep.mubr.bf16.mxu0 0
  %1717 = vmatmul.mubr.bf16.gmra.mrb[0].mxu0 %v203
  %v1718 = vpop.f32.mrb[0].mxu0
  %v1719 = vadd.f32 0.0, %v1718
  %v1720 = vpop.f32.mrb[0].mxu0
  %v1721 = vpop.f32.mrb[0].mxu0
  %v1722 = vadd.f32 0.0, %v1721
  %v1723 = vpop.f32.mrb[0].mxu0
  %1724 = vmatprep.mubr.bf16.mxu0 0
  %1725 = vmatmul.mubr.bf16.gmra.mrb[0].mxu0 %v206
  %v1726 = vpop.f32.mrb[0].mxu0
  %v1727 = vadd.f32 0.0, %v1726
  %v1728 = vpop.f32.mrb[0].mxu0
  %v1729 = vpop.f32.mrb[0].mxu0
  %v1730 = vadd.f32 0.0, %v1729
  %v1731 = vpop.f32.mrb[0].mxu0
  %1732 = vmatprep.mubr.bf16.mxu0 0
  %1733 = vmatmul.mubr.bf16.gmra.mrb[0].mxu0 %v209
  %v1734 = vpop.f32.mrb[0].mxu0
  %v1735 = vadd.f32 0.0, %v1734
  %v1736 = vpop.f32.mrb[0].mxu0
  %v1737 = vpop.f32.mrb[0].mxu0
  %v1738 = vadd.f32 0.0, %v1737
  %v1739 = vpop.f32.mrb[0].mxu0
  %1740 = vdwg.mxu0
  %v1741 = vsel %vm22, %v1711, %v1642
  %v1742 = vsel %vm22, %v1714, %v1645
  %v1743 = vsel %vm22, %v1719, %v1650
  %v1744 = vsel %vm22, %v1722, %v1653
  %v1745 = vsel %vm22, %v1727, %v1658
  %v1746 = vsel %vm22, %v1730, %v1661
  %v1747 = vsel %vm22, %v1735, %v1666
  %v1748 = vsel %vm22, %v1738, %v1669
  %s1749 = scalar_lea.vmem %s3, 6
  %v1750 = vld [vmem:[%s1749] sm:$0x1]
  %v1752 = vlaneseq
  %v1753 = vshrl.u32 %v1752, 7
  %v1754 = vsub.s32 0, %v1753
  %v1755 = vrot.slane %v1750, %v1754
  %v1757 = vadd.f32 %v1741, %v1755
  %v1758 = vadd.f32 %v1742, %v1755
  %v1759 = vadd.f32 %v1743, %v1755
  %v1760 = vadd.f32 %v1744, %v1755
  %v1761 = vadd.f32 %v1745, %v1755
  %v1762 = vadd.f32 %v1746, %v1755
  %v1763 = vadd.f32 %v1747, %v1755
  %v1764 = vadd.f32 %v1748, %v1755
  %v1765 = vmax.f32 %v1757, 0.0
  %v1766 = vmax.f32 %v1758, 0.0
  %v1767 = vmax.f32 %v1759, 0.0
  %v1768 = vmax.f32 %v1760, 0.0
  %v1769 = vmax.f32 %v1761, 0.0
  %v1770 = vmax.f32 %v1762, 0.0
  %v1771 = vmax.f32 %v1763, 0.0
  %v1772 = vmax.f32 %v1764, 0.0
  %v1773 = vpack.c.bf16 %v1766, %v1765
  %v1774 = vpack.c.bf16 %v1768, %v1767
  %v1775 = vpack.c.bf16 %v1770, %v1769
  %v1776 = vpack.c.bf16 %v1772, %v1771
  %s1777 = scalar_lea.vmem %s2, 448
  %v1778 = vld [vmem:[%s1777] sm:$0xf]
  %v1779 = vld [vmem:[%s1777 + $0x4] sm:$0xf]
  %v1780 = vld [vmem:[%s1777 + $0x8] sm:$0xf]
  %v1781 = vld [vmem:[%s1777 + $0xc] sm:$0xf]
  %v1782 = vld [vmem:[%s1777 + $0x10] sm:$0xf]
  %v1783 = vld [vmem:[%s1777 + $0x14] sm:$0xf]
  %v1784 = vld [vmem:[%s1777 + $0x18] sm:$0xf]
  %v1785 = vld [vmem:[%s1777 + $0x1c] sm:$0xf]
  %v1786 = vld [vmem:[%s1777 + $0x20] sm:$0xf]
  %v1787 = vld [vmem:[%s1777 + $0x24] sm:$0xf]
  %v1788 = vld [vmem:[%s1777 + $0x28] sm:$0xf]
  %v1789 = vld [vmem:[%s1777 + $0x2c] sm:$0xf]
  %v1790 = vld [vmem:[%s1777 + $0x30] sm:$0xf]
  %v1791 = vld [vmem:[%s1777 + $0x34] sm:$0xf]
  %v1792 = vld [vmem:[%s1777 + $0x38] sm:$0xf]
  %v1793 = vld [vmem:[%s1777 + $0x3c] sm:$0xf]
  %v1810 = vunpack.c.l.b16 %v1778
  %v1811 = vunpack.c.l.b16 %v1779
  %v1812 = vunpack.c.l.b16 %v1780
  %v1813 = vunpack.c.l.b16 %v1781
  %v1814 = vunpack.c.l.b16 %v1782
  %v1815 = vunpack.c.l.b16 %v1783
  %v1816 = vunpack.c.l.b16 %v1784
  %v1817 = vunpack.c.l.b16 %v1785
  %v1818 = vunpack.c.l.b16 %v1786
  %v1819 = vunpack.c.l.b16 %v1787
  %v1820 = vunpack.c.l.b16 %v1788
  %v1821 = vunpack.c.l.b16 %v1789
  %v1822 = vunpack.c.l.b16 %v1790
  %v1823 = vunpack.c.l.b16 %v1791
  %v1824 = vunpack.c.l.b16 %v1792
  %v1825 = vunpack.c.l.b16 %v1793
  %v1826 = vpack.c.b16 %v1811, %v1810
  %v1827 = vpack.c.b16 %v1813, %v1812
  %v1828 = vpack.c.b16 %v1815, %v1814
  %v1829 = vpack.c.b16 %v1817, %v1816
  %v1830 = vpack.c.b16 %v1819, %v1818
  %v1831 = vpack.c.b16 %v1821, %v1820
  %v1832 = vpack.c.b16 %v1823, %v1822
  %v1833 = vpack.c.b16 %v1825, %v1824
  %1842 = vmatprep.subr.bf16.mxu0 0
  %1843 = vmatpush1.bf16.msra.mxu0 %v1826
  %1844 = vmatprep.subr.bf16.mxu0 0
  %1845 = vmatpush1.bf16.msra.mxu0 %v1827
  %1846 = vmatprep.subr.bf16.mxu0 0
  %1847 = vmatpush1.bf16.msra.mxu0 %v1828
  %1848 = vmatprep.subr.bf16.mxu0 0
  %1849 = vmatpush1.bf16.msra.mxu0 %v1829
  %1850 = vmatprep.subr.bf16.mxu0 0
  %1851 = vmatpush1.bf16.msra.mxu0 %v1830
  %1852 = vmatprep.subr.bf16.mxu0 0
  %1853 = vmatpush1.bf16.msra.mxu0 %v1831
  %1854 = vmatprep.subr.bf16.mxu0 0
  %1855 = vmatpush1.bf16.msra.mxu0 %v1832
  %1856 = vmatprep.subr.bf16.mxu0 0
  %1857 = vmatpush1.bf16.msra.mxu0 %v1833
  %1858 = vmatprep.subr.bf16.mxu0 0
  %1859 = vmatpush1.bf16.msra.mxu0 0
  %1860 = vmatprep.subr.bf16.mxu0 0
  %1861 = vmatpush1.bf16.msra.mxu0 0
  %1862 = vmatprep.subr.bf16.mxu0 0
  %1863 = vmatpush1.bf16.msra.mxu0 0
  %1864 = vmatprep.subr.bf16.mxu0 0
  %1865 = vmatpush1.bf16.msra.mxu0 0
  %1866 = vmatprep.subr.bf16.mxu0 0
  %1867 = vmatpush1.bf16.msra.mxu0 0
  %1868 = vmatprep.subr.bf16.mxu0 0
  %1869 = vmatpush1.bf16.msra.mxu0 0
  %1870 = vmatprep.subr.bf16.mxu0 0
  %1871 = vmatpush1.bf16.msra.mxu0 0
  %1872 = vmatprep.subr.bf16.mxu0 0
  %1873 = vmatpush1.bf16.msra.mxu0 0
  %1874 = vmatprep.mubr.bf16.mxu0 0
  %1875 = vmatmul.mubr.bf16.gmra.mrb[0].mxu0 %v1773
  %v1876 = vpop.f32.mrb[0].mxu0
  %v1877 = vadd.f32 0.0, %v1876
  %v1878 = vpop.f32.mrb[0].mxu0
  %v1879 = vpop.f32.mrb[0].mxu0
  %v1880 = vadd.f32 0.0, %v1879
  %v1881 = vpop.f32.mrb[0].mxu0
  %1882 = vmatprep.mubr.bf16.mxu0 0
  %1883 = vmatmul.mubr.bf16.gmra.mrb[0].mxu0 %v1774
  %v1884 = vpop.f32.mrb[0].mxu0
  %v1885 = vadd.f32 0.0, %v1884
  %v1886 = vpop.f32.mrb[0].mxu0
  %v1887 = vpop.f32.mrb[0].mxu0
  %v1888 = vadd.f32 0.0, %v1887
  %v1889 = vpop.f32.mrb[0].mxu0
  %1890 = vmatprep.mubr.bf16.mxu0 0
  %1891 = vmatmul.mubr.bf16.gmra.mrb[0].mxu0 %v1775
  %v1892 = vpop.f32.mrb[0].mxu0
  %v1893 = vadd.f32 0.0, %v1892
  %v1894 = vpop.f32.mrb[0].mxu0
  %v1895 = vpop.f32.mrb[0].mxu0
  %v1896 = vadd.f32 0.0, %v1895
  %v1897 = vpop.f32.mrb[0].mxu0
  %1898 = vmatprep.mubr.bf16.mxu0 0
  %1899 = vmatmul.mubr.bf16.gmra.mrb[0].mxu0 %v1776
  %v1900 = vpop.f32.mrb[0].mxu0
  %v1901 = vadd.f32 0.0, %v1900
  %v1902 = vpop.f32.mrb[0].mxu0
  %v1903 = vpop.f32.mrb[0].mxu0
  %v1904 = vadd.f32 0.0, %v1903
  %v1905 = vpop.f32.mrb[0].mxu0
  %1906 = vdwg.mxu0
  %v1907 = vpack.c.bf16 %v1880, %v1877
  %v1908 = vpack.c.bf16 %v1888, %v1885
  %v1909 = vpack.c.bf16 %v1896, %v1893
  %v1910 = vpack.c.bf16 %v1904, %v1901
  %1911 = vmatprep.subr.bf16.mxu0 0
  %1912 = vmatpush1.bf16.msra.mxu0 %v1907
  %1913 = vmatprep.subr.bf16.mxu0 0
  %1914 = vmatpush1.bf16.msra.mxu0 %v1908
  %1915 = vmatprep.subr.bf16.mxu0 0
  %1916 = vmatpush1.bf16.msra.mxu0 %v1909
  %1917 = vmatprep.subr.bf16.mxu0 0
  %1918 = vmatpush1.bf16.msra.mxu0 %v1910
  %1919 = vmatprep.subr.bf16.mxu0 0
  %1920 = vmatpush1.bf16.msra.mxu0 0
  %1921 = vmatprep.subr.bf16.mxu0 0
  %1922 = vmatpush1.bf16.msra.mxu0 0
  %1923 = vmatprep.subr.bf16.mxu0 0
  %1924 = vmatpush1.bf16.msra.mxu0 0
  %1925 = vmatprep.subr.bf16.mxu0 0
  %1926 = vmatpush1.bf16.msra.mxu0 0
  %1927 = vmatprep.subr.bf16.mxu0 0
  %1928 = vmatpush1.bf16.msra.mxu0 0
  %1929 = vmatprep.subr.bf16.mxu0 0
  %1930 = vmatpush1.bf16.msra.mxu0 0
  %1931 = vmatprep.subr.bf16.mxu0 0
  %1932 = vmatpush1.bf16.msra.mxu0 0
  %1933 = vmatprep.subr.bf16.mxu0 0
  %1934 = vmatpush1.bf16.msra.mxu0 0
  %1935 = vmatprep.subr.bf16.mxu0 0
  %1936 = vmatpush1.bf16.msra.mxu0 0
  %1937 = vmatprep.subr.bf16.mxu0 0
  %1938 = vmatpush1.bf16.msra.mxu0 0
  %1939 = vmatprep.subr.bf16.mxu0 0
  %1940 = vmatpush1.bf16.msra.mxu0 0
  %1941 = vmatprep.subr.bf16.mxu0 0
  %1942 = vmatpush1.bf16.msra.mxu0 0
  %1943 = vmatprep.mubr.bf16.mxu0 0
  %1944 = vmatmul.mubr.bf16.gmra.mrb[0].mxu0 %v200
  %v1945 = vpop.f32.mrb[0].mxu0
  %v1946 = vadd.f32 0.0, %v1945
  %v1947 = vpop.f32.mrb[0].mxu0
  %v1948 = vpop.f32.mrb[0].mxu0
  %v1949 = vadd.f32 0.0, %v1948
  %v1950 = vpop.f32.mrb[0].mxu0
  %1951 = vmatprep.mubr.bf16.mxu0 0
  %1952 = vmatmul.mubr.bf16.gmra.mrb[0].mxu0 %v203
  %v1953 = vpop.f32.mrb[0].mxu0
  %v1954 = vadd.f32 0.0, %v1953
  %v1955 = vpop.f32.mrb[0].mxu0
  %v1956 = vpop.f32.mrb[0].mxu0
  %v1957 = vadd.f32 0.0, %v1956
  %v1958 = vpop.f32.mrb[0].mxu0
  %1959 = vmatprep.mubr.bf16.mxu0 0
  %1960 = vmatmul.mubr.bf16.gmra.mrb[0].mxu0 %v206
  %v1961 = vpop.f32.mrb[0].mxu0
  %v1962 = vadd.f32 0.0, %v1961
  %v1963 = vpop.f32.mrb[0].mxu0
  %v1964 = vpop.f32.mrb[0].mxu0
  %v1965 = vadd.f32 0.0, %v1964
  %v1966 = vpop.f32.mrb[0].mxu0
  %1967 = vmatprep.mubr.bf16.mxu0 0
  %1968 = vmatmul.mubr.bf16.gmra.mrb[0].mxu0 %v209
  %v1969 = vpop.f32.mrb[0].mxu0
  %v1970 = vadd.f32 0.0, %v1969
  %v1971 = vpop.f32.mrb[0].mxu0
  %v1972 = vpop.f32.mrb[0].mxu0
  %v1973 = vadd.f32 0.0, %v1972
  %v1974 = vpop.f32.mrb[0].mxu0
  %1975 = vdwg.mxu0
  %v1976 = vsel %vm22, %v1946, %v1877
  %v1977 = vsel %vm22, %v1949, %v1880
  %v1978 = vsel %vm22, %v1954, %v1885
  %v1979 = vsel %vm22, %v1957, %v1888
  %v1980 = vsel %vm22, %v1962, %v1893
  %v1981 = vsel %vm22, %v1965, %v1896
  %v1982 = vsel %vm22, %v1970, %v1901
  %v1983 = vsel %vm22, %v1973, %v1904
  %s1984 = scalar_lea.vmem %s3, 7
  %v1985 = vld [vmem:[%s1984] sm:$0x1]
  %v1987 = vlaneseq
  %v1988 = vshrl.u32 %v1987, 7
  %v1989 = vsub.s32 0, %v1988
  %v1990 = vrot.slane %v1985, %v1989
  %v1992 = vadd.f32 %v1976, %v1990
  %v1993 = vadd.f32 %v1977, %v1990
  %v1994 = vadd.f32 %v1978, %v1990
  %v1995 = vadd.f32 %v1979, %v1990
  %v1996 = vadd.f32 %v1980, %v1990
  %v1997 = vadd.f32 %v1981, %v1990
  %v1998 = vadd.f32 %v1982, %v1990
  %v1999 = vadd.f32 %v1983, %v1990
  %v2000 = vmax.f32 %v1992, 0.0
  %v2001 = vmax.f32 %v1993, 0.0
  %v2002 = vmax.f32 %v1994, 0.0
  %v2003 = vmax.f32 %v1995, 0.0
  %v2004 = vmax.f32 %v1996, 0.0
  %v2005 = vmax.f32 %v1997, 0.0
  %v2006 = vmax.f32 %v1998, 0.0
  %v2007 = vmax.f32 %v1999, 0.0
  %v2008 = vadd.f32 %v1530, %v2000
  %v2009 = vadd.f32 %v1531, %v2001
  %v2010 = vadd.f32 %v1532, %v2002
  %v2011 = vadd.f32 %v1533, %v2003
  %v2012 = vadd.f32 %v1534, %v2004
  %v2013 = vadd.f32 %v1535, %v2005
  %v2014 = vadd.f32 %v1536, %v2006
  %v2015 = vadd.f32 %v1537, %v2007
  %v2016 = vmul.f32 %v2008, 0.5
  %v2017 = vmul.f32 %v2009, 0.5
  %v2018 = vmul.f32 %v2010, 0.5
  %v2019 = vmul.f32 %v2011, 0.5
  %v2020 = vmul.f32 %v2012, 0.5
  %v2021 = vmul.f32 %v2013, 0.5
  %v2022 = vmul.f32 %v2014, 0.5
  %v2023 = vmul.f32 %v2015, 0.5
  %v2024 = vpack.c.bf16 %v2017, %v2016
  %v2025 = vpack.c.bf16 %v2019, %v2018
  %v2026 = vpack.c.bf16 %v2021, %v2020
  %v2027 = vpack.c.bf16 %v2023, %v2022
  %s2028 = scalar_lea.vmem %s2, 512
  %v2029 = vld [vmem:[%s2028] sm:$0xf]
  %v2030 = vld [vmem:[%s2028 + $0x4] sm:$0xf]
  %v2031 = vld [vmem:[%s2028 + $0x8] sm:$0xf]
  %v2032 = vld [vmem:[%s2028 + $0xc] sm:$0xf]
  %v2033 = vld [vmem:[%s2028 + $0x10] sm:$0xf]
  %v2034 = vld [vmem:[%s2028 + $0x14] sm:$0xf]
  %v2035 = vld [vmem:[%s2028 + $0x18] sm:$0xf]
  %v2036 = vld [vmem:[%s2028 + $0x1c] sm:$0xf]
  %v2037 = vld [vmem:[%s2028 + $0x20] sm:$0xf]
  %v2038 = vld [vmem:[%s2028 + $0x24] sm:$0xf]
  %v2039 = vld [vmem:[%s2028 + $0x28] sm:$0xf]
  %v2040 = vld [vmem:[%s2028 + $0x2c] sm:$0xf]
  %v2041 = vld [vmem:[%s2028 + $0x30] sm:$0xf]
  %v2042 = vld [vmem:[%s2028 + $0x34] sm:$0xf]
  %v2043 = vld [vmem:[%s2028 + $0x38] sm:$0xf]
  %v2044 = vld [vmem:[%s2028 + $0x3c] sm:$0xf]
  %v2061 = vunpack.c.l.b16 %v2029
  %v2062 = vunpack.c.l.b16 %v2030
  %v2063 = vunpack.c.l.b16 %v2031
  %v2064 = vunpack.c.l.b16 %v2032
  %v2065 = vunpack.c.l.b16 %v2033
  %v2066 = vunpack.c.l.b16 %v2034
  %v2067 = vunpack.c.l.b16 %v2035
  %v2068 = vunpack.c.l.b16 %v2036
  %v2069 = vunpack.c.l.b16 %v2037
  %v2070 = vunpack.c.l.b16 %v2038
  %v2071 = vunpack.c.l.b16 %v2039
  %v2072 = vunpack.c.l.b16 %v2040
  %v2073 = vunpack.c.l.b16 %v2041
  %v2074 = vunpack.c.l.b16 %v2042
  %v2075 = vunpack.c.l.b16 %v2043
  %v2076 = vunpack.c.l.b16 %v2044
  %v2077 = vpack.c.b16 %v2062, %v2061
  %v2078 = vpack.c.b16 %v2064, %v2063
  %v2079 = vpack.c.b16 %v2066, %v2065
  %v2080 = vpack.c.b16 %v2068, %v2067
  %v2081 = vpack.c.b16 %v2070, %v2069
  %v2082 = vpack.c.b16 %v2072, %v2071
  %v2083 = vpack.c.b16 %v2074, %v2073
  %v2084 = vpack.c.b16 %v2076, %v2075
  %2093 = vmatprep.subr.bf16.mxu0 0
  %2094 = vmatpush1.bf16.msra.mxu0 %v2077
  %2095 = vmatprep.subr.bf16.mxu0 0
  %2096 = vmatpush1.bf16.msra.mxu0 %v2078
  %2097 = vmatprep.subr.bf16.mxu0 0
  %2098 = vmatpush1.bf16.msra.mxu0 %v2079
  %2099 = vmatprep.subr.bf16.mxu0 0
  %2100 = vmatpush1.bf16.msra.mxu0 %v2080
  %2101 = vmatprep.subr.bf16.mxu0 0
  %2102 = vmatpush1.bf16.msra.mxu0 %v2081
  %2103 = vmatprep.subr.bf16.mxu0 0
  %2104 = vmatpush1.bf16.msra.mxu0 %v2082
  %2105 = vmatprep.subr.bf16.mxu0 0
  %2106 = vmatpush1.bf16.msra.mxu0 %v2083
  %2107 = vmatprep.subr.bf16.mxu0 0
  %2108 = vmatpush1.bf16.msra.mxu0 %v2084
  %2109 = vmatprep.subr.bf16.mxu0 0
  %2110 = vmatpush1.bf16.msra.mxu0 0
  %2111 = vmatprep.subr.bf16.mxu0 0
  %2112 = vmatpush1.bf16.msra.mxu0 0
  %2113 = vmatprep.subr.bf16.mxu0 0
  %2114 = vmatpush1.bf16.msra.mxu0 0
  %2115 = vmatprep.subr.bf16.mxu0 0
  %2116 = vmatpush1.bf16.msra.mxu0 0
  %2117 = vmatprep.subr.bf16.mxu0 0
  %2118 = vmatpush1.bf16.msra.mxu0 0
  %2119 = vmatprep.subr.bf16.mxu0 0
  %2120 = vmatpush1.bf16.msra.mxu0 0
  %2121 = vmatprep.subr.bf16.mxu0 0
  %2122 = vmatpush1.bf16.msra.mxu0 0
  %2123 = vmatprep.subr.bf16.mxu0 0
  %2124 = vmatpush1.bf16.msra.mxu0 0
  %2125 = vmatprep.mubr.bf16.mxu0 0
  %2126 = vmatmul.mubr.bf16.gmra.mrb[0].mxu0 %v2024
  %v2127 = vpop.f32.mrb[0].mxu0
  %v2128 = vadd.f32 0.0, %v2127
  %v2129 = vpop.f32.mrb[0].mxu0
  %v2130 = vpop.f32.mrb[0].mxu0
  %v2131 = vadd.f32 0.0, %v2130
  %v2132 = vpop.f32.mrb[0].mxu0
  %2133 = vmatprep.mubr.bf16.mxu0 0
  %2134 = vmatmul.mubr.bf16.gmra.mrb[0].mxu0 %v2025
  %v2135 = vpop.f32.mrb[0].mxu0
  %v2136 = vadd.f32 0.0, %v2135
  %v2137 = vpop.f32.mrb[0].mxu0
  %v2138 = vpop.f32.mrb[0].mxu0
  %v2139 = vadd.f32 0.0, %v2138
  %v2140 = vpop.f32.mrb[0].mxu0
  %2141 = vmatprep.mubr.bf16.mxu0 0
  %2142 = vmatmul.mubr.bf16.gmra.mrb[0].mxu0 %v2026
  %v2143 = vpop.f32.mrb[0].mxu0
  %v2144 = vadd.f32 0.0, %v2143
  %v2145 = vpop.f32.mrb[0].mxu0
  %v2146 = vpop.f32.mrb[0].mxu0
  %v2147 = vadd.f32 0.0, %v2146
  %v2148 = vpop.f32.mrb[0].mxu0
  %2149 = vmatprep.mubr.bf16.mxu0 0
  %2150 = vmatmul.mubr.bf16.gmra.mrb[0].mxu0 %v2027
  %v2151 = vpop.f32.mrb[0].mxu0
  %v2152 = vadd.f32 0.0, %v2151
  %v2153 = vpop.f32.mrb[0].mxu0
  %v2154 = vpop.f32.mrb[0].mxu0
  %v2155 = vadd.f32 0.0, %v2154
  %v2156 = vpop.f32.mrb[0].mxu0
  %2157 = vdwg.mxu0
  %v2158 = vpack.c.bf16 %v2131, %v2128
  %v2159 = vpack.c.bf16 %v2139, %v2136
  %v2160 = vpack.c.bf16 %v2147, %v2144
  %v2161 = vpack.c.bf16 %v2155, %v2152
  %2162 = vmatprep.subr.bf16.mxu0 0
  %2163 = vmatpush1.bf16.msra.mxu0 %v2158
  %2164 = vmatprep.subr.bf16.mxu0 0
  %2165 = vmatpush1.bf16.msra.mxu0 %v2159
  %2166 = vmatprep.subr.bf16.mxu0 0
  %2167 = vmatpush1.bf16.msra.mxu0 %v2160
  %2168 = vmatprep.subr.bf16.mxu0 0
  %2169 = vmatpush1.bf16.msra.mxu0 %v2161
  %2170 = vmatprep.subr.bf16.mxu0 0
  %2171 = vmatpush1.bf16.msra.mxu0 0
  %2172 = vmatprep.subr.bf16.mxu0 0
  %2173 = vmatpush1.bf16.msra.mxu0 0
  %2174 = vmatprep.subr.bf16.mxu0 0
  %2175 = vmatpush1.bf16.msra.mxu0 0
  %2176 = vmatprep.subr.bf16.mxu0 0
  %2177 = vmatpush1.bf16.msra.mxu0 0
  %2178 = vmatprep.subr.bf16.mxu0 0
  %2179 = vmatpush1.bf16.msra.mxu0 0
  %2180 = vmatprep.subr.bf16.mxu0 0
  %2181 = vmatpush1.bf16.msra.mxu0 0
  %2182 = vmatprep.subr.bf16.mxu0 0
  %2183 = vmatpush1.bf16.msra.mxu0 0
  %2184 = vmatprep.subr.bf16.mxu0 0
  %2185 = vmatpush1.bf16.msra.mxu0 0
  %2186 = vmatprep.subr.bf16.mxu0 0
  %2187 = vmatpush1.bf16.msra.mxu0 0
  %2188 = vmatprep.subr.bf16.mxu0 0
  %2189 = vmatpush1.bf16.msra.mxu0 0
  %2190 = vmatprep.subr.bf16.mxu0 0
  %2191 = vmatpush1.bf16.msra.mxu0 0
  %2192 = vmatprep.subr.bf16.mxu0 0
  %2193 = vmatpush1.bf16.msra.mxu0 0
  %2194 = vmatprep.mubr.bf16.mxu0 0
  %2195 = vmatmul.mubr.bf16.gmra.mrb[0].mxu0 %v200
  %v2196 = vpop.f32.mrb[0].mxu0
  %v2197 = vadd.f32 0.0, %v2196
  %v2198 = vpop.f32.mrb[0].mxu0
  %v2199 = vpop.f32.mrb[0].mxu0
  %v2200 = vadd.f32 0.0, %v2199
  %v2201 = vpop.f32.mrb[0].mxu0
  %2202 = vmatprep.mubr.bf16.mxu0 0
  %2203 = vmatmul.mubr.bf16.gmra.mrb[0].mxu0 %v203
  %v2204 = vpop.f32.mrb[0].mxu0
  %v2205 = vadd.f32 0.0, %v2204
  %v2206 = vpop.f32.mrb[0].mxu0
  %v2207 = vpop.f32.mrb[0].mxu0
  %v2208 = vadd.f32 0.0, %v2207
  %v2209 = vpop.f32.mrb[0].mxu0
  %2210 = vmatprep.mubr.bf16.mxu0 0
  %2211 = vmatmul.mubr.bf16.gmra.mrb[0].mxu0 %v206
  %v2212 = vpop.f32.mrb[0].mxu0
  %v2213 = vadd.f32 0.0, %v2212
  %v2214 = vpop.f32.mrb[0].mxu0
  %v2215 = vpop.f32.mrb[0].mxu0
  %v2216 = vadd.f32 0.0, %v2215
  %v2217 = vpop.f32.mrb[0].mxu0
  %2218 = vmatprep.mubr.bf16.mxu0 0
  %2219 = vmatmul.mubr.bf16.gmra.mrb[0].mxu0 %v209
  %v2220 = vpop.f32.mrb[0].mxu0
  %v2221 = vadd.f32 0.0, %v2220
  %v2222 = vpop.f32.mrb[0].mxu0
  %v2223 = vpop.f32.mrb[0].mxu0
  %v2224 = vadd.f32 0.0, %v2223
  %v2225 = vpop.f32.mrb[0].mxu0
  %2226 = vdwg.mxu0
  %v2227 = vsel %vm22, %v2197, %v2128
  %v2228 = vsel %vm22, %v2200, %v2131
  %v2229 = vsel %vm22, %v2205, %v2136
  %v2230 = vsel %vm22, %v2208, %v2139
  %v2231 = vsel %vm22, %v2213, %v2144
  %v2232 = vsel %vm22, %v2216, %v2147
  %v2233 = vsel %vm22, %v2221, %v2152
  %v2234 = vsel %vm22, %v2224, %v2155
  %s2235 = scalar_lea.vmem %s3, 8
  %v2236 = vld [vmem:[%s2235] sm:$0x1]
  %v2238 = vlaneseq
  %v2239 = vshrl.u32 %v2238, 7
  %v2240 = vsub.s32 0, %v2239
  %v2241 = vrot.slane %v2236, %v2240
  %v2243 = vadd.f32 %v2227, %v2241
  %v2244 = vadd.f32 %v2228, %v2241
  %v2245 = vadd.f32 %v2229, %v2241
  %v2246 = vadd.f32 %v2230, %v2241
  %v2247 = vadd.f32 %v2231, %v2241
  %v2248 = vadd.f32 %v2232, %v2241
  %v2249 = vadd.f32 %v2233, %v2241
  %v2250 = vadd.f32 %v2234, %v2241
  %v2251 = vmax.f32 %v2243, 0.0
  %v2252 = vmax.f32 %v2244, 0.0
  %v2253 = vmax.f32 %v2245, 0.0
  %v2254 = vmax.f32 %v2246, 0.0
  %v2255 = vmax.f32 %v2247, 0.0
  %v2256 = vmax.f32 %v2248, 0.0
  %v2257 = vmax.f32 %v2249, 0.0
  %v2258 = vmax.f32 %v2250, 0.0
  %v2259 = vpack.c.bf16 %v2252, %v2251
  %v2260 = vpack.c.bf16 %v2254, %v2253
  %v2261 = vpack.c.bf16 %v2256, %v2255
  %v2262 = vpack.c.bf16 %v2258, %v2257
  %s2263 = scalar_lea.vmem %s2, 576
  %v2264 = vld [vmem:[%s2263] sm:$0xf]
  %v2265 = vld [vmem:[%s2263 + $0x4] sm:$0xf]
  %v2266 = vld [vmem:[%s2263 + $0x8] sm:$0xf]
  %v2267 = vld [vmem:[%s2263 + $0xc] sm:$0xf]
  %v2268 = vld [vmem:[%s2263 + $0x10] sm:$0xf]
  %v2269 = vld [vmem:[%s2263 + $0x14] sm:$0xf]
  %v2270 = vld [vmem:[%s2263 + $0x18] sm:$0xf]
  %v2271 = vld [vmem:[%s2263 + $0x1c] sm:$0xf]
  %v2272 = vld [vmem:[%s2263 + $0x20] sm:$0xf]
  %v2273 = vld [vmem:[%s2263 + $0x24] sm:$0xf]
  %v2274 = vld [vmem:[%s2263 + $0x28] sm:$0xf]
  %v2275 = vld [vmem:[%s2263 + $0x2c] sm:$0xf]
  %v2276 = vld [vmem:[%s2263 + $0x30] sm:$0xf]
  %v2277 = vld [vmem:[%s2263 + $0x34] sm:$0xf]
  %v2278 = vld [vmem:[%s2263 + $0x38] sm:$0xf]
  %v2279 = vld [vmem:[%s2263 + $0x3c] sm:$0xf]
  %v2296 = vunpack.c.l.b16 %v2264
  %v2297 = vunpack.c.l.b16 %v2265
  %v2298 = vunpack.c.l.b16 %v2266
  %v2299 = vunpack.c.l.b16 %v2267
  %v2300 = vunpack.c.l.b16 %v2268
  %v2301 = vunpack.c.l.b16 %v2269
  %v2302 = vunpack.c.l.b16 %v2270
  %v2303 = vunpack.c.l.b16 %v2271
  %v2304 = vunpack.c.l.b16 %v2272
  %v2305 = vunpack.c.l.b16 %v2273
  %v2306 = vunpack.c.l.b16 %v2274
  %v2307 = vunpack.c.l.b16 %v2275
  %v2308 = vunpack.c.l.b16 %v2276
  %v2309 = vunpack.c.l.b16 %v2277
  %v2310 = vunpack.c.l.b16 %v2278
  %v2311 = vunpack.c.l.b16 %v2279
  %v2312 = vpack.c.b16 %v2297, %v2296
  %v2313 = vpack.c.b16 %v2299, %v2298
  %v2314 = vpack.c.b16 %v2301, %v2300
  %v2315 = vpack.c.b16 %v2303, %v2302
  %v2316 = vpack.c.b16 %v2305, %v2304
  %v2317 = vpack.c.b16 %v2307, %v2306
  %v2318 = vpack.c.b16 %v2309, %v2308
  %v2319 = vpack.c.b16 %v2311, %v2310
  %2328 = vmatprep.subr.bf16.mxu0 0
  %2329 = vmatpush1.bf16.msra.mxu0 %v2312
  %2330 = vmatprep.subr.bf16.mxu0 0
  %2331 = vmatpush1.bf16.msra.mxu0 %v2313
  %2332 = vmatprep.subr.bf16.mxu0 0
  %2333 = vmatpush1.bf16.msra.mxu0 %v2314
  %2334 = vmatprep.subr.bf16.mxu0 0
  %2335 = vmatpush1.bf16.msra.mxu0 %v2315
  %2336 = vmatprep.subr.bf16.mxu0 0
  %2337 = vmatpush1.bf16.msra.mxu0 %v2316
  %2338 = vmatprep.subr.bf16.mxu0 0
  %2339 = vmatpush1.bf16.msra.mxu0 %v2317
  %2340 = vmatprep.subr.bf16.mxu0 0
  %2341 = vmatpush1.bf16.msra.mxu0 %v2318
  %2342 = vmatprep.subr.bf16.mxu0 0
  %2343 = vmatpush1.bf16.msra.mxu0 %v2319
  %2344 = vmatprep.subr.bf16.mxu0 0
  %2345 = vmatpush1.bf16.msra.mxu0 0
  %2346 = vmatprep.subr.bf16.mxu0 0
  %2347 = vmatpush1.bf16.msra.mxu0 0
  %2348 = vmatprep.subr.bf16.mxu0 0
  %2349 = vmatpush1.bf16.msra.mxu0 0
  %2350 = vmatprep.subr.bf16.mxu0 0
  %2351 = vmatpush1.bf16.msra.mxu0 0
  %2352 = vmatprep.subr.bf16.mxu0 0
  %2353 = vmatpush1.bf16.msra.mxu0 0
  %2354 = vmatprep.subr.bf16.mxu0 0
  %2355 = vmatpush1.bf16.msra.mxu0 0
  %2356 = vmatprep.subr.bf16.mxu0 0
  %2357 = vmatpush1.bf16.msra.mxu0 0
  %2358 = vmatprep.subr.bf16.mxu0 0
  %2359 = vmatpush1.bf16.msra.mxu0 0
  %2360 = vmatprep.mubr.bf16.mxu0 0
  %2361 = vmatmul.mubr.bf16.gmra.mrb[0].mxu0 %v2259
  %v2362 = vpop.f32.mrb[0].mxu0
  %v2363 = vadd.f32 0.0, %v2362
  %v2364 = vpop.f32.mrb[0].mxu0
  %v2365 = vpop.f32.mrb[0].mxu0
  %v2366 = vadd.f32 0.0, %v2365
  %v2367 = vpop.f32.mrb[0].mxu0
  %2368 = vmatprep.mubr.bf16.mxu0 0
  %2369 = vmatmul.mubr.bf16.gmra.mrb[0].mxu0 %v2260
  %v2370 = vpop.f32.mrb[0].mxu0
  %v2371 = vadd.f32 0.0, %v2370
  %v2372 = vpop.f32.mrb[0].mxu0
  %v2373 = vpop.f32.mrb[0].mxu0
  %v2374 = vadd.f32 0.0, %v2373
  %v2375 = vpop.f32.mrb[0].mxu0
  %2376 = vmatprep.mubr.bf16.mxu0 0
  %2377 = vmatmul.mubr.bf16.gmra.mrb[0].mxu0 %v2261
  %v2378 = vpop.f32.mrb[0].mxu0
  %v2379 = vadd.f32 0.0, %v2378
  %v2380 = vpop.f32.mrb[0].mxu0
  %v2381 = vpop.f32.mrb[0].mxu0
  %v2382 = vadd.f32 0.0, %v2381
  %v2383 = vpop.f32.mrb[0].mxu0
  %2384 = vmatprep.mubr.bf16.mxu0 0
  %2385 = vmatmul.mubr.bf16.gmra.mrb[0].mxu0 %v2262
  %v2386 = vpop.f32.mrb[0].mxu0
  %v2387 = vadd.f32 0.0, %v2386
  %v2388 = vpop.f32.mrb[0].mxu0
  %v2389 = vpop.f32.mrb[0].mxu0
  %v2390 = vadd.f32 0.0, %v2389
  %v2391 = vpop.f32.mrb[0].mxu0
  %2392 = vdwg.mxu0
  %v2393 = vpack.c.bf16 %v2366, %v2363
  %v2394 = vpack.c.bf16 %v2374, %v2371
  %v2395 = vpack.c.bf16 %v2382, %v2379
  %v2396 = vpack.c.bf16 %v2390, %v2387
  %2397 = vmatprep.subr.bf16.mxu0 0
  %2398 = vmatpush1.bf16.msra.mxu0 %v2393
  %2399 = vmatprep.subr.bf16.mxu0 0
  %2400 = vmatpush1.bf16.msra.mxu0 %v2394
  %2401 = vmatprep.subr.bf16.mxu0 0
  %2402 = vmatpush1.bf16.msra.mxu0 %v2395
  %2403 = vmatprep.subr.bf16.mxu0 0
  %2404 = vmatpush1.bf16.msra.mxu0 %v2396
  %2405 = vmatprep.subr.bf16.mxu0 0
  %2406 = vmatpush1.bf16.msra.mxu0 0
  %2407 = vmatprep.subr.bf16.mxu0 0
  %2408 = vmatpush1.bf16.msra.mxu0 0
  %2409 = vmatprep.subr.bf16.mxu0 0
  %2410 = vmatpush1.bf16.msra.mxu0 0
  %2411 = vmatprep.subr.bf16.mxu0 0
  %2412 = vmatpush1.bf16.msra.mxu0 0
  %2413 = vmatprep.subr.bf16.mxu0 0
  %2414 = vmatpush1.bf16.msra.mxu0 0
  %2415 = vmatprep.subr.bf16.mxu0 0
  %2416 = vmatpush1.bf16.msra.mxu0 0
  %2417 = vmatprep.subr.bf16.mxu0 0
  %2418 = vmatpush1.bf16.msra.mxu0 0
  %2419 = vmatprep.subr.bf16.mxu0 0
  %2420 = vmatpush1.bf16.msra.mxu0 0
  %2421 = vmatprep.subr.bf16.mxu0 0
  %2422 = vmatpush1.bf16.msra.mxu0 0
  %2423 = vmatprep.subr.bf16.mxu0 0
  %2424 = vmatpush1.bf16.msra.mxu0 0
  %2425 = vmatprep.subr.bf16.mxu0 0
  %2426 = vmatpush1.bf16.msra.mxu0 0
  %2427 = vmatprep.subr.bf16.mxu0 0
  %2428 = vmatpush1.bf16.msra.mxu0 0
  %2429 = vmatprep.mubr.bf16.mxu0 0
  %2430 = vmatmul.mubr.bf16.gmra.mrb[0].mxu0 %v200
  %v2431 = vpop.f32.mrb[0].mxu0
  %v2432 = vadd.f32 0.0, %v2431
  %v2433 = vpop.f32.mrb[0].mxu0
  %v2434 = vpop.f32.mrb[0].mxu0
  %v2435 = vadd.f32 0.0, %v2434
  %v2436 = vpop.f32.mrb[0].mxu0
  %2437 = vmatprep.mubr.bf16.mxu0 0
  %2438 = vmatmul.mubr.bf16.gmra.mrb[0].mxu0 %v203
  %v2439 = vpop.f32.mrb[0].mxu0
  %v2440 = vadd.f32 0.0, %v2439
  %v2441 = vpop.f32.mrb[0].mxu0
  %v2442 = vpop.f32.mrb[0].mxu0
  %v2443 = vadd.f32 0.0, %v2442
  %v2444 = vpop.f32.mrb[0].mxu0
  %2445 = vmatprep.mubr.bf16.mxu0 0
  %2446 = vmatmul.mubr.bf16.gmra.mrb[0].mxu0 %v206
  %v2447 = vpop.f32.mrb[0].mxu0
  %v2448 = vadd.f32 0.0, %v2447
  %v2449 = vpop.f32.mrb[0].mxu0
  %v2450 = vpop.f32.mrb[0].mxu0
  %v2451 = vadd.f32 0.0, %v2450
  %v2452 = vpop.f32.mrb[0].mxu0
  %2453 = vmatprep.mubr.bf16.mxu0 0
  %2454 = vmatmul.mubr.bf16.gmra.mrb[0].mxu0 %v209
  %v2455 = vpop.f32.mrb[0].mxu0
  %v2456 = vadd.f32 0.0, %v2455
  %v2457 = vpop.f32.mrb[0].mxu0
  %v2458 = vpop.f32.mrb[0].mxu0
  %v2459 = vadd.f32 0.0, %v2458
  %v2460 = vpop.f32.mrb[0].mxu0
  %2461 = vdwg.mxu0
  %v2462 = vsel %vm22, %v2432, %v2363
  %v2463 = vsel %vm22, %v2435, %v2366
  %v2464 = vsel %vm22, %v2440, %v2371
  %v2465 = vsel %vm22, %v2443, %v2374
  %v2466 = vsel %vm22, %v2448, %v2379
  %v2467 = vsel %vm22, %v2451, %v2382
  %v2468 = vsel %vm22, %v2456, %v2387
  %v2469 = vsel %vm22, %v2459, %v2390
  %s2470 = scalar_lea.vmem %s3, 9
  %v2471 = vld [vmem:[%s2470] sm:$0x1]
  %v2473 = vlaneseq
  %v2474 = vshrl.u32 %v2473, 7
  %v2475 = vsub.s32 0, %v2474
  %v2476 = vrot.slane %v2471, %v2475
  %v2478 = vadd.f32 %v2462, %v2476
  %v2479 = vadd.f32 %v2463, %v2476
  %v2480 = vadd.f32 %v2464, %v2476
  %v2481 = vadd.f32 %v2465, %v2476
  %v2482 = vadd.f32 %v2466, %v2476
  %v2483 = vadd.f32 %v2467, %v2476
  %v2484 = vadd.f32 %v2468, %v2476
  %v2485 = vadd.f32 %v2469, %v2476
  %v2486 = vmax.f32 %v2478, 0.0
  %v2487 = vmax.f32 %v2479, 0.0
  %v2488 = vmax.f32 %v2480, 0.0
  %v2489 = vmax.f32 %v2481, 0.0
  %v2490 = vmax.f32 %v2482, 0.0
  %v2491 = vmax.f32 %v2483, 0.0
  %v2492 = vmax.f32 %v2484, 0.0
  %v2493 = vmax.f32 %v2485, 0.0
  %v2494 = vadd.f32 %v2016, %v2486
  %v2495 = vadd.f32 %v2017, %v2487
  %v2496 = vadd.f32 %v2018, %v2488
  %v2497 = vadd.f32 %v2019, %v2489
  %v2498 = vadd.f32 %v2020, %v2490
  %v2499 = vadd.f32 %v2021, %v2491
  %v2500 = vadd.f32 %v2022, %v2492
  %v2501 = vadd.f32 %v2023, %v2493
  %v2502 = vmul.f32 %v2494, 0.5
  %v2503 = vmul.f32 %v2495, 0.5
  %v2504 = vmul.f32 %v2496, 0.5
  %v2505 = vmul.f32 %v2497, 0.5
  %v2506 = vmul.f32 %v2498, 0.5
  %v2507 = vmul.f32 %v2499, 0.5
  %v2508 = vmul.f32 %v2500, 0.5
  %v2509 = vmul.f32 %v2501, 0.5
  %v2510 = vpack.c.bf16 %v2503, %v2502
  %v2511 = vpack.c.bf16 %v2505, %v2504
  %v2512 = vpack.c.bf16 %v2507, %v2506
  %v2513 = vpack.c.bf16 %v2509, %v2508
  %s2514 = scalar_lea.vmem %s2, 640
  %v2515 = vld [vmem:[%s2514] sm:$0xf]
  %v2516 = vld [vmem:[%s2514 + $0x4] sm:$0xf]
  %v2517 = vld [vmem:[%s2514 + $0x8] sm:$0xf]
  %v2518 = vld [vmem:[%s2514 + $0xc] sm:$0xf]
  %v2519 = vld [vmem:[%s2514 + $0x10] sm:$0xf]
  %v2520 = vld [vmem:[%s2514 + $0x14] sm:$0xf]
  %v2521 = vld [vmem:[%s2514 + $0x18] sm:$0xf]
  %v2522 = vld [vmem:[%s2514 + $0x1c] sm:$0xf]
  %v2523 = vld [vmem:[%s2514 + $0x20] sm:$0xf]
  %v2524 = vld [vmem:[%s2514 + $0x24] sm:$0xf]
  %v2525 = vld [vmem:[%s2514 + $0x28] sm:$0xf]
  %v2526 = vld [vmem:[%s2514 + $0x2c] sm:$0xf]
  %v2527 = vld [vmem:[%s2514 + $0x30] sm:$0xf]
  %v2528 = vld [vmem:[%s2514 + $0x34] sm:$0xf]
  %v2529 = vld [vmem:[%s2514 + $0x38] sm:$0xf]
  %v2530 = vld [vmem:[%s2514 + $0x3c] sm:$0xf]
  %v2547 = vunpack.c.l.b16 %v2515
  %v2548 = vunpack.c.l.b16 %v2516
  %v2549 = vunpack.c.l.b16 %v2517
  %v2550 = vunpack.c.l.b16 %v2518
  %v2551 = vunpack.c.l.b16 %v2519
  %v2552 = vunpack.c.l.b16 %v2520
  %v2553 = vunpack.c.l.b16 %v2521
  %v2554 = vunpack.c.l.b16 %v2522
  %v2555 = vunpack.c.l.b16 %v2523
  %v2556 = vunpack.c.l.b16 %v2524
  %v2557 = vunpack.c.l.b16 %v2525
  %v2558 = vunpack.c.l.b16 %v2526
  %v2559 = vunpack.c.l.b16 %v2527
  %v2560 = vunpack.c.l.b16 %v2528
  %v2561 = vunpack.c.l.b16 %v2529
  %v2562 = vunpack.c.l.b16 %v2530
  %v2563 = vpack.c.b16 %v2548, %v2547
  %v2564 = vpack.c.b16 %v2550, %v2549
  %v2565 = vpack.c.b16 %v2552, %v2551
  %v2566 = vpack.c.b16 %v2554, %v2553
  %v2567 = vpack.c.b16 %v2556, %v2555
  %v2568 = vpack.c.b16 %v2558, %v2557
  %v2569 = vpack.c.b16 %v2560, %v2559
  %v2570 = vpack.c.b16 %v2562, %v2561
  %2579 = vmatprep.subr.bf16.mxu0 0
  %2580 = vmatpush1.bf16.msra.mxu0 %v2563
  %2581 = vmatprep.subr.bf16.mxu0 0
  %2582 = vmatpush1.bf16.msra.mxu0 %v2564
  %2583 = vmatprep.subr.bf16.mxu0 0
  %2584 = vmatpush1.bf16.msra.mxu0 %v2565
  %2585 = vmatprep.subr.bf16.mxu0 0
  %2586 = vmatpush1.bf16.msra.mxu0 %v2566
  %2587 = vmatprep.subr.bf16.mxu0 0
  %2588 = vmatpush1.bf16.msra.mxu0 %v2567
  %2589 = vmatprep.subr.bf16.mxu0 0
  %2590 = vmatpush1.bf16.msra.mxu0 %v2568
  %2591 = vmatprep.subr.bf16.mxu0 0
  %2592 = vmatpush1.bf16.msra.mxu0 %v2569
  %2593 = vmatprep.subr.bf16.mxu0 0
  %2594 = vmatpush1.bf16.msra.mxu0 %v2570
  %2595 = vmatprep.subr.bf16.mxu0 0
  %2596 = vmatpush1.bf16.msra.mxu0 0
  %2597 = vmatprep.subr.bf16.mxu0 0
  %2598 = vmatpush1.bf16.msra.mxu0 0
  %2599 = vmatprep.subr.bf16.mxu0 0
  %2600 = vmatpush1.bf16.msra.mxu0 0
  %2601 = vmatprep.subr.bf16.mxu0 0
  %2602 = vmatpush1.bf16.msra.mxu0 0
  %2603 = vmatprep.subr.bf16.mxu0 0
  %2604 = vmatpush1.bf16.msra.mxu0 0
  %2605 = vmatprep.subr.bf16.mxu0 0
  %2606 = vmatpush1.bf16.msra.mxu0 0
  %2607 = vmatprep.subr.bf16.mxu0 0
  %2608 = vmatpush1.bf16.msra.mxu0 0
  %2609 = vmatprep.subr.bf16.mxu0 0
  %2610 = vmatpush1.bf16.msra.mxu0 0
  %2611 = vmatprep.mubr.bf16.mxu0 0
  %2612 = vmatmul.mubr.bf16.gmra.mrb[0].mxu0 %v2510
  %v2613 = vpop.f32.mrb[0].mxu0
  %v2614 = vadd.f32 0.0, %v2613
  %v2615 = vpop.f32.mrb[0].mxu0
  %v2616 = vpop.f32.mrb[0].mxu0
  %v2617 = vadd.f32 0.0, %v2616
  %v2618 = vpop.f32.mrb[0].mxu0
  %2619 = vmatprep.mubr.bf16.mxu0 0
  %2620 = vmatmul.mubr.bf16.gmra.mrb[0].mxu0 %v2511
  %v2621 = vpop.f32.mrb[0].mxu0
  %v2622 = vadd.f32 0.0, %v2621
  %v2623 = vpop.f32.mrb[0].mxu0
  %v2624 = vpop.f32.mrb[0].mxu0
  %v2625 = vadd.f32 0.0, %v2624
  %v2626 = vpop.f32.mrb[0].mxu0
  %2627 = vmatprep.mubr.bf16.mxu0 0
  %2628 = vmatmul.mubr.bf16.gmra.mrb[0].mxu0 %v2512
  %v2629 = vpop.f32.mrb[0].mxu0
  %v2630 = vadd.f32 0.0, %v2629
  %v2631 = vpop.f32.mrb[0].mxu0
  %v2632 = vpop.f32.mrb[0].mxu0
  %v2633 = vadd.f32 0.0, %v2632
  %v2634 = vpop.f32.mrb[0].mxu0
  %2635 = vmatprep.mubr.bf16.mxu0 0
  %2636 = vmatmul.mubr.bf16.gmra.mrb[0].mxu0 %v2513
  %v2637 = vpop.f32.mrb[0].mxu0
  %v2638 = vadd.f32 0.0, %v2637
  %v2639 = vpop.f32.mrb[0].mxu0
  %v2640 = vpop.f32.mrb[0].mxu0
  %v2641 = vadd.f32 0.0, %v2640
  %v2642 = vpop.f32.mrb[0].mxu0
  %2643 = vdwg.mxu0
  %v2644 = vpack.c.bf16 %v2617, %v2614
  %v2645 = vpack.c.bf16 %v2625, %v2622
  %v2646 = vpack.c.bf16 %v2633, %v2630
  %v2647 = vpack.c.bf16 %v2641, %v2638
  %2648 = vmatprep.subr.bf16.mxu0 0
  %2649 = vmatpush1.bf16.msra.mxu0 %v2644
  %2650 = vmatprep.subr.bf16.mxu0 0
  %2651 = vmatpush1.bf16.msra.mxu0 %v2645
  %2652 = vmatprep.subr.bf16.mxu0 0
  %2653 = vmatpush1.bf16.msra.mxu0 %v2646
  %2654 = vmatprep.subr.bf16.mxu0 0
  %2655 = vmatpush1.bf16.msra.mxu0 %v2647
  %2656 = vmatprep.subr.bf16.mxu0 0
  %2657 = vmatpush1.bf16.msra.mxu0 0
  %2658 = vmatprep.subr.bf16.mxu0 0
  %2659 = vmatpush1.bf16.msra.mxu0 0
  %2660 = vmatprep.subr.bf16.mxu0 0
  %2661 = vmatpush1.bf16.msra.mxu0 0
  %2662 = vmatprep.subr.bf16.mxu0 0
  %2663 = vmatpush1.bf16.msra.mxu0 0
  %2664 = vmatprep.subr.bf16.mxu0 0
  %2665 = vmatpush1.bf16.msra.mxu0 0
  %2666 = vmatprep.subr.bf16.mxu0 0
  %2667 = vmatpush1.bf16.msra.mxu0 0
  %2668 = vmatprep.subr.bf16.mxu0 0
  %2669 = vmatpush1.bf16.msra.mxu0 0
  %2670 = vmatprep.subr.bf16.mxu0 0
  %2671 = vmatpush1.bf16.msra.mxu0 0
  %2672 = vmatprep.subr.bf16.mxu0 0
  %2673 = vmatpush1.bf16.msra.mxu0 0
  %2674 = vmatprep.subr.bf16.mxu0 0
  %2675 = vmatpush1.bf16.msra.mxu0 0
  %2676 = vmatprep.subr.bf16.mxu0 0
  %2677 = vmatpush1.bf16.msra.mxu0 0
  %2678 = vmatprep.subr.bf16.mxu0 0
  %2679 = vmatpush1.bf16.msra.mxu0 0
  %2680 = vmatprep.mubr.bf16.mxu0 0
  %2681 = vmatmul.mubr.bf16.gmra.mrb[0].mxu0 %v200
  %v2682 = vpop.f32.mrb[0].mxu0
  %v2683 = vadd.f32 0.0, %v2682
  %v2684 = vpop.f32.mrb[0].mxu0
  %v2685 = vpop.f32.mrb[0].mxu0
  %v2686 = vadd.f32 0.0, %v2685
  %v2687 = vpop.f32.mrb[0].mxu0
  %2688 = vmatprep.mubr.bf16.mxu0 0
  %2689 = vmatmul.mubr.bf16.gmra.mrb[0].mxu0 %v203
  %v2690 = vpop.f32.mrb[0].mxu0
  %v2691 = vadd.f32 0.0, %v2690
  %v2692 = vpop.f32.mrb[0].mxu0
  %v2693 = vpop.f32.mrb[0].mxu0
  %v2694 = vadd.f32 0.0, %v2693
  %v2695 = vpop.f32.mrb[0].mxu0
  %2696 = vmatprep.mubr.bf16.mxu0 0
  %2697 = vmatmul.mubr.bf16.gmra.mrb[0].mxu0 %v206
  %v2698 = vpop.f32.mrb[0].mxu0
  %v2699 = vadd.f32 0.0, %v2698
  %v2700 = vpop.f32.mrb[0].mxu0
  %v2701 = vpop.f32.mrb[0].mxu0
  %v2702 = vadd.f32 0.0, %v2701
  %v2703 = vpop.f32.mrb[0].mxu0
  %2704 = vmatprep.mubr.bf16.mxu0 0
  %2705 = vmatmul.mubr.bf16.gmra.mrb[0].mxu0 %v209
  %v2706 = vpop.f32.mrb[0].mxu0
  %v2707 = vadd.f32 0.0, %v2706
  %v2708 = vpop.f32.mrb[0].mxu0
  %v2709 = vpop.f32.mrb[0].mxu0
  %v2710 = vadd.f32 0.0, %v2709
  %v2711 = vpop.f32.mrb[0].mxu0
  %2712 = vdwg.mxu0
  %v2713 = vsel %vm22, %v2683, %v2614
  %v2714 = vsel %vm22, %v2686, %v2617
  %v2715 = vsel %vm22, %v2691, %v2622
  %v2716 = vsel %vm22, %v2694, %v2625
  %v2717 = vsel %vm22, %v2699, %v2630
  %v2718 = vsel %vm22, %v2702, %v2633
  %v2719 = vsel %vm22, %v2707, %v2638
  %v2720 = vsel %vm22, %v2710, %v2641
  %s2721 = scalar_lea.vmem %s3, 10
  %v2722 = vld [vmem:[%s2721] sm:$0x1]
  %v2724 = vlaneseq
  %v2725 = vshrl.u32 %v2724, 7
  %v2726 = vsub.s32 0, %v2725
  %v2727 = vrot.slane %v2722, %v2726
  %v2729 = vadd.f32 %v2713, %v2727
  %v2730 = vadd.f32 %v2714, %v2727
  %v2731 = vadd.f32 %v2715, %v2727
  %v2732 = vadd.f32 %v2716, %v2727
  %v2733 = vadd.f32 %v2717, %v2727
  %v2734 = vadd.f32 %v2718, %v2727
  %v2735 = vadd.f32 %v2719, %v2727
  %v2736 = vadd.f32 %v2720, %v2727
  %v2737 = vmax.f32 %v2729, 0.0
  %v2738 = vmax.f32 %v2730, 0.0
  %v2739 = vmax.f32 %v2731, 0.0
  %v2740 = vmax.f32 %v2732, 0.0
  %v2741 = vmax.f32 %v2733, 0.0
  %v2742 = vmax.f32 %v2734, 0.0
  %v2743 = vmax.f32 %v2735, 0.0
  %v2744 = vmax.f32 %v2736, 0.0
  %v2745 = vpack.c.bf16 %v2738, %v2737
  %v2746 = vpack.c.bf16 %v2740, %v2739
  %v2747 = vpack.c.bf16 %v2742, %v2741
  %v2748 = vpack.c.bf16 %v2744, %v2743
  %s2749 = scalar_lea.vmem %s2, 704
  %v2750 = vld [vmem:[%s2749] sm:$0xf]
  %v2751 = vld [vmem:[%s2749 + $0x4] sm:$0xf]
  %v2752 = vld [vmem:[%s2749 + $0x8] sm:$0xf]
  %v2753 = vld [vmem:[%s2749 + $0xc] sm:$0xf]
  %v2754 = vld [vmem:[%s2749 + $0x10] sm:$0xf]
  %v2755 = vld [vmem:[%s2749 + $0x14] sm:$0xf]
  %v2756 = vld [vmem:[%s2749 + $0x18] sm:$0xf]
  %v2757 = vld [vmem:[%s2749 + $0x1c] sm:$0xf]
  %v2758 = vld [vmem:[%s2749 + $0x20] sm:$0xf]
  %v2759 = vld [vmem:[%s2749 + $0x24] sm:$0xf]
  %v2760 = vld [vmem:[%s2749 + $0x28] sm:$0xf]
  %v2761 = vld [vmem:[%s2749 + $0x2c] sm:$0xf]
  %v2762 = vld [vmem:[%s2749 + $0x30] sm:$0xf]
  %v2763 = vld [vmem:[%s2749 + $0x34] sm:$0xf]
  %v2764 = vld [vmem:[%s2749 + $0x38] sm:$0xf]
  %v2765 = vld [vmem:[%s2749 + $0x3c] sm:$0xf]
  %v2782 = vunpack.c.l.b16 %v2750
  %v2783 = vunpack.c.l.b16 %v2751
  %v2784 = vunpack.c.l.b16 %v2752
  %v2785 = vunpack.c.l.b16 %v2753
  %v2786 = vunpack.c.l.b16 %v2754
  %v2787 = vunpack.c.l.b16 %v2755
  %v2788 = vunpack.c.l.b16 %v2756
  %v2789 = vunpack.c.l.b16 %v2757
  %v2790 = vunpack.c.l.b16 %v2758
  %v2791 = vunpack.c.l.b16 %v2759
  %v2792 = vunpack.c.l.b16 %v2760
  %v2793 = vunpack.c.l.b16 %v2761
  %v2794 = vunpack.c.l.b16 %v2762
  %v2795 = vunpack.c.l.b16 %v2763
  %v2796 = vunpack.c.l.b16 %v2764
  %v2797 = vunpack.c.l.b16 %v2765
  %v2798 = vpack.c.b16 %v2783, %v2782
  %v2799 = vpack.c.b16 %v2785, %v2784
  %v2800 = vpack.c.b16 %v2787, %v2786
  %v2801 = vpack.c.b16 %v2789, %v2788
  %v2802 = vpack.c.b16 %v2791, %v2790
  %v2803 = vpack.c.b16 %v2793, %v2792
  %v2804 = vpack.c.b16 %v2795, %v2794
  %v2805 = vpack.c.b16 %v2797, %v2796
  %2814 = vmatprep.subr.bf16.mxu0 0
  %2815 = vmatpush1.bf16.msra.mxu0 %v2798
  %2816 = vmatprep.subr.bf16.mxu0 0
  %2817 = vmatpush1.bf16.msra.mxu0 %v2799
  %2818 = vmatprep.subr.bf16.mxu0 0
  %2819 = vmatpush1.bf16.msra.mxu0 %v2800
  %2820 = vmatprep.subr.bf16.mxu0 0
  %2821 = vmatpush1.bf16.msra.mxu0 %v2801
  %2822 = vmatprep.subr.bf16.mxu0 0
  %2823 = vmatpush1.bf16.msra.mxu0 %v2802
  %2824 = vmatprep.subr.bf16.mxu0 0
  %2825 = vmatpush1.bf16.msra.mxu0 %v2803
  %2826 = vmatprep.subr.bf16.mxu0 0
  %2827 = vmatpush1.bf16.msra.mxu0 %v2804
  %2828 = vmatprep.subr.bf16.mxu0 0
  %2829 = vmatpush1.bf16.msra.mxu0 %v2805
  %2830 = vmatprep.subr.bf16.mxu0 0
  %2831 = vmatpush1.bf16.msra.mxu0 0
  %2832 = vmatprep.subr.bf16.mxu0 0
  %2833 = vmatpush1.bf16.msra.mxu0 0
  %2834 = vmatprep.subr.bf16.mxu0 0
  %2835 = vmatpush1.bf16.msra.mxu0 0
  %2836 = vmatprep.subr.bf16.mxu0 0
  %2837 = vmatpush1.bf16.msra.mxu0 0
  %2838 = vmatprep.subr.bf16.mxu0 0
  %2839 = vmatpush1.bf16.msra.mxu0 0
  %2840 = vmatprep.subr.bf16.mxu0 0
  %2841 = vmatpush1.bf16.msra.mxu0 0
  %2842 = vmatprep.subr.bf16.mxu0 0
  %2843 = vmatpush1.bf16.msra.mxu0 0
  %2844 = vmatprep.subr.bf16.mxu0 0
  %2845 = vmatpush1.bf16.msra.mxu0 0
  %2846 = vmatprep.mubr.bf16.mxu0 0
  %2847 = vmatmul.mubr.bf16.gmra.mrb[0].mxu0 %v2745
  %v2848 = vpop.f32.mrb[0].mxu0
  %v2849 = vadd.f32 0.0, %v2848
  %v2850 = vpop.f32.mrb[0].mxu0
  %v2851 = vpop.f32.mrb[0].mxu0
  %v2852 = vadd.f32 0.0, %v2851
  %v2853 = vpop.f32.mrb[0].mxu0
  %2854 = vmatprep.mubr.bf16.mxu0 0
  %2855 = vmatmul.mubr.bf16.gmra.mrb[0].mxu0 %v2746
  %v2856 = vpop.f32.mrb[0].mxu0
  %v2857 = vadd.f32 0.0, %v2856
  %v2858 = vpop.f32.mrb[0].mxu0
  %v2859 = vpop.f32.mrb[0].mxu0
  %v2860 = vadd.f32 0.0, %v2859
  %v2861 = vpop.f32.mrb[0].mxu0
  %2862 = vmatprep.mubr.bf16.mxu0 0
  %2863 = vmatmul.mubr.bf16.gmra.mrb[0].mxu0 %v2747
  %v2864 = vpop.f32.mrb[0].mxu0
  %v2865 = vadd.f32 0.0, %v2864
  %v2866 = vpop.f32.mrb[0].mxu0
  %v2867 = vpop.f32.mrb[0].mxu0
  %v2868 = vadd.f32 0.0, %v2867
  %v2869 = vpop.f32.mrb[0].mxu0
  %2870 = vmatprep.mubr.bf16.mxu0 0
  %2871 = vmatmul.mubr.bf16.gmra.mrb[0].mxu0 %v2748
  %v2872 = vpop.f32.mrb[0].mxu0
  %v2873 = vadd.f32 0.0, %v2872
  %v2874 = vpop.f32.mrb[0].mxu0
  %v2875 = vpop.f32.mrb[0].mxu0
  %v2876 = vadd.f32 0.0, %v2875
  %v2877 = vpop.f32.mrb[0].mxu0
  %2878 = vdwg.mxu0
  %v2879 = vpack.c.bf16 %v2852, %v2849
  %v2880 = vpack.c.bf16 %v2860, %v2857
  %v2881 = vpack.c.bf16 %v2868, %v2865
  %v2882 = vpack.c.bf16 %v2876, %v2873
  %2883 = vmatprep.subr.bf16.mxu0 0
  %2884 = vmatpush1.bf16.msra.mxu0 %v2879
  %2885 = vmatprep.subr.bf16.mxu0 0
  %2886 = vmatpush1.bf16.msra.mxu0 %v2880
  %2887 = vmatprep.subr.bf16.mxu0 0
  %2888 = vmatpush1.bf16.msra.mxu0 %v2881
  %2889 = vmatprep.subr.bf16.mxu0 0
  %2890 = vmatpush1.bf16.msra.mxu0 %v2882
  %2891 = vmatprep.subr.bf16.mxu0 0
  %2892 = vmatpush1.bf16.msra.mxu0 0
  %2893 = vmatprep.subr.bf16.mxu0 0
  %2894 = vmatpush1.bf16.msra.mxu0 0
  %2895 = vmatprep.subr.bf16.mxu0 0
  %2896 = vmatpush1.bf16.msra.mxu0 0
  %2897 = vmatprep.subr.bf16.mxu0 0
  %2898 = vmatpush1.bf16.msra.mxu0 0
  %2899 = vmatprep.subr.bf16.mxu0 0
  %2900 = vmatpush1.bf16.msra.mxu0 0
  %2901 = vmatprep.subr.bf16.mxu0 0
  %2902 = vmatpush1.bf16.msra.mxu0 0
  %2903 = vmatprep.subr.bf16.mxu0 0
  %2904 = vmatpush1.bf16.msra.mxu0 0
  %2905 = vmatprep.subr.bf16.mxu0 0
  %2906 = vmatpush1.bf16.msra.mxu0 0
  %2907 = vmatprep.subr.bf16.mxu0 0
  %2908 = vmatpush1.bf16.msra.mxu0 0
  %2909 = vmatprep.subr.bf16.mxu0 0
  %2910 = vmatpush1.bf16.msra.mxu0 0
  %2911 = vmatprep.subr.bf16.mxu0 0
  %2912 = vmatpush1.bf16.msra.mxu0 0
  %2913 = vmatprep.subr.bf16.mxu0 0
  %2914 = vmatpush1.bf16.msra.mxu0 0
  %2915 = vmatprep.mubr.bf16.mxu0 0
  %2916 = vmatmul.mubr.bf16.gmra.mrb[0].mxu0 %v200
  %v2917 = vpop.f32.mrb[0].mxu0
  %v2918 = vadd.f32 0.0, %v2917
  %v2919 = vpop.f32.mrb[0].mxu0
  %v2920 = vpop.f32.mrb[0].mxu0
  %v2921 = vadd.f32 0.0, %v2920
  %v2922 = vpop.f32.mrb[0].mxu0
  %2923 = vmatprep.mubr.bf16.mxu0 0
  %2924 = vmatmul.mubr.bf16.gmra.mrb[0].mxu0 %v203
  %v2925 = vpop.f32.mrb[0].mxu0
  %v2926 = vadd.f32 0.0, %v2925
  %v2927 = vpop.f32.mrb[0].mxu0
  %v2928 = vpop.f32.mrb[0].mxu0
  %v2929 = vadd.f32 0.0, %v2928
  %v2930 = vpop.f32.mrb[0].mxu0
  %2931 = vmatprep.mubr.bf16.mxu0 0
  %2932 = vmatmul.mubr.bf16.gmra.mrb[0].mxu0 %v206
  %v2933 = vpop.f32.mrb[0].mxu0
  %v2934 = vadd.f32 0.0, %v2933
  %v2935 = vpop.f32.mrb[0].mxu0
  %v2936 = vpop.f32.mrb[0].mxu0
  %v2937 = vadd.f32 0.0, %v2936
  %v2938 = vpop.f32.mrb[0].mxu0
  %2939 = vmatprep.mubr.bf16.mxu0 0
  %2940 = vmatmul.mubr.bf16.gmra.mrb[0].mxu0 %v209
  %v2941 = vpop.f32.mrb[0].mxu0
  %v2942 = vadd.f32 0.0, %v2941
  %v2943 = vpop.f32.mrb[0].mxu0
  %v2944 = vpop.f32.mrb[0].mxu0
  %v2945 = vadd.f32 0.0, %v2944
  %v2946 = vpop.f32.mrb[0].mxu0
  %2947 = vdwg.mxu0
  %v2948 = vsel %vm22, %v2918, %v2849
  %v2949 = vsel %vm22, %v2921, %v2852
  %v2950 = vsel %vm22, %v2926, %v2857
  %v2951 = vsel %vm22, %v2929, %v2860
  %v2952 = vsel %vm22, %v2934, %v2865
  %v2953 = vsel %vm22, %v2937, %v2868
  %v2954 = vsel %vm22, %v2942, %v2873
  %v2955 = vsel %vm22, %v2945, %v2876
  %s2956 = scalar_lea.vmem %s3, 11
  %v2957 = vld [vmem:[%s2956] sm:$0x1]
  %v2959 = vlaneseq
  %v2960 = vshrl.u32 %v2959, 7
  %v2961 = vsub.s32 0, %v2960
  %v2962 = vrot.slane %v2957, %v2961
  %v2964 = vadd.f32 %v2948, %v2962
  %v2965 = vadd.f32 %v2949, %v2962
  %v2966 = vadd.f32 %v2950, %v2962
  %v2967 = vadd.f32 %v2951, %v2962
  %v2968 = vadd.f32 %v2952, %v2962
  %v2969 = vadd.f32 %v2953, %v2962
  %v2970 = vadd.f32 %v2954, %v2962
  %v2971 = vadd.f32 %v2955, %v2962
  %v2972 = vmax.f32 %v2964, 0.0
  %v2973 = vmax.f32 %v2965, 0.0
  %v2974 = vmax.f32 %v2966, 0.0
  %v2975 = vmax.f32 %v2967, 0.0
  %v2976 = vmax.f32 %v2968, 0.0
  %v2977 = vmax.f32 %v2969, 0.0
  %v2978 = vmax.f32 %v2970, 0.0
  %v2979 = vmax.f32 %v2971, 0.0
  %v2980 = vadd.f32 %v2502, %v2972
  %v2981 = vadd.f32 %v2503, %v2973
  %v2982 = vadd.f32 %v2504, %v2974
  %v2983 = vadd.f32 %v2505, %v2975
  %v2984 = vadd.f32 %v2506, %v2976
  %v2985 = vadd.f32 %v2507, %v2977
  %v2986 = vadd.f32 %v2508, %v2978
  %v2987 = vadd.f32 %v2509, %v2979
  %v2988 = vmul.f32 %v2980, 0.5
  %v2989 = vmul.f32 %v2981, 0.5
  %v2990 = vmul.f32 %v2982, 0.5
  %v2991 = vmul.f32 %v2983, 0.5
  %v2992 = vmul.f32 %v2984, 0.5
  %v2993 = vmul.f32 %v2985, 0.5
  %v2994 = vmul.f32 %v2986, 0.5
  %v2995 = vmul.f32 %v2987, 0.5
  %v2996 = vpack.c.bf16 %v2989, %v2988
  %v2997 = vpack.c.bf16 %v2991, %v2990
  %v2998 = vpack.c.bf16 %v2993, %v2992
  %v2999 = vpack.c.bf16 %v2995, %v2994
  %s3000 = scalar_lea.vmem %s2, 768
  %v3001 = vld [vmem:[%s3000] sm:$0xf]
  %v3002 = vld [vmem:[%s3000 + $0x4] sm:$0xf]
  %v3003 = vld [vmem:[%s3000 + $0x8] sm:$0xf]
  %v3004 = vld [vmem:[%s3000 + $0xc] sm:$0xf]
  %v3005 = vld [vmem:[%s3000 + $0x10] sm:$0xf]
  %v3006 = vld [vmem:[%s3000 + $0x14] sm:$0xf]
  %v3007 = vld [vmem:[%s3000 + $0x18] sm:$0xf]
  %v3008 = vld [vmem:[%s3000 + $0x1c] sm:$0xf]
  %v3009 = vld [vmem:[%s3000 + $0x20] sm:$0xf]
  %v3010 = vld [vmem:[%s3000 + $0x24] sm:$0xf]
  %v3011 = vld [vmem:[%s3000 + $0x28] sm:$0xf]
  %v3012 = vld [vmem:[%s3000 + $0x2c] sm:$0xf]
  %v3013 = vld [vmem:[%s3000 + $0x30] sm:$0xf]
  %v3014 = vld [vmem:[%s3000 + $0x34] sm:$0xf]
  %v3015 = vld [vmem:[%s3000 + $0x38] sm:$0xf]
  %v3016 = vld [vmem:[%s3000 + $0x3c] sm:$0xf]
  %v3033 = vunpack.c.l.b16 %v3001
  %v3034 = vunpack.c.l.b16 %v3002
  %v3035 = vunpack.c.l.b16 %v3003
  %v3036 = vunpack.c.l.b16 %v3004
  %v3037 = vunpack.c.l.b16 %v3005
  %v3038 = vunpack.c.l.b16 %v3006
  %v3039 = vunpack.c.l.b16 %v3007
  %v3040 = vunpack.c.l.b16 %v3008
  %v3041 = vunpack.c.l.b16 %v3009
  %v3042 = vunpack.c.l.b16 %v3010
  %v3043 = vunpack.c.l.b16 %v3011
  %v3044 = vunpack.c.l.b16 %v3012
  %v3045 = vunpack.c.l.b16 %v3013
  %v3046 = vunpack.c.l.b16 %v3014
  %v3047 = vunpack.c.l.b16 %v3015
  %v3048 = vunpack.c.l.b16 %v3016
  %v3049 = vpack.c.b16 %v3034, %v3033
  %v3050 = vpack.c.b16 %v3036, %v3035
  %v3051 = vpack.c.b16 %v3038, %v3037
  %v3052 = vpack.c.b16 %v3040, %v3039
  %v3053 = vpack.c.b16 %v3042, %v3041
  %v3054 = vpack.c.b16 %v3044, %v3043
  %v3055 = vpack.c.b16 %v3046, %v3045
  %v3056 = vpack.c.b16 %v3048, %v3047
  %3065 = vmatprep.subr.bf16.mxu0 0
  %3066 = vmatpush1.bf16.msra.mxu0 %v3049
  %3067 = vmatprep.subr.bf16.mxu0 0
  %3068 = vmatpush1.bf16.msra.mxu0 %v3050
  %3069 = vmatprep.subr.bf16.mxu0 0
  %3070 = vmatpush1.bf16.msra.mxu0 %v3051
  %3071 = vmatprep.subr.bf16.mxu0 0
  %3072 = vmatpush1.bf16.msra.mxu0 %v3052
  %3073 = vmatprep.subr.bf16.mxu0 0
  %3074 = vmatpush1.bf16.msra.mxu0 %v3053
  %3075 = vmatprep.subr.bf16.mxu0 0
  %3076 = vmatpush1.bf16.msra.mxu0 %v3054
  %3077 = vmatprep.subr.bf16.mxu0 0
  %3078 = vmatpush1.bf16.msra.mxu0 %v3055
  %3079 = vmatprep.subr.bf16.mxu0 0
  %3080 = vmatpush1.bf16.msra.mxu0 %v3056
  %3081 = vmatprep.subr.bf16.mxu0 0
  %3082 = vmatpush1.bf16.msra.mxu0 0
  %3083 = vmatprep.subr.bf16.mxu0 0
  %3084 = vmatpush1.bf16.msra.mxu0 0
  %3085 = vmatprep.subr.bf16.mxu0 0
  %3086 = vmatpush1.bf16.msra.mxu0 0
  %3087 = vmatprep.subr.bf16.mxu0 0
  %3088 = vmatpush1.bf16.msra.mxu0 0
  %3089 = vmatprep.subr.bf16.mxu0 0
  %3090 = vmatpush1.bf16.msra.mxu0 0
  %3091 = vmatprep.subr.bf16.mxu0 0
  %3092 = vmatpush1.bf16.msra.mxu0 0
  %3093 = vmatprep.subr.bf16.mxu0 0
  %3094 = vmatpush1.bf16.msra.mxu0 0
  %3095 = vmatprep.subr.bf16.mxu0 0
  %3096 = vmatpush1.bf16.msra.mxu0 0
  %3097 = vmatprep.mubr.bf16.mxu0 0
  %3098 = vmatmul.mubr.bf16.gmra.mrb[0].mxu0 %v2996
  %v3099 = vpop.f32.mrb[0].mxu0
  %v3100 = vadd.f32 0.0, %v3099
  %v3101 = vpop.f32.mrb[0].mxu0
  %v3102 = vpop.f32.mrb[0].mxu0
  %v3103 = vadd.f32 0.0, %v3102
  %v3104 = vpop.f32.mrb[0].mxu0
  %3105 = vmatprep.mubr.bf16.mxu0 0
  %3106 = vmatmul.mubr.bf16.gmra.mrb[0].mxu0 %v2997
  %v3107 = vpop.f32.mrb[0].mxu0
  %v3108 = vadd.f32 0.0, %v3107
  %v3109 = vpop.f32.mrb[0].mxu0
  %v3110 = vpop.f32.mrb[0].mxu0
  %v3111 = vadd.f32 0.0, %v3110
  %v3112 = vpop.f32.mrb[0].mxu0
  %3113 = vmatprep.mubr.bf16.mxu0 0
  %3114 = vmatmul.mubr.bf16.gmra.mrb[0].mxu0 %v2998
  %v3115 = vpop.f32.mrb[0].mxu0
  %v3116 = vadd.f32 0.0, %v3115
  %v3117 = vpop.f32.mrb[0].mxu0
  %v3118 = vpop.f32.mrb[0].mxu0
  %v3119 = vadd.f32 0.0, %v3118
  %v3120 = vpop.f32.mrb[0].mxu0
  %3121 = vmatprep.mubr.bf16.mxu0 0
  %3122 = vmatmul.mubr.bf16.gmra.mrb[0].mxu0 %v2999
  %v3123 = vpop.f32.mrb[0].mxu0
  %v3124 = vadd.f32 0.0, %v3123
  %v3125 = vpop.f32.mrb[0].mxu0
  %v3126 = vpop.f32.mrb[0].mxu0
  %v3127 = vadd.f32 0.0, %v3126
  %v3128 = vpop.f32.mrb[0].mxu0
  %3129 = vdwg.mxu0
  %v3130 = vpack.c.bf16 %v3103, %v3100
  %v3131 = vpack.c.bf16 %v3111, %v3108
  %v3132 = vpack.c.bf16 %v3119, %v3116
  %v3133 = vpack.c.bf16 %v3127, %v3124
  %3134 = vmatprep.subr.bf16.mxu0 0
  %3135 = vmatpush1.bf16.msra.mxu0 %v3130
  %3136 = vmatprep.subr.bf16.mxu0 0
  %3137 = vmatpush1.bf16.msra.mxu0 %v3131
  %3138 = vmatprep.subr.bf16.mxu0 0
  %3139 = vmatpush1.bf16.msra.mxu0 %v3132
  %3140 = vmatprep.subr.bf16.mxu0 0
  %3141 = vmatpush1.bf16.msra.mxu0 %v3133
  %3142 = vmatprep.subr.bf16.mxu0 0
  %3143 = vmatpush1.bf16.msra.mxu0 0
  %3144 = vmatprep.subr.bf16.mxu0 0
  %3145 = vmatpush1.bf16.msra.mxu0 0
  %3146 = vmatprep.subr.bf16.mxu0 0
  %3147 = vmatpush1.bf16.msra.mxu0 0
  %3148 = vmatprep.subr.bf16.mxu0 0
  %3149 = vmatpush1.bf16.msra.mxu0 0
  %3150 = vmatprep.subr.bf16.mxu0 0
  %3151 = vmatpush1.bf16.msra.mxu0 0
  %3152 = vmatprep.subr.bf16.mxu0 0
  %3153 = vmatpush1.bf16.msra.mxu0 0
  %3154 = vmatprep.subr.bf16.mxu0 0
  %3155 = vmatpush1.bf16.msra.mxu0 0
  %3156 = vmatprep.subr.bf16.mxu0 0
  %3157 = vmatpush1.bf16.msra.mxu0 0
  %3158 = vmatprep.subr.bf16.mxu0 0
  %3159 = vmatpush1.bf16.msra.mxu0 0
  %3160 = vmatprep.subr.bf16.mxu0 0
  %3161 = vmatpush1.bf16.msra.mxu0 0
  %3162 = vmatprep.subr.bf16.mxu0 0
  %3163 = vmatpush1.bf16.msra.mxu0 0
  %3164 = vmatprep.subr.bf16.mxu0 0
  %3165 = vmatpush1.bf16.msra.mxu0 0
  %3166 = vmatprep.mubr.bf16.mxu0 0
  %3167 = vmatmul.mubr.bf16.gmra.mrb[0].mxu0 %v200
  %v3168 = vpop.f32.mrb[0].mxu0
  %v3169 = vadd.f32 0.0, %v3168
  %v3170 = vpop.f32.mrb[0].mxu0
  %v3171 = vpop.f32.mrb[0].mxu0
  %v3172 = vadd.f32 0.0, %v3171
  %v3173 = vpop.f32.mrb[0].mxu0
  %3174 = vmatprep.mubr.bf16.mxu0 0
  %3175 = vmatmul.mubr.bf16.gmra.mrb[0].mxu0 %v203
  %v3176 = vpop.f32.mrb[0].mxu0
  %v3177 = vadd.f32 0.0, %v3176
  %v3178 = vpop.f32.mrb[0].mxu0
  %v3179 = vpop.f32.mrb[0].mxu0
  %v3180 = vadd.f32 0.0, %v3179
  %v3181 = vpop.f32.mrb[0].mxu0
  %3182 = vmatprep.mubr.bf16.mxu0 0
  %3183 = vmatmul.mubr.bf16.gmra.mrb[0].mxu0 %v206
  %v3184 = vpop.f32.mrb[0].mxu0
  %v3185 = vadd.f32 0.0, %v3184
  %v3186 = vpop.f32.mrb[0].mxu0
  %v3187 = vpop.f32.mrb[0].mxu0
  %v3188 = vadd.f32 0.0, %v3187
  %v3189 = vpop.f32.mrb[0].mxu0
  %3190 = vmatprep.mubr.bf16.mxu0 0
  %3191 = vmatmul.mubr.bf16.gmra.mrb[0].mxu0 %v209
  %v3192 = vpop.f32.mrb[0].mxu0
  %v3193 = vadd.f32 0.0, %v3192
  %v3194 = vpop.f32.mrb[0].mxu0
  %v3195 = vpop.f32.mrb[0].mxu0
  %v3196 = vadd.f32 0.0, %v3195
  %v3197 = vpop.f32.mrb[0].mxu0
  %3198 = vdwg.mxu0
  %v3199 = vsel %vm22, %v3169, %v3100
  %v3200 = vsel %vm22, %v3172, %v3103
  %v3201 = vsel %vm22, %v3177, %v3108
  %v3202 = vsel %vm22, %v3180, %v3111
  %v3203 = vsel %vm22, %v3185, %v3116
  %v3204 = vsel %vm22, %v3188, %v3119
  %v3205 = vsel %vm22, %v3193, %v3124
  %v3206 = vsel %vm22, %v3196, %v3127
  %s3207 = scalar_lea.vmem %s3, 12
  %v3208 = vld [vmem:[%s3207] sm:$0x1]
  %v3210 = vlaneseq
  %v3211 = vshrl.u32 %v3210, 7
  %v3212 = vsub.s32 0, %v3211
  %v3213 = vrot.slane %v3208, %v3212
  %v3215 = vadd.f32 %v3199, %v3213
  %v3216 = vadd.f32 %v3200, %v3213
  %v3217 = vadd.f32 %v3201, %v3213
  %v3218 = vadd.f32 %v3202, %v3213
  %v3219 = vadd.f32 %v3203, %v3213
  %v3220 = vadd.f32 %v3204, %v3213
  %v3221 = vadd.f32 %v3205, %v3213
  %v3222 = vadd.f32 %v3206, %v3213
  %v3223 = vmax.f32 %v3215, 0.0
  %v3224 = vmax.f32 %v3216, 0.0
  %v3225 = vmax.f32 %v3217, 0.0
  %v3226 = vmax.f32 %v3218, 0.0
  %v3227 = vmax.f32 %v3219, 0.0
  %v3228 = vmax.f32 %v3220, 0.0
  %v3229 = vmax.f32 %v3221, 0.0
  %v3230 = vmax.f32 %v3222, 0.0
  %v3231 = vadd.f32 %v2988, %v3223
  %v3232 = vadd.f32 %v2989, %v3224
  %v3233 = vadd.f32 %v2990, %v3225
  %v3234 = vadd.f32 %v2991, %v3226
  %v3235 = vadd.f32 %v2992, %v3227
  %v3236 = vadd.f32 %v2993, %v3228
  %v3237 = vadd.f32 %v2994, %v3229
  %v3238 = vadd.f32 %v2995, %v3230
  %v3239 = vmul.f32 %v3231, 0.5
  %v3240 = vmul.f32 %v3232, 0.5
  %v3241 = vmul.f32 %v3233, 0.5
  %v3242 = vmul.f32 %v3234, 0.5
  %v3243 = vmul.f32 %v3235, 0.5
  %v3244 = vmul.f32 %v3236, 0.5
  %v3245 = vmul.f32 %v3237, 0.5
  %v3246 = vmul.f32 %v3238, 0.5
  %3247 = vst [vmem:[%s5] sm:$0xff] %v3239
  %3248 = vst [vmem:[%s5 + $0x8] sm:$0xff] %v3240
  %3249 = vst [vmem:[%s5 + $0x10] sm:$0xff] %v3241
  %3250 = vst [vmem:[%s5 + $0x18] sm:$0xff] %v3242
  %3251 = vst [vmem:[%s5 + $0x20] sm:$0xff] %v3243
  %3252 = vst [vmem:[%s5 + $0x28] sm:$0xff] %v3244
  %3253 = vst [vmem:[%s5 + $0x30] sm:$0xff] %v3245
  %3254 = vst [vmem:[%s5 + $0x38] sm:$0xff] %v3246
  %v3255 = vpack.c.bf16 %v3240, %v3239
  %v3256 = vpack.c.bf16 %v3242, %v3241
  %v3257 = vpack.c.bf16 %v3244, %v3243
  %v3258 = vpack.c.bf16 %v3246, %v3245
  %s3259 = scalar_lea.vmem %s2, 832
  %v3260 = vld [vmem:[%s3259] sm:$0xf]
  %v3261 = vld [vmem:[%s3259 + $0x4] sm:$0xf]
  %v3262 = vld [vmem:[%s3259 + $0x8] sm:$0xf]
  %v3263 = vld [vmem:[%s3259 + $0xc] sm:$0xf]
  %v3264 = vld [vmem:[%s3259 + $0x10] sm:$0xf]
  %v3265 = vld [vmem:[%s3259 + $0x14] sm:$0xf]
  %v3266 = vld [vmem:[%s3259 + $0x18] sm:$0xf]
  %v3267 = vld [vmem:[%s3259 + $0x1c] sm:$0xf]
  %v3268 = vld [vmem:[%s3259 + $0x20] sm:$0xf]
  %v3269 = vld [vmem:[%s3259 + $0x24] sm:$0xf]
  %v3270 = vld [vmem:[%s3259 + $0x28] sm:$0xf]
  %v3271 = vld [vmem:[%s3259 + $0x2c] sm:$0xf]
  %v3272 = vld [vmem:[%s3259 + $0x30] sm:$0xf]
  %v3273 = vld [vmem:[%s3259 + $0x34] sm:$0xf]
  %v3274 = vld [vmem:[%s3259 + $0x38] sm:$0xf]
  %v3275 = vld [vmem:[%s3259 + $0x3c] sm:$0xf]
  %v3292 = vunpack.c.l.b16 %v3260
  %v3293 = vunpack.c.l.b16 %v3261
  %v3294 = vunpack.c.l.b16 %v3262
  %v3295 = vunpack.c.l.b16 %v3263
  %v3296 = vunpack.c.l.b16 %v3264
  %v3297 = vunpack.c.l.b16 %v3265
  %v3298 = vunpack.c.l.b16 %v3266
  %v3299 = vunpack.c.l.b16 %v3267
  %v3300 = vunpack.c.l.b16 %v3268
  %v3301 = vunpack.c.l.b16 %v3269
  %v3302 = vunpack.c.l.b16 %v3270
  %v3303 = vunpack.c.l.b16 %v3271
  %v3304 = vunpack.c.l.b16 %v3272
  %v3305 = vunpack.c.l.b16 %v3273
  %v3306 = vunpack.c.l.b16 %v3274
  %v3307 = vunpack.c.l.b16 %v3275
  %v3308 = vpack.c.b16 %v3293, %v3292
  %v3309 = vpack.c.b16 %v3295, %v3294
  %v3310 = vpack.c.b16 %v3297, %v3296
  %v3311 = vpack.c.b16 %v3299, %v3298
  %v3312 = vpack.c.b16 %v3301, %v3300
  %v3313 = vpack.c.b16 %v3303, %v3302
  %v3314 = vpack.c.b16 %v3305, %v3304
  %v3315 = vpack.c.b16 %v3307, %v3306
  %3324 = vmatprep.subr.bf16.mxu0 0
  %3325 = vmatpush1.bf16.msra.mxu0 %v3308
  %3326 = vmatprep.subr.bf16.mxu0 0
  %3327 = vmatpush1.bf16.msra.mxu0 %v3309
  %3328 = vmatprep.subr.bf16.mxu0 0
  %3329 = vmatpush1.bf16.msra.mxu0 %v3310
  %3330 = vmatprep.subr.bf16.mxu0 0
  %3331 = vmatpush1.bf16.msra.mxu0 %v3311
  %3332 = vmatprep.subr.bf16.mxu0 0
  %3333 = vmatpush1.bf16.msra.mxu0 %v3312
  %3334 = vmatprep.subr.bf16.mxu0 0
  %3335 = vmatpush1.bf16.msra.mxu0 %v3313
  %3336 = vmatprep.subr.bf16.mxu0 0
  %3337 = vmatpush1.bf16.msra.mxu0 %v3314
  %3338 = vmatprep.subr.bf16.mxu0 0
  %3339 = vmatpush1.bf16.msra.mxu0 %v3315
  %3340 = vmatprep.subr.bf16.mxu0 0
  %3341 = vmatpush1.bf16.msra.mxu0 0
  %3342 = vmatprep.subr.bf16.mxu0 0
  %3343 = vmatpush1.bf16.msra.mxu0 0
  %3344 = vmatprep.subr.bf16.mxu0 0
  %3345 = vmatpush1.bf16.msra.mxu0 0
  %3346 = vmatprep.subr.bf16.mxu0 0
  %3347 = vmatpush1.bf16.msra.mxu0 0
  %3348 = vmatprep.subr.bf16.mxu0 0
  %3349 = vmatpush1.bf16.msra.mxu0 0
  %3350 = vmatprep.subr.bf16.mxu0 0
  %3351 = vmatpush1.bf16.msra.mxu0 0
  %3352 = vmatprep.subr.bf16.mxu0 0
  %3353 = vmatpush1.bf16.msra.mxu0 0
  %3354 = vmatprep.subr.bf16.mxu0 0
  %3355 = vmatpush1.bf16.msra.mxu0 0
  %3356 = vmatprep.mubr.bf16.mxu0 0
  %3357 = vmatmul.mubr.bf16.gmra.mrb[0].mxu0 %v3255
  %v3358 = vpop.f32.mrb[0].mxu0
  %v3359 = vadd.f32 0.0, %v3358
  %v3360 = vpop.f32.mrb[0].mxu0
  %v3361 = vpop.f32.mrb[0].mxu0
  %v3362 = vadd.f32 0.0, %v3361
  %v3363 = vpop.f32.mrb[0].mxu0
  %3364 = vmatprep.mubr.bf16.mxu0 0
  %3365 = vmatmul.mubr.bf16.gmra.mrb[0].mxu0 %v3256
  %v3366 = vpop.f32.mrb[0].mxu0
  %v3367 = vadd.f32 0.0, %v3366
  %v3368 = vpop.f32.mrb[0].mxu0
  %v3369 = vpop.f32.mrb[0].mxu0
  %v3370 = vadd.f32 0.0, %v3369
  %v3371 = vpop.f32.mrb[0].mxu0
  %3372 = vmatprep.mubr.bf16.mxu0 0
  %3373 = vmatmul.mubr.bf16.gmra.mrb[0].mxu0 %v3257
  %v3374 = vpop.f32.mrb[0].mxu0
  %v3375 = vadd.f32 0.0, %v3374
  %v3376 = vpop.f32.mrb[0].mxu0
  %v3377 = vpop.f32.mrb[0].mxu0
  %v3378 = vadd.f32 0.0, %v3377
  %v3379 = vpop.f32.mrb[0].mxu0
  %3380 = vmatprep.mubr.bf16.mxu0 0
  %3381 = vmatmul.mubr.bf16.gmra.mrb[0].mxu0 %v3258
  %v3382 = vpop.f32.mrb[0].mxu0
  %v3383 = vadd.f32 0.0, %v3382
  %v3384 = vpop.f32.mrb[0].mxu0
  %v3385 = vpop.f32.mrb[0].mxu0
  %v3386 = vadd.f32 0.0, %v3385
  %v3387 = vpop.f32.mrb[0].mxu0
  %3388 = vdwg.mxu0
  %v3389 = vpack.c.bf16 %v3362, %v3359
  %v3390 = vpack.c.bf16 %v3370, %v3367
  %v3391 = vpack.c.bf16 %v3378, %v3375
  %v3392 = vpack.c.bf16 %v3386, %v3383
  %3393 = vmatprep.subr.bf16.mxu0 0
  %3394 = vmatpush1.bf16.msra.mxu0 %v3389
  %3395 = vmatprep.subr.bf16.mxu0 0
  %3396 = vmatpush1.bf16.msra.mxu0 %v3390
  %3397 = vmatprep.subr.bf16.mxu0 0
  %3398 = vmatpush1.bf16.msra.mxu0 %v3391
  %3399 = vmatprep.subr.bf16.mxu0 0
  %3400 = vmatpush1.bf16.msra.mxu0 %v3392
  %3401 = vmatprep.subr.bf16.mxu0 0
  %3402 = vmatpush1.bf16.msra.mxu0 0
  %3403 = vmatprep.subr.bf16.mxu0 0
  %3404 = vmatpush1.bf16.msra.mxu0 0
  %3405 = vmatprep.subr.bf16.mxu0 0
  %3406 = vmatpush1.bf16.msra.mxu0 0
  %3407 = vmatprep.subr.bf16.mxu0 0
  %3408 = vmatpush1.bf16.msra.mxu0 0
  %3409 = vmatprep.subr.bf16.mxu0 0
  %3410 = vmatpush1.bf16.msra.mxu0 0
  %3411 = vmatprep.subr.bf16.mxu0 0
  %3412 = vmatpush1.bf16.msra.mxu0 0
  %3413 = vmatprep.subr.bf16.mxu0 0
  %3414 = vmatpush1.bf16.msra.mxu0 0
  %3415 = vmatprep.subr.bf16.mxu0 0
  %3416 = vmatpush1.bf16.msra.mxu0 0
  %3417 = vmatprep.subr.bf16.mxu0 0
  %3418 = vmatpush1.bf16.msra.mxu0 0
  %3419 = vmatprep.subr.bf16.mxu0 0
  %3420 = vmatpush1.bf16.msra.mxu0 0
  %3421 = vmatprep.subr.bf16.mxu0 0
  %3422 = vmatpush1.bf16.msra.mxu0 0
  %3423 = vmatprep.subr.bf16.mxu0 0
  %3424 = vmatpush1.bf16.msra.mxu0 0
  %3425 = vmatprep.mubr.bf16.mxu0 0
  %3426 = vmatmul.mubr.bf16.gmra.mrb[0].mxu0 %v200
  %v3427 = vpop.f32.mrb[0].mxu0
  %v3428 = vadd.f32 0.0, %v3427
  %v3429 = vpop.f32.mrb[0].mxu0
  %v3430 = vpop.f32.mrb[0].mxu0
  %v3431 = vadd.f32 0.0, %v3430
  %v3432 = vpop.f32.mrb[0].mxu0
  %3433 = vmatprep.mubr.bf16.mxu0 0
  %3434 = vmatmul.mubr.bf16.gmra.mrb[0].mxu0 %v203
  %v3435 = vpop.f32.mrb[0].mxu0
  %v3436 = vadd.f32 0.0, %v3435
  %v3437 = vpop.f32.mrb[0].mxu0
  %v3438 = vpop.f32.mrb[0].mxu0
  %v3439 = vadd.f32 0.0, %v3438
  %v3440 = vpop.f32.mrb[0].mxu0
  %3441 = vmatprep.mubr.bf16.mxu0 0
  %3442 = vmatmul.mubr.bf16.gmra.mrb[0].mxu0 %v206
  %v3443 = vpop.f32.mrb[0].mxu0
  %v3444 = vadd.f32 0.0, %v3443
  %v3445 = vpop.f32.mrb[0].mxu0
  %v3446 = vpop.f32.mrb[0].mxu0
  %v3447 = vadd.f32 0.0, %v3446
  %v3448 = vpop.f32.mrb[0].mxu0
  %3449 = vmatprep.mubr.bf16.mxu0 0
  %3450 = vmatmul.mubr.bf16.gmra.mrb[0].mxu0 %v209
  %v3451 = vpop.f32.mrb[0].mxu0
  %v3452 = vadd.f32 0.0, %v3451
  %v3453 = vpop.f32.mrb[0].mxu0
  %v3454 = vpop.f32.mrb[0].mxu0
  %v3455 = vadd.f32 0.0, %v3454
  %v3456 = vpop.f32.mrb[0].mxu0
  %3457 = vdwg.mxu0
  %v3458 = vsel %vm23, %v3428, %v3359
  %v3459 = vsel %vm23, %v3431, %v3362
  %v3460 = vsel %vm23, %v3436, %v3367
  %v3461 = vsel %vm23, %v3439, %v3370
  %v3462 = vsel %vm23, %v3444, %v3375
  %v3463 = vsel %vm23, %v3447, %v3378
  %v3464 = vsel %vm23, %v3452, %v3383
  %v3465 = vsel %vm23, %v3455, %v3386
  %s3466 = scalar_lea.vmem %s3, 13
  %v3467 = vld [vmem:[%s3466] sm:$0x1]
  %v3469 = vlaneseq
  %v3470 = vshrl.u32 %v3469, 7
  %v3471 = vsub.s32 0, %v3470
  %v3472 = vrot.slane %v3467, %v3471
  %v3474 = vadd.f32 %v3458, %v3472
  %v3475 = vadd.f32 %v3459, %v3472
  %v3476 = vadd.f32 %v3460, %v3472
  %v3477 = vadd.f32 %v3461, %v3472
  %v3478 = vadd.f32 %v3462, %v3472
  %v3479 = vadd.f32 %v3463, %v3472
  %v3480 = vadd.f32 %v3464, %v3472
  %v3481 = vadd.f32 %v3465, %v3472
  %3482 = vst [vmem:[%s4] sm:$0xff] %v3474
  %3483 = vst [vmem:[%s4 + $0x8] sm:$0xff] %v3475
  %3484 = vst [vmem:[%s4 + $0x10] sm:$0xff] %v3476
  %3485 = vst [vmem:[%s4 + $0x18] sm:$0xff] %v3477
  %3486 = vst [vmem:[%s4 + $0x20] sm:$0xff] %v3478
  %3487 = vst [vmem:[%s4 + $0x28] sm:$0xff] %v3479
  %3488 = vst [vmem:[%s4 + $0x30] sm:$0xff] %v3480
  %3489 = vst [vmem:[%s4 + $0x38] sm:$0xff] %v3481
  // Predicated region
  $region18: #{g_res_net_forward.1} parent=0 // pred_check
    _
  $region19: #{g_res_net_forward.1} parent=0 // pred_check_branch
    %3491 = sbr.rel (0) target = $region21
  $region20: #{g_res_net_forward.1} parent=0 // pred_region
    _
  $region21: #{g_res_net_forward.1} parent=0 // pred_fallthru
    _
  // Predicated region
  $region22: #{g_res_net_forward.1} parent=0 // pred_check
    _
  $region23: #{g_res_net_forward.1} parent=0 // pred_check_branch
    %3493 = sbr.rel (0) target = $region25
  $region24: #{g_res_net_forward.1} parent=0 // pred_region
    _
  $region25: #{g_res_net_forward.1} parent=0 // pred_fallthru
    _
  // Predicated region
  $region26: #{g_res_net_forward.1} parent=0 // pred_check
    _
  $region27: #{g_res_net_forward.1} parent=0 // pred_check_branch
    %3495 = sbr.rel (0) target = $region29
  $region28: #{g_res_net_forward.1} parent=0 // pred_region
    _
  $region29: #{g_res_net_forward.1} parent=0 // pred_fallthru
    _
  // Predicated region
  $region30: #{g_res_net_forward.1} parent=0 // pred_check
    _
  $region31: #{g_res_net_forward.1} parent=0 // pred_check_branch
    %3497 = sbr.rel (0) target = $region33
  $region32: #{g_res_net_forward.1} parent=0 // pred_region
    _
  $region33: #{g_res_net_forward.1} parent=0 // pred_fallthru
    _

</llo_original>
